<compile_context>
chip_gen: v6e
topology: v6e:2x2x1
jax: 0.10.0
libtpu: 0.0.40
codegen_flags: <defaults>
</compile_context>

<pallas_src>
import jax
import jax.numpy as jnp
from jax.experimental import pallas as pl
from jax.experimental.pallas import tpu as pltpu

VMEM = pltpu.MemorySpace.VMEM
BF16 = jnp.bfloat16


# ----------------------------------------------------------------------------
# VMEM budgeting helper (review: set vmem_limit_bytes from actual bytes)
# ----------------------------------------------------------------------------
def _padded_bytes(shape, dtype):
    d = jnp.dtype(dtype)
    pack = max(1, 4 // d.itemsize)            # sublane packing: f32->8, bf16->16
    dims = list(shape)
    if len(dims) >= 1:
        dims[-1] = pl.cdiv(dims[-1], 128) * 128
    if len(dims) >= 2:
        dims[-2] = pl.cdiv(dims[-2], 8 * pack) * (8 * pack)
    n = 1
    for x in dims:
        n *= int(x)
    return n * d.itemsize


def _vmem_budget(blocks, resident):
    """blocks: pipelined (double-buffered) per-grid-step tiles; resident: weights/scratch."""
    total = 2 * sum(_padded_bytes(s, dt) for s, dt in blocks)
    total += sum(_padded_bytes(s, dt) for s, dt in resident)
    total = int(1.5 * total)                              # headroom
    return min(max(total, 32 * 1024 * 1024), 100 * 1024 * 1024)


# ----------------------------------------------------------------------------
# Kernel 1: fused sentence encoder (BiLSTM + self-attention pooling + inner_pred)
# ----------------------------------------------------------------------------
def _sentence_encoder_kernel(
        x_ref,        # [T, Nt, E]   bf16  word embeddings (time-major block)
        mask_ref,     # [T, Nt, 1]   f32   1.0 = valid token
        wih_fb_ref,   # [E, 8H]      bf16  fused (fwd | bwd) input->gate weights (i,f,g,o)
        whh_f_ref,    # [H, 4H]      bf16  fwd hidden->gate weights
        whh_b_ref,    # [H, 4H]      bf16  bwd hidden->gate weights
        b_f_ref,      # [1, 4H]      f32   fwd combined bias (b_ih + b_hh)
        b_b_ref,      # [1, 4H]      f32   bwd combined bias
        ws1t_ref,     # [2H, 2H]     bf16
        b1_ref,       # [1, 2H]      f32
        ws2t_ref,     # [2H, 1]      bf16
        b2_ref,       # [1, 1]       f32
        wint_ref,     # [2H, 2H]     bf16
        binn_ref,     # [1, 2H]      f32
        out_ref,      # [Nt, 2H]     bf16  sentence encodings
        gf_ref,       # [T, Nt, 4H]  bf16  scratch: hoisted fwd input projection
        gb_ref,       # [T, Nt, 4H]  bf16  scratch: hoisted bwd input projection
        outp_ref,     # [T, Nt, 2H]  bf16  scratch: VMEM-resident BiLSTM outputs
):
    T, N, E = x_ref.shape
    H4 = whh_f_ref.shape[1]
    H = H4 // 4
    D = 2 * H

    # ---- ONE fused input-projection GEMM for both directions ----------------
    x2d = x_ref[...].reshape(T * N, E)                       # bf16 already
    g = jnp.dot(x2d, wih_fb_ref[...], preferred_element_type=jnp.float32)   # (T*N, 8H)
    gf_ref[...] = (g[:, :H4] + b_f_ref[...]).reshape(T, N, H4).astype(BF16)
    gb_ref[...] = (g[:, H4:] + b_b_ref[...]).reshape(T, N, H4).astype(BF16)

    whh_f = whh_f_ref[...]
    whh_b = whh_b_ref[...]

    def gates(pre):
        i = jax.nn.sigmoid(pre[:, 0 * H:1 * H])
        f = jax.nn.sigmoid(pre[:, 1 * H:2 * H])
        gg = jnp.tanh(pre[:, 2 * H:3 * H])
        o = jax.nn.sigmoid(pre[:, 3 * H:4 * H])
        return i, f, gg, o

    # ---- recurrence: one small h @ Whh matmul per direction per step --------
    # Fully unrolled (static T).  For long sequences use lax.fori_loop(unroll=2..4).
    h_f = c_f = h_b = c_b = jnp.zeros((N, H), jnp.float32)
    for s in range(T):
        # forward direction, t = s
        pre = gf_ref[s].astype(jnp.float32) + jnp.dot(
            h_f.astype(BF16), whh_f, preferred_element_type=jnp.float32)
        ig, fg, gg, og = gates(pre)
        c_f = fg * c_f + ig * gg
        h_f = og * jnp.tanh(c_f)
        # No forward-direction masking: padded positions get attn == 0.0 exactly
        # below, so their outp values never reach the result.
        outp_ref[s, :, 0:H] = h_f.astype(BF16)

        # backward direction, t = T - 1 - s
        tb = T - 1 - s
        pre = gb_ref[tb].astype(jnp.float32) + jnp.dot(
            h_b.astype(BF16), whh_b, preferred_element_type=jnp.float32)
        ig, fg, gg, og = gates(pre)
        c_b = fg * c_b + ig * gg
        h_b = og * jnp.tanh(c_b)
        valid = mask_ref[tb] > 0.0                            # (Nt, 1) bool
        # pack_padded_sequence semantics: backward direction starts at
        # t = len - 1 with zero state, so keep state zero while t >= len.
        h_b = jnp.where(valid, h_b, 0.0)
        c_b = jnp.where(valid, c_b, 0.0)
        outp_ref[tb, :, H:D] = h_b.astype(BF16)

    # ---- self-attention pooling + inner_pred ---------------------------------
    outp = outp_ref[...]                                      # (T, N, D) bf16
    u = jnp.tanh(jnp.dot(outp.reshape(T * N, D), ws1t_ref[...],
                         preferred_element_type=jnp.float32) + b1_ref[...])
    scores = (jnp.dot(u.astype(BF16), ws2t_ref[...],
                      preferred_element_type=jnp.float32)
              + b2_ref[...]).reshape(T, N, 1)
    scores = scores + (-10000.0) * (1.0 - mask_ref[...])
    m = jnp.max(scores, axis=0)                               # (N, 1)
    e = jnp.exp(scores - m)
    attn = e * pl.reciprocal(jnp.sum(e, axis=0), approx=True)   # softmax over T
    sent = jnp.sum(outp.astype(jnp.float32) * attn, axis=0)    # (N, D)
    out_ref[...] = jnp.tanh(jnp.dot(sent.astype(BF16), wint_ref[...],
                                    preferred_element_type=jnp.float32)
                            + binn_ref[...]).astype(out_ref.dtype)


# ----------------------------------------------------------------------------
# Kernel 2: fused discourse LSTM (final state only) + pre_pred/pred head
# ----------------------------------------------------------------------------
def _discourse_head_kernel(
        x_ref,        # [L, B, D]    bf16  sentence encodings, time-major
        wih_ref,      # [D, 4D]      bf16
        whh_ref,      # [D, 4D]      bf16
        b_ref,        # [1, 4D]      f32
        wpret_ref,    # [D, D]       bf16
        bpre_ref,     # [1, D]       f32
        wpredt_ref,   # [D, out]     bf16
        bpred_ref,    # [1, out]     f32
        out_ref,      # [B, out]     f32
        g_ref,        # [L, B, 4D]   bf16  scratch: hoisted input projection
):
    L, B, D = x_ref.shape
    H4 = whh_ref.shape[1]
    H = H4 // 4   # == D for this model

    g_ref[...] = (jnp.dot(x_ref[...].reshape(L * B, D), wih_ref[...],
                          preferred_element_type=jnp.float32)
                  + b_ref[...]).reshape(L, B, H4).astype(BF16)
    whh = whh_ref[...]

    h = c = jnp.zeros((B, H), jnp.float32)
    for t in range(L):                                        # small static L
        pre = g_ref[t].astype(jnp.float32) + jnp.dot(
            h.astype(BF16), whh, preferred_element_type=jnp.float32)
        i = jax.nn.sigmoid(pre[:, 0 * H:1 * H])
        f = jax.nn.sigmoid(pre[:, 1 * H:2 * H])
        g = jnp.tanh(pre[:, 2 * H:3 * H])
        o = jax.nn.sigmoid(pre[:, 3 * H:4 * H])
        c = f * c + i * g
        h = o * jnp.tanh(c)

    # pred(drop(tanh(pre_pred(drop(h_last)))))  — dropout is identity (inference).
    pre = jnp.tanh(jnp.dot(h.astype(BF16), wpret_ref[...],
                           preferred_element_type=jnp.float32) + bpre_ref[...])
    out_ref[...] = jnp.dot(pre.astype(BF16), wpredt_ref[...],
                           preferred_element_type=jnp.float32) + bpred_ref[...]


# ----------------------------------------------------------------------------
# pallas_call wrappers
# ----------------------------------------------------------------------------
def sentence_encoder(x_tm, mask_tm3, params, *, n_tile=None):
    """x_tm: [T, N, E] bf16, mask_tm3: [T, N, 1] f32 -> sentence encodings [N, 2H] bf16."""
    T, N, E = x_tm.shape
    H4 = params['whh_f'].shape[1]
    H = H4 // 4
    D = 2 * H
    if n_tile is None or n_tile >= N:
        n_tile = N          # single block at demo sizes
    assert N % n_tile == 0
    # Production sizing notes (review):
    #   * n_tile < N requires n_tile % 8 == 0 (bf16 out: 16) and E, D % 128 == 0
    #     (true at ELMo scale: E = 1024, H = 512).
    #   * v7x: pick n_tile <= N/2 so the parallel grid feeds both TensorCores,
    #     and budget scratch against 64 MiB per TC.
    #   * v6e: go as large as VMEM allows (>= 256 rows) so the per-step
    #     recurrent matmul fills the 256-wide MXU.

    wih_fb = jnp.concatenate([params['wih_f'], params['wih_b']], axis=1).astype(BF16)
    weights = (wih_fb,
               params['whh_f'].astype(BF16), params['whh_b'].astype(BF16),
               params['b_f'], params['b_b'],
               params['ws1t'].astype(BF16), params['b1'],
               params['ws2t'].astype(BF16), params['b2'],
               params['wint'].astype(BF16), params['binn'])

    in_specs = [pl.BlockSpec((T, n_tile, E), lambda i: (0, i, 0)),
                pl.BlockSpec((T, n_tile, 1), lambda i: (0, i, 0))]
    in_specs += [pl.BlockSpec(w.shape, lambda i: (0, 0)) for w in weights]

    scratch = [pltpu.VMEM((T, n_tile, H4), BF16),
               pltpu.VMEM((T, n_tile, H4), BF16),
               pltpu.VMEM((T, n_tile, D), BF16)]

    vmem_limit = _vmem_budget(
        blocks=[((T, n_tile, E), BF16), ((T, n_tile, 1), jnp.float32),
                ((n_tile, D), BF16)],
        resident=[(w.shape, w.dtype) for w in weights]
                 + [((T, n_tile, H4), BF16), ((T, n_tile, H4), BF16),
                    ((T, n_tile, D), BF16)])

    return pl.pallas_call(
        _sentence_encoder_kernel,
        out_shape=jax.ShapeDtypeStruct((N, D), BF16),
        grid=(N // n_tile,),
        in_specs=in_specs,
        out_specs=pl.BlockSpec((n_tile, D), lambda i: (i, 0)),
        scratch_shapes=scratch,
        compiler_params=pltpu.CompilerParams(
            dimension_semantics=("parallel",),
            vmem_limit_bytes=vmem_limit),
    )(x_tm, mask_tm3, *weights)


def discourse_and_head(disc_tm, params):
    """disc_tm: [L, B, 2H] bf16 -> predictions [B, out_dim] (last LSTM step + head)."""
    L, B, D = disc_tm.shape
    H4 = params['whh_d'].shape[1]
    out_dim = params['wpredt'].shape[1]
    args = (disc_tm.astype(BF16),
            params['wih_d'].astype(BF16), params['whh_d'].astype(BF16), params['b_d'],
            params['wpret'].astype(BF16), params['bpre'],
            params['wpredt'].astype(BF16), params['bpred'])

    vmem_limit = _vmem_budget(
        blocks=[],
        resident=[(a.shape, a.dtype) for a in args]
                 + [((L, B, H4), BF16), ((B, out_dim), jnp.float32)])

    # TODO(synk): on v7x at large document counts, grid over documents (block B)
    #             with dimension_semantics=("parallel",) to use both TensorCores.
    return pl.pallas_call(
        _discourse_head_kernel,
        out_shape=jax.ShapeDtypeStruct((B, out_dim), jnp.float32),
        in_specs=[pl.BlockSpec(memory_space=VMEM)] * len(args),
        out_specs=pl.BlockSpec(memory_space=VMEM),
        scratch_shapes=[pltpu.VMEM((L, B, H4), BF16)],
        compiler_params=pltpu.CompilerParams(vmem_limit_bytes=vmem_limit),
    )(*args)


# ----------------------------------------------------------------------------
# Parameters + full forward (TextModel.forward)
# ----------------------------------------------------------------------------
def init_params(key, emb_dim, hidden_dim, out_dim):
    H, D = hidden_dim, 2 * hidden_dim
    keys = jax.random.split(key, 16)
    n = lambda k, shape: 0.1 * jax.random.normal(k, shape, dtype=jnp.float32)
    return {
        # SentenceEncoder.context_encoder (BiLSTM) — fused gate weights (i,f,g,o)
        'wih_f': n(keys[0], (emb_dim, 4 * H)),
        'whh_f': n(keys[1], (H, 4 * H)),
        'b_f':   n(keys[2], (1, 4 * H)),
        'wih_b': n(keys[3], (emb_dim, 4 * H)),
        'whh_b': n(keys[4], (H, 4 * H)),
        'b_b':   n(keys[5], (1, 4 * H)),
        # self-attention (ws1, ws2) + inner_pred  (Linear weights pre-transposed)
        'ws1t':  n(keys[6], (D, D)),
        'b1':    jnp.zeros((1, D), jnp.float32),
        'ws2t':  n(keys[7], (D, 1)),
        'b2':    jnp.zeros((1, 1), jnp.float32),
        'wint':  n(keys[8], (D, D)),
        'binn':  jnp.zeros((1, D), jnp.float32),
        # DiscourseEncoder LSTM (input 2H -> hidden 2H, unidirectional)
        'wih_d': n(keys[9], (D, 4 * D)),
        'whh_d': n(keys[10], (D, 4 * D)),
        'b_d':   n(keys[11], (1, 4 * D)),
        # pre_pred / pred head
        'wpret':  n(keys[12], (D, D)),
        'bpre':   jnp.zeros((1, D), jnp.float32),
        'wpredt': n(keys[13], (D, out_dim)),
        'bpred':  jnp.zeros((1, out_dim), jnp.float32),
    }


def text_model_forward(params, emb, lengths, mask, history_len, *, n_tile=None):
    """emb: (N_sent, T, E), mask: (N_sent, T) of {0,1}.  `lengths` is already
    encoded in `mask` (kept for API parity with the PyTorch module)."""
    del lengths
    n_sent = emb.shape[0]
    # bf16 + time-major *before* the kernel: halves the dominant HBM traffic.
    # TODO(synk): emit time-major bf16 embeddings directly from the embedder to
    #             remove this XLA transpose of the largest tensor entirely.
    x_tm = jnp.transpose(emb.astype(BF16), (1, 0, 2))                          # (T, N, E)
    mask_tm3 = jnp.transpose(mask, (1, 0)).astype(jnp.float32)[:, :, None]     # (T, N, 1)

    # fused BiLSTM + attention pooling + inner_pred
    sent_enc = sentence_encoder(x_tm, mask_tm3, params, n_tile=n_tile)         # (N, 2H) bf16

    # discourse LSTM over sentence history + prediction head (single kernel)
    n_doc = n_sent // history_len
    disc_tm = jnp.transpose(sent_enc.reshape(n_doc, history_len, -1), (1, 0, 2))
    return discourse_and_head(disc_tm, params)                                 # (B, out)


# ----------------------------------------------------------------------------
# Pure-JAX reference (same math, bf16 matmul operands, f32 state) for self-check
# ----------------------------------------------------------------------------
def _ref_lstm(x_tm, mask_tm, wih, whh, b, reverse):
    T, N, _ = x_tm.shape
    H = whh.shape[0]
    gin = (jnp.dot(x_tm.reshape(T * N, -1).astype(BF16), wih.astype(BF16),
                   preferred_element_type=jnp.float32) + b).reshape(T, N, 4 * H)
    h = jnp.zeros((N, H), jnp.float32)
    c = jnp.zeros((N, H), jnp.float32)
    outs = [None] * T
    order = range(T - 1, -1, -1) if reverse else range(T)
    for t in order:
        pre = gin[t] + jnp.dot(h.astype(BF16), whh.astype(BF16),
                               preferred_element_type=jnp.float32)
        i = jax.nn.sigmoid(pre[:, :H]); f = jax.nn.sigmoid(pre[:, H:2 * H])
        g = jnp.tanh(pre[:, 2 * H:3 * H]); o = jax.nn.sigmoid(pre[:, 3 * H:])
        c_new = f * c + i * g
        h_new = o * jnp.tanh(c_new)
        valid = mask_tm[t][:, None] > 0
        h_out = jnp.where(valid, h_new, 0.0)
        outs[t] = h_out
        if reverse:
            h, c = h_out, jnp.where(valid, c_new, 0.0)
        else:
            h, c = h_new, c_new
    return jnp.stack(outs, axis=0)


def _ref_forward(params, emb, lengths, mask, history_len):
    del lengths
    x_tm = jnp.transpose(emb, (1, 0, 2)).astype(jnp.float32)
    mask_tm = jnp.transpose(mask, (1, 0)).astype(jnp.float32)
    out_f = _ref_lstm(x_tm, mask_tm, params['wih_f'], params['whh_f'], params['b_f'], False)
    out_b = _ref_lstm(x_tm, mask_tm, params['wih_b'], params['whh_b'], params['b_b'], True)
    outp = jnp.concatenate([out_f, out_b], axis=-1)                            # (T, N, D)
    T, N, D = outp.shape
    u = jnp.tanh(jnp.dot(outp.reshape(T * N, D).astype(BF16), params['ws1t'].astype(BF16),
                         preferred_element_type=jnp.float32) + params['b1'])
    scores = (jnp.dot(u.astype(BF16), params['ws2t'].astype(BF16),
                      preferred_element_type=jnp.float32) + params['b2']).reshape(T, N)
    scores = scores + (-10000.0) * (1.0 - mask_tm)
    attn = jax.nn.softmax(scores, axis=0)
    sent = jnp.sum(outp * attn[:, :, None], axis=0)
    sent_enc = jnp.tanh(jnp.dot(sent.astype(BF16), params['wint'].astype(BF16),
                                preferred_element_type=jnp.float32) + params['binn'])
    n_doc = sent_enc.shape[0] // history_len
    disc_tm = jnp.transpose(sent_enc.reshape(n_doc, history_len, -1), (1, 0, 2))
    ones_mask = jnp.ones((history_len, n_doc), jnp.float32)
    disc_out = _ref_lstm(disc_tm, ones_mask, params['wih_d'], params['whh_d'],
                         params['b_d'], False)
    d_last = disc_out[-1]
    pre = jnp.tanh(jnp.dot(d_last.astype(BF16), params['wpret'].astype(BF16),
                           preferred_element_type=jnp.float32) + params['bpre'])
    return jnp.dot(pre.astype(BF16), params['wpredt'].astype(BF16),
                   preferred_element_type=jnp.float32) + params['bpred']


if __name__ == "__main__":
    # Small, self-consistent shapes (module defaults scaled down):
    history_len = 2
    n_docs = 4
    seq_len = 8
    emb_dim = 32
    hidden_dim = 16
    out_dim = 8
    n_sent = n_docs * history_len

    key = jax.random.PRNGKey(0)
    k_emb, k_params = jax.random.split(key)
    params = init_params(k_params, emb_dim, hidden_dim, out_dim)

    # Precomputed "ELMo" word embeddings + mask (stand-in for get_word_embeddings).
    emb = jax.random.normal(k_emb, (n_sent, seq_len, emb_dim), dtype=jnp.float32)
    lengths = jnp.array([8, 5, 7, 3, 6, 8, 2, 4], dtype=jnp.int32)
    mask = (jnp.arange(seq_len)[None, :] < lengths[:, None]).astype(jnp.float32)

    out = text_model_forward(params, emb, lengths, mask, history_len)
    out = jax.block_until_ready(out)

    ref = _ref_forward(params, emb, lengths, mask, history_len)
    assert out.shape == (n_docs, out_dim)
    assert bool(jnp.all(jnp.isfinite(out)))
    max_err = float(jnp.max(jnp.abs(out - ref)))
    assert bool(jnp.allclose(out, ref, atol=2e-2, rtol=2e-2)), f"max abs err {max_err}"
    print("KERNEL_OK")
</pallas_src>

<mosaic_0001>
module attributes {stable_mosaic.version = 11 : i64} {
  func.func @_sentence_encoder_kernel(%arg0: i32, %arg1: memref<8x8x32xbf16, #tpu.memory_space<vmem>>, %arg2: memref<8x8x1xf32, #tpu.memory_space<vmem>>, %arg3: memref<32x128xbf16, #tpu.memory_space<vmem>>, %arg4: memref<16x64xbf16, #tpu.memory_space<vmem>>, %arg5: memref<16x64xbf16, #tpu.memory_space<vmem>>, %arg6: memref<1x64xf32, #tpu.memory_space<vmem>>, %arg7: memref<1x64xf32, #tpu.memory_space<vmem>>, %arg8: memref<32x32xbf16, #tpu.memory_space<vmem>>, %arg9: memref<1x32xf32, #tpu.memory_space<vmem>>, %arg10: memref<32x1xbf16, #tpu.memory_space<vmem>>, %arg11: memref<1x1xf32, #tpu.memory_space<vmem>>, %arg12: memref<32x32xbf16, #tpu.memory_space<vmem>>, %arg13: memref<1x32xf32, #tpu.memory_space<vmem>>, %arg14: memref<8x32xbf16, #tpu.memory_space<vmem>>, %arg15: memref<8x8x64xbf16, #tpu.memory_space<vmem>>, %arg16: memref<8x8x64xbf16, #tpu.memory_space<vmem>>, %arg17: memref<8x8x32xbf16, #tpu.memory_space<vmem>>) attributes {dimension_semantics = [#tpu.dimension_semantics<parallel>], iteration_bounds = array<i64: 1>, scalar_prefetch = 0 : i64, scratch_operands = 3 : i64, tpu.core_type = #tpu.core_type<tc>, window_params = [{transform_indices = @transform_0, window_bounds = array<i64: 8, 8, 32>}, {transform_indices = @transform_1, window_bounds = array<i64: 8, 8, 1>}, {pipeline_mode = #tpu.pipeline_mode<synchronous>, transform_indices = @transform_2, window_bounds = array<i64: 32, 128>}, {pipeline_mode = #tpu.pipeline_mode<synchronous>, transform_indices = @transform_3, window_bounds = array<i64: 16, 64>}, {pipeline_mode = #tpu.pipeline_mode<synchronous>, transform_indices = @transform_4, window_bounds = array<i64: 16, 64>}, {pipeline_mode = #tpu.pipeline_mode<synchronous>, transform_indices = @transform_5, window_bounds = array<i64: 1, 64>}, {pipeline_mode = #tpu.pipeline_mode<synchronous>, transform_indices = @transform_6, window_bounds = array<i64: 1, 64>}, {pipeline_mode = #tpu.pipeline_mode<synchronous>, transform_indices = @transform_7, window_bounds = array<i64: 32, 32>}, {pipeline_mode = #tpu.pipeline_mode<synchronous>, transform_indices = @transform_8, window_bounds = array<i64: 1, 32>}, {pipeline_mode = #tpu.pipeline_mode<synchronous>, transform_indices = @transform_9, window_bounds = array<i64: 32, 1>}, {pipeline_mode = #tpu.pipeline_mode<synchronous>, transform_indices = @transform_10, window_bounds = array<i64: 1, 1>}, {pipeline_mode = #tpu.pipeline_mode<synchronous>, transform_indices = @transform_11, window_bounds = array<i64: 32, 32>}, {pipeline_mode = #tpu.pipeline_mode<synchronous>, transform_indices = @transform_12, window_bounds = array<i64: 1, 32>}, {transform_indices = @transform_13, window_bounds = array<i64: 8, 32>}]} {
    %c0 = arith.constant 0 : index
    %c0_0 = arith.constant 0 : index
    %c0_1 = arith.constant 0 : index
    %0 = vector.load %arg1[%c0, %c0_0, %c0_1] : memref<8x8x32xbf16, #tpu.memory_space<vmem>>, vector<8x8x32xbf16>
    %1 = vector.shape_cast %0 : vector<8x8x32xbf16> to vector<64x32xbf16>
    %c0_2 = arith.constant 0 : index
    %c0_3 = arith.constant 0 : index
    %2 = vector.load %arg3[%c0_2, %c0_3] : memref<32x128xbf16, #tpu.memory_space<vmem>>, vector<32x128xbf16>
    %cst = arith.constant dense<0.000000e+00> : vector<64x128xf32>
    %3 = tpu.matmul %1, %2, %cst {dimension_numbers = #tpu.dot_dimension_numbers<[1], [0], [0], [1], [0, 0, 1, 1], [], []>} : vector<64x32xbf16>, vector<32x128xbf16>, vector<64x128xf32> -> vector<64x128xf32>
    %4 = vector.extract_strided_slice %3 {offsets = [0, 0], sizes = [64, 64], strides = [1, 1]} : vector<64x128xf32> to vector<64x64xf32>
    %c0_4 = arith.constant 0 : index
    %c0_5 = arith.constant 0 : index
    %5 = vector.load %arg6[%c0_4, %c0_5] : memref<1x64xf32, #tpu.memory_space<vmem>>, vector<1x64xf32>
    %6 = vector.broadcast %5 : vector<1x64xf32> to vector<64x64xf32>
    %7 = arith.addf %4, %6 : vector<64x64xf32>
    %8 = vector.shape_cast %7 : vector<64x64xf32> to vector<8x8x64xf32>
    %9 = arith.truncf %8 : vector<8x8x64xf32> to vector<8x8x64xbf16>
    %c0_6 = arith.constant 0 : index
    %c0_7 = arith.constant 0 : index
    %c0_8 = arith.constant 0 : index
    %10 = vector.load %arg15[%c0_6, %c0_7, %c0_8] : memref<8x8x64xbf16, #tpu.memory_space<vmem>>, vector<8x8x64xbf16>
    tpu.vector_store %arg15[%c0_6, %c0_7, %c0_8], %9 {strides = array<i32>} : memref<8x8x64xbf16, #tpu.memory_space<vmem>>, vector<8x8x64xbf16>,
    %11 = vector.extract_strided_slice %3 {offsets = [0, 64], sizes = [64, 64], strides = [1, 1]} : vector<64x128xf32> to vector<64x64xf32>
    %c0_9 = arith.constant 0 : index
    %c0_10 = arith.constant 0 : index
    %12 = vector.load %arg7[%c0_9, %c0_10] : memref<1x64xf32, #tpu.memory_space<vmem>>, vector<1x64xf32>
    %13 = vector.broadcast %12 : vector<1x64xf32> to vector<64x64xf32>
    %14 = arith.addf %11, %13 : vector<64x64xf32>
    %15 = vector.shape_cast %14 : vector<64x64xf32> to vector<8x8x64xf32>
    %16 = arith.truncf %15 : vector<8x8x64xf32> to vector<8x8x64xbf16>
    %c0_11 = arith.constant 0 : index
    %c0_12 = arith.constant 0 : index
    %c0_13 = arith.constant 0 : index
    %17 = vector.load %arg16[%c0_11, %c0_12, %c0_13] : memref<8x8x64xbf16, #tpu.memory_space<vmem>>, vector<8x8x64xbf16>
    tpu.vector_store %arg16[%c0_11, %c0_12, %c0_13], %16 {strides = array<i32>} : memref<8x8x64xbf16, #tpu.memory_space<vmem>>, vector<8x8x64xbf16>,
    %c0_14 = arith.constant 0 : index
    %c0_15 = arith.constant 0 : index
    %18 = vector.load %arg4[%c0_14, %c0_15] : memref<16x64xbf16, #tpu.memory_space<vmem>>, vector<16x64xbf16>
    %c0_16 = arith.constant 0 : index
    %c0_17 = arith.constant 0 : index
    %19 = vector.load %arg5[%c0_16, %c0_17] : memref<16x64xbf16, #tpu.memory_space<vmem>>, vector<16x64xbf16>
    %cst_18 = arith.constant 0.000000e+00 : f32
    %20 = vector.broadcast %cst_18 : f32 to vector<8x16xf32>
    %c0_19 = arith.constant 0 : index
    %c0_20 = arith.constant 0 : index
    %c0_21 = arith.constant 0 : index
    %21 = vector.load %arg15[%c0_19, %c0_20, %c0_21] : memref<8x8x64xbf16, #tpu.memory_space<vmem>>, vector<1x8x64xbf16>
    %22 = vector.shape_cast %21 : vector<1x8x64xbf16> to vector<8x64xbf16>
    %23 = arith.extf %22 : vector<8x64xbf16> to vector<8x64xf32>
    %24 = arith.truncf %20 : vector<8x16xf32> to vector<8x16xbf16>
    %cst_22 = arith.constant dense<0.000000e+00> : vector<8x64xf32>
    %25 = tpu.matmul %24, %18, %cst_22 {dimension_numbers = #tpu.dot_dimension_numbers<[1], [0], [0], [1], [0, 0, 1, 1], [], []>} : vector<8x16xbf16>, vector<16x64xbf16>, vector<8x64xf32> -> vector<8x64xf32>
    %26 = arith.addf %23, %25 : vector<8x64xf32>
    %27 = vector.extract_strided_slice %26 {offsets = [0, 0], sizes = [8, 16], strides = [1, 1]} : vector<8x64xf32> to vector<8x16xf32>
    %28 = arith.negf %27 : vector<8x16xf32>
    %29 = math.exp %28 : vector<8x16xf32>
    %cst_23 = arith.constant 1.000000e+00 : f32
    %30 = vector.broadcast %cst_23 : f32 to vector<8x16xf32>
    %31 = arith.addf %30, %29 : vector<8x16xf32>
    %32 = arith.divf %30, %31 : vector<8x16xf32>
    %33 = vector.extract_strided_slice %26 {offsets = [0, 16], sizes = [8, 16], strides = [1, 1]} : vector<8x64xf32> to vector<8x16xf32>
    %34 = arith.negf %33 : vector<8x16xf32>
    %35 = math.exp %34 : vector<8x16xf32>
    %cst_24 = arith.constant 1.000000e+00 : f32
    %36 = vector.broadcast %cst_24 : f32 to vector<8x16xf32>
    %37 = arith.addf %36, %35 : vector<8x16xf32>
    %38 = arith.divf %36, %37 : vector<8x16xf32>
    %39 = vector.extract_strided_slice %26 {offsets = [0, 32], sizes = [8, 16], strides = [1, 1]} : vector<8x64xf32> to vector<8x16xf32>
    %40 = math.tanh %39 : vector<8x16xf32>
    %41 = vector.extract_strided_slice %26 {offsets = [0, 48], sizes = [8, 16], strides = [1, 1]} : vector<8x64xf32> to vector<8x16xf32>
    %42 = arith.negf %41 : vector<8x16xf32>
    %43 = math.exp %42 : vector<8x16xf32>
    %cst_25 = arith.constant 1.000000e+00 : f32
    %44 = vector.broadcast %cst_25 : f32 to vector<8x16xf32>
    %45 = arith.addf %44, %43 : vector<8x16xf32>
    %46 = arith.divf %44, %45 : vector<8x16xf32>
    %47 = arith.mulf %38, %20 : vector<8x16xf32>
    %48 = arith.mulf %32, %40 : vector<8x16xf32>
    %49 = arith.addf %47, %48 : vector<8x16xf32>
    %50 = math.tanh %49 : vector<8x16xf32>
    %51 = arith.mulf %46, %50 : vector<8x16xf32>
    %52 = arith.truncf %51 : vector<8x16xf32> to vector<8x16xbf16>
    %c0_26 = arith.constant 0 : index
    %c0_27 = arith.constant 0 : index
    %c0_28 = arith.constant 0 : index
    %53 = vector.load %arg17[%c0_26, %c0_27, %c0_28] : memref<8x8x32xbf16, #tpu.memory_space<vmem>>, vector<1x8x16xbf16>
    %54 = vector.shape_cast %53 : vector<1x8x16xbf16> to vector<8x16xbf16>
    %55 = vector.shape_cast %52 : vector<8x16xbf16> to vector<1x8x16xbf16>
    tpu.vector_store %arg17[%c0_26, %c0_27, %c0_28], %55 {strides = array<i32>} : memref<8x8x32xbf16, #tpu.memory_space<vmem>>, vector<1x8x16xbf16>,
    %c7 = arith.constant 7 : index
    %c0_29 = arith.constant 0 : index
    %c0_30 = arith.constant 0 : index
    %56 = vector.load %arg16[%c7, %c0_29, %c0_30] : memref<8x8x64xbf16, #tpu.memory_space<vmem>>, vector<1x8x64xbf16>
    %57 = vector.shape_cast %56 : vector<1x8x64xbf16> to vector<8x64xbf16>
    %58 = arith.extf %57 : vector<8x64xbf16> to vector<8x64xf32>
    %59 = arith.truncf %20 : vector<8x16xf32> to vector<8x16xbf16>
    %cst_31 = arith.constant dense<0.000000e+00> : vector<8x64xf32>
    %60 = tpu.matmul %59, %19, %cst_31 {dimension_numbers = #tpu.dot_dimension_numbers<[1], [0], [0], [1], [0, 0, 1, 1], [], []>} : vector<8x16xbf16>, vector<16x64xbf16>, vector<8x64xf32> -> vector<8x64xf32>
    %61 = arith.addf %58, %60 : vector<8x64xf32>
    %62 = vector.extract_strided_slice %61 {offsets = [0, 0], sizes = [8, 16], strides = [1, 1]} : vector<8x64xf32> to vector<8x16xf32>
    %63 = arith.negf %62 : vector<8x16xf32>
    %64 = math.exp %63 : vector<8x16xf32>
    %cst_32 = arith.constant 1.000000e+00 : f32
    %65 = vector.broadcast %cst_32 : f32 to vector<8x16xf32>
    %66 = arith.addf %65, %64 : vector<8x16xf32>
    %67 = arith.divf %65, %66 : vector<8x16xf32>
    %68 = vector.extract_strided_slice %61 {offsets = [0, 16], sizes = [8, 16], strides = [1, 1]} : vector<8x64xf32> to vector<8x16xf32>
    %69 = arith.negf %68 : vector<8x16xf32>
    %70 = math.exp %69 : vector<8x16xf32>
    %cst_33 = arith.constant 1.000000e+00 : f32
    %71 = vector.broadcast %cst_33 : f32 to vector<8x16xf32>
    %72 = arith.addf %71, %70 : vector<8x16xf32>
    %73 = arith.divf %71, %72 : vector<8x16xf32>
    %74 = vector.extract_strided_slice %61 {offsets = [0, 32], sizes = [8, 16], strides = [1, 1]} : vector<8x64xf32> to vector<8x16xf32>
    %75 = math.tanh %74 : vector<8x16xf32>
    %76 = vector.extract_strided_slice %61 {offsets = [0, 48], sizes = [8, 16], strides = [1, 1]} : vector<8x64xf32> to vector<8x16xf32>
    %77 = arith.negf %76 : vector<8x16xf32>
    %78 = math.exp %77 : vector<8x16xf32>
    %cst_34 = arith.constant 1.000000e+00 : f32
    %79 = vector.broadcast %cst_34 : f32 to vector<8x16xf32>
    %80 = arith.addf %79, %78 : vector<8x16xf32>
    %81 = arith.divf %79, %80 : vector<8x16xf32>
    %82 = arith.mulf %73, %20 : vector<8x16xf32>
    %83 = arith.mulf %67, %75 : vector<8x16xf32>
    %84 = arith.addf %82, %83 : vector<8x16xf32>
    %85 = math.tanh %84 : vector<8x16xf32>
    %86 = arith.mulf %81, %85 : vector<8x16xf32>
    %c7_35 = arith.constant 7 : index
    %c0_36 = arith.constant 0 : index
    %c0_37 = arith.constant 0 : index
    %87 = vector.load %arg2[%c7_35, %c0_36, %c0_37] : memref<8x8x1xf32, #tpu.memory_space<vmem>>, vector<1x8x1xf32>
    %88 = vector.shape_cast %87 : vector<1x8x1xf32> to vector<8x1xf32>
    %cst_38 = arith.constant 0.000000e+00 : f32
    %89 = vector.broadcast %cst_38 : f32 to vector<8x1xf32>
    %90 = arith.cmpf ogt, %88, %89 : vector<8x1xf32>
    %cst_39 = arith.constant 0.000000e+00 : f32
    %91 = vector.shape_cast %90 : vector<8x1xi1> to vector<8x1xi1>
    %92 = vector.broadcast %91 : vector<8x1xi1> to vector<8x16xi1>
    %93 = vector.broadcast %cst_39 : f32 to vector<8x16xf32>
    %94 = arith.select %92, %86, %93 : vector<8x16xi1>, vector<8x16xf32>
    %cst_40 = arith.constant 0.000000e+00 : f32
    %95 = vector.shape_cast %90 : vector<8x1xi1> to vector<8x1xi1>
    %96 = vector.broadcast %95 : vector<8x1xi1> to vector<8x16xi1>
    %97 = vector.broadcast %cst_40 : f32 to vector<8x16xf32>
    %98 = arith.select %96, %84, %97 : vector<8x16xi1>, vector<8x16xf32>
    %99 = arith.truncf %94 : vector<8x16xf32> to vector<8x16xbf16>
    %c7_41 = arith.constant 7 : index
    %c0_42 = arith.constant 0 : index
    %c16 = arith.constant 16 : index
    %100 = vector.load %arg17[%c7_41, %c0_42, %c16] : memref<8x8x32xbf16, #tpu.memory_space<vmem>>, vector<1x8x16xbf16>
    %101 = vector.shape_cast %100 : vector<1x8x16xbf16> to vector<8x16xbf16>
    %102 = vector.shape_cast %99 : vector<8x16xbf16> to vector<1x8x16xbf16>
    tpu.vector_store %arg17[%c7_41, %c0_42, %c16], %102 {strides = array<i32>} : memref<8x8x32xbf16, #tpu.memory_space<vmem>>, vector<1x8x16xbf16>,
    %c1 = arith.constant 1 : index
    %c0_43 = arith.constant 0 : index
    %c0_44 = arith.constant 0 : index
    %103 = vector.load %arg15[%c1, %c0_43, %c0_44] : memref<8x8x64xbf16, #tpu.memory_space<vmem>>, vector<1x8x64xbf16>
    %104 = vector.shape_cast %103 : vector<1x8x64xbf16> to vector<8x64xbf16>
    %105 = arith.extf %104 : vector<8x64xbf16> to vector<8x64xf32>
    %106 = arith.truncf %51 : vector<8x16xf32> to vector<8x16xbf16>
    %cst_45 = arith.constant dense<0.000000e+00> : vector<8x64xf32>
    %107 = tpu.matmul %106, %18, %cst_45 {dimension_numbers = #tpu.dot_dimension_numbers<[1], [0], [0], [1], [0, 0, 1, 1], [], []>} : vector<8x16xbf16>, vector<16x64xbf16>, vector<8x64xf32> -> vector<8x64xf32>
    %108 = arith.addf %105, %107 : vector<8x64xf32>
    %109 = vector.extract_strided_slice %108 {offsets = [0, 0], sizes = [8, 16], strides = [1, 1]} : vector<8x64xf32> to vector<8x16xf32>
    %110 = arith.negf %109 : vector<8x16xf32>
    %111 = math.exp %110 : vector<8x16xf32>
    %cst_46 = arith.constant 1.000000e+00 : f32
    %112 = vector.broadcast %cst_46 : f32 to vector<8x16xf32>
    %113 = arith.addf %112, %111 : vector<8x16xf32>
    %114 = arith.divf %112, %113 : vector<8x16xf32>
    %115 = vector.extract_strided_slice %108 {offsets = [0, 16], sizes = [8, 16], strides = [1, 1]} : vector<8x64xf32> to vector<8x16xf32>
    %116 = arith.negf %115 : vector<8x16xf32>
    %117 = math.exp %116 : vector<8x16xf32>
    %cst_47 = arith.constant 1.000000e+00 : f32
    %118 = vector.broadcast %cst_47 : f32 to vector<8x16xf32>
    %119 = arith.addf %118, %117 : vector<8x16xf32>
    %120 = arith.divf %118, %119 : vector<8x16xf32>
    %121 = vector.extract_strided_slice %108 {offsets = [0, 32], sizes = [8, 16], strides = [1, 1]} : vector<8x64xf32> to vector<8x16xf32>
    %122 = math.tanh %121 : vector<8x16xf32>
    %123 = vector.extract_strided_slice %108 {offsets = [0, 48], sizes = [8, 16], strides = [1, 1]} : vector<8x64xf32> to vector<8x16xf32>
    %124 = arith.negf %123 : vector<8x16xf32>
    %125 = math.exp %124 : vector<8x16xf32>
    %cst_48 = arith.constant 1.000000e+00 : f32
    %126 = vector.broadcast %cst_48 : f32 to vector<8x16xf32>
    %127 = arith.addf %126, %125 : vector<8x16xf32>
    %128 = arith.divf %126, %127 : vector<8x16xf32>
    %129 = arith.mulf %120, %49 : vector<8x16xf32>
    %130 = arith.mulf %114, %122 : vector<8x16xf32>
    %131 = arith.addf %129, %130 : vector<8x16xf32>
    %132 = math.tanh %131 : vector<8x16xf32>
    %133 = arith.mulf %128, %132 : vector<8x16xf32>
    %134 = arith.truncf %133 : vector<8x16xf32> to vector<8x16xbf16>
    %c1_49 = arith.constant 1 : index
    %c0_50 = arith.constant 0 : index
    %c0_51 = arith.constant 0 : index
    %135 = vector.load %arg17[%c1_49, %c0_50, %c0_51] : memref<8x8x32xbf16, #tpu.memory_space<vmem>>, vector<1x8x16xbf16>
    %136 = vector.shape_cast %135 : vector<1x8x16xbf16> to vector<8x16xbf16>
    %137 = vector.shape_cast %134 : vector<8x16xbf16> to vector<1x8x16xbf16>
    tpu.vector_store %arg17[%c1_49, %c0_50, %c0_51], %137 {strides = array<i32>} : memref<8x8x32xbf16, #tpu.memory_space<vmem>>, vector<1x8x16xbf16>,
    %c6 = arith.constant 6 : index
    %c0_52 = arith.constant 0 : index
    %c0_53 = arith.constant 0 : index
    %138 = vector.load %arg16[%c6, %c0_52, %c0_53] : memref<8x8x64xbf16, #tpu.memory_space<vmem>>, vector<1x8x64xbf16>
    %139 = vector.shape_cast %138 : vector<1x8x64xbf16> to vector<8x64xbf16>
    %140 = arith.extf %139 : vector<8x64xbf16> to vector<8x64xf32>
    %141 = arith.truncf %94 : vector<8x16xf32> to vector<8x16xbf16>
    %cst_54 = arith.constant dense<0.000000e+00> : vector<8x64xf32>
    %142 = tpu.matmul %141, %19, %cst_54 {dimension_numbers = #tpu.dot_dimension_numbers<[1], [0], [0], [1], [0, 0, 1, 1], [], []>} : vector<8x16xbf16>, vector<16x64xbf16>, vector<8x64xf32> -> vector<8x64xf32>
    %143 = arith.addf %140, %142 : vector<8x64xf32>
    %144 = vector.extract_strided_slice %143 {offsets = [0, 0], sizes = [8, 16], strides = [1, 1]} : vector<8x64xf32> to vector<8x16xf32>
    %145 = arith.negf %144 : vector<8x16xf32>
    %146 = math.exp %145 : vector<8x16xf32>
    %cst_55 = arith.constant 1.000000e+00 : f32
    %147 = vector.broadcast %cst_55 : f32 to vector<8x16xf32>
    %148 = arith.addf %147, %146 : vector<8x16xf32>
    %149 = arith.divf %147, %148 : vector<8x16xf32>
    %150 = vector.extract_strided_slice %143 {offsets = [0, 16], sizes = [8, 16], strides = [1, 1]} : vector<8x64xf32> to vector<8x16xf32>
    %151 = arith.negf %150 : vector<8x16xf32>
    %152 = math.exp %151 : vector<8x16xf32>
    %cst_56 = arith.constant 1.000000e+00 : f32
    %153 = vector.broadcast %cst_56 : f32 to vector<8x16xf32>
    %154 = arith.addf %153, %152 : vector<8x16xf32>
    %155 = arith.divf %153, %154 : vector<8x16xf32>
    %156 = vector.extract_strided_slice %143 {offsets = [0, 32], sizes = [8, 16], strides = [1, 1]} : vector<8x64xf32> to vector<8x16xf32>
    %157 = math.tanh %156 : vector<8x16xf32>
    %158 = vector.extract_strided_slice %143 {offsets = [0, 48], sizes = [8, 16], strides = [1, 1]} : vector<8x64xf32> to vector<8x16xf32>
    %159 = arith.negf %158 : vector<8x16xf32>
    %160 = math.exp %159 : vector<8x16xf32>
    %cst_57 = arith.constant 1.000000e+00 : f32
    %161 = vector.broadcast %cst_57 : f32 to vector<8x16xf32>
    %162 = arith.addf %161, %160 : vector<8x16xf32>
    %163 = arith.divf %161, %162 : vector<8x16xf32>
    %164 = arith.mulf %155, %98 : vector<8x16xf32>
    %165 = arith.mulf %149, %157 : vector<8x16xf32>
    %166 = arith.addf %164, %165 : vector<8x16xf32>
    %167 = math.tanh %166 : vector<8x16xf32>
    %168 = arith.mulf %163, %167 : vector<8x16xf32>
    %c6_58 = arith.constant 6 : index
    %c0_59 = arith.constant 0 : index
    %c0_60 = arith.constant 0 : index
    %169 = vector.load %arg2[%c6_58, %c0_59, %c0_60] : memref<8x8x1xf32, #tpu.memory_space<vmem>>, vector<1x8x1xf32>
    %170 = vector.shape_cast %169 : vector<1x8x1xf32> to vector<8x1xf32>
    %cst_61 = arith.constant 0.000000e+00 : f32
    %171 = vector.broadcast %cst_61 : f32 to vector<8x1xf32>
    %172 = arith.cmpf ogt, %170, %171 : vector<8x1xf32>
    %cst_62 = arith.constant 0.000000e+00 : f32
    %173 = vector.shape_cast %172 : vector<8x1xi1> to vector<8x1xi1>
    %174 = vector.broadcast %173 : vector<8x1xi1> to vector<8x16xi1>
    %175 = vector.broadcast %cst_62 : f32 to vector<8x16xf32>
    %176 = arith.select %174, %168, %175 : vector<8x16xi1>, vector<8x16xf32>
    %cst_63 = arith.constant 0.000000e+00 : f32
    %177 = vector.shape_cast %172 : vector<8x1xi1> to vector<8x1xi1>
    %178 = vector.broadcast %177 : vector<8x1xi1> to vector<8x16xi1>
    %179 = vector.broadcast %cst_63 : f32 to vector<8x16xf32>
    %180 = arith.select %178, %166, %179 : vector<8x16xi1>, vector<8x16xf32>
    %181 = arith.truncf %176 : vector<8x16xf32> to vector<8x16xbf16>
    %c6_64 = arith.constant 6 : index
    %c0_65 = arith.constant 0 : index
    %c16_66 = arith.constant 16 : index
    %182 = vector.load %arg17[%c6_64, %c0_65, %c16_66] : memref<8x8x32xbf16, #tpu.memory_space<vmem>>, vector<1x8x16xbf16>
    %183 = vector.shape_cast %182 : vector<1x8x16xbf16> to vector<8x16xbf16>
    %184 = vector.shape_cast %181 : vector<8x16xbf16> to vector<1x8x16xbf16>
    tpu.vector_store %arg17[%c6_64, %c0_65, %c16_66], %184 {strides = array<i32>} : memref<8x8x32xbf16, #tpu.memory_space<vmem>>, vector<1x8x16xbf16>,
    %c2 = arith.constant 2 : index
    %c0_67 = arith.constant 0 : index
    %c0_68 = arith.constant 0 : index
    %185 = vector.load %arg15[%c2, %c0_67, %c0_68] : memref<8x8x64xbf16, #tpu.memory_space<vmem>>, vector<1x8x64xbf16>
    %186 = vector.shape_cast %185 : vector<1x8x64xbf16> to vector<8x64xbf16>
    %187 = arith.extf %186 : vector<8x64xbf16> to vector<8x64xf32>
    %188 = arith.truncf %133 : vector<8x16xf32> to vector<8x16xbf16>
    %cst_69 = arith.constant dense<0.000000e+00> : vector<8x64xf32>
    %189 = tpu.matmul %188, %18, %cst_69 {dimension_numbers = #tpu.dot_dimension_numbers<[1], [0], [0], [1], [0, 0, 1, 1], [], []>} : vector<8x16xbf16>, vector<16x64xbf16>, vector<8x64xf32> -> vector<8x64xf32>
    %190 = arith.addf %187, %189 : vector<8x64xf32>
    %191 = vector.extract_strided_slice %190 {offsets = [0, 0], sizes = [8, 16], strides = [1, 1]} : vector<8x64xf32> to vector<8x16xf32>
    %192 = arith.negf %191 : vector<8x16xf32>
    %193 = math.exp %192 : vector<8x16xf32>
    %cst_70 = arith.constant 1.000000e+00 : f32
    %194 = vector.broadcast %cst_70 : f32 to vector<8x16xf32>
    %195 = arith.addf %194, %193 : vector<8x16xf32>
    %196 = arith.divf %194, %195 : vector<8x16xf32>
    %197 = vector.extract_strided_slice %190 {offsets = [0, 16], sizes = [8, 16], strides = [1, 1]} : vector<8x64xf32> to vector<8x16xf32>
    %198 = arith.negf %197 : vector<8x16xf32>
    %199 = math.exp %198 : vector<8x16xf32>
    %cst_71 = arith.constant 1.000000e+00 : f32
    %200 = vector.broadcast %cst_71 : f32 to vector<8x16xf32>
    %201 = arith.addf %200, %199 : vector<8x16xf32>
    %202 = arith.divf %200, %201 : vector<8x16xf32>
    %203 = vector.extract_strided_slice %190 {offsets = [0, 32], sizes = [8, 16], strides = [1, 1]} : vector<8x64xf32> to vector<8x16xf32>
    %204 = math.tanh %203 : vector<8x16xf32>
    %205 = vector.extract_strided_slice %190 {offsets = [0, 48], sizes = [8, 16], strides = [1, 1]} : vector<8x64xf32> to vector<8x16xf32>
    %206 = arith.negf %205 : vector<8x16xf32>
    %207 = math.exp %206 : vector<8x16xf32>
    %cst_72 = arith.constant 1.000000e+00 : f32
    %208 = vector.broadcast %cst_72 : f32 to vector<8x16xf32>
    %209 = arith.addf %208, %207 : vector<8x16xf32>
    %210 = arith.divf %208, %209 : vector<8x16xf32>
    %211 = arith.mulf %202, %131 : vector<8x16xf32>
    %212 = arith.mulf %196, %204 : vector<8x16xf32>
    %213 = arith.addf %211, %212 : vector<8x16xf32>
    %214 = math.tanh %213 : vector<8x16xf32>
    %215 = arith.mulf %210, %214 : vector<8x16xf32>
    %216 = arith.truncf %215 : vector<8x16xf32> to vector<8x16xbf16>
    %c2_73 = arith.constant 2 : index
    %c0_74 = arith.constant 0 : index
    %c0_75 = arith.constant 0 : index
    %217 = vector.load %arg17[%c2_73, %c0_74, %c0_75] : memref<8x8x32xbf16, #tpu.memory_space<vmem>>, vector<1x8x16xbf16>
    %218 = vector.shape_cast %217 : vector<1x8x16xbf16> to vector<8x16xbf16>
    %219 = vector.shape_cast %216 : vector<8x16xbf16> to vector<1x8x16xbf16>
    tpu.vector_store %arg17[%c2_73, %c0_74, %c0_75], %219 {strides = array<i32>} : memref<8x8x32xbf16, #tpu.memory_space<vmem>>, vector<1x8x16xbf16>,
    %c5 = arith.constant 5 : index
    %c0_76 = arith.constant 0 : index
    %c0_77 = arith.constant 0 : index
    %220 = vector.load %arg16[%c5, %c0_76, %c0_77] : memref<8x8x64xbf16, #tpu.memory_space<vmem>>, vector<1x8x64xbf16>
    %221 = vector.shape_cast %220 : vector<1x8x64xbf16> to vector<8x64xbf16>
    %222 = arith.extf %221 : vector<8x64xbf16> to vector<8x64xf32>
    %223 = arith.truncf %176 : vector<8x16xf32> to vector<8x16xbf16>
    %cst_78 = arith.constant dense<0.000000e+00> : vector<8x64xf32>
    %224 = tpu.matmul %223, %19, %cst_78 {dimension_numbers = #tpu.dot_dimension_numbers<[1], [0], [0], [1], [0, 0, 1, 1], [], []>} : vector<8x16xbf16>, vector<16x64xbf16>, vector<8x64xf32> -> vector<8x64xf32>
    %225 = arith.addf %222, %224 : vector<8x64xf32>
    %226 = vector.extract_strided_slice %225 {offsets = [0, 0], sizes = [8, 16], strides = [1, 1]} : vector<8x64xf32> to vector<8x16xf32>
    %227 = arith.negf %226 : vector<8x16xf32>
    %228 = math.exp %227 : vector<8x16xf32>
    %cst_79 = arith.constant 1.000000e+00 : f32
    %229 = vector.broadcast %cst_79 : f32 to vector<8x16xf32>
    %230 = arith.addf %229, %228 : vector<8x16xf32>
    %231 = arith.divf %229, %230 : vector<8x16xf32>
    %232 = vector.extract_strided_slice %225 {offsets = [0, 16], sizes = [8, 16], strides = [1, 1]} : vector<8x64xf32> to vector<8x16xf32>
    %233 = arith.negf %232 : vector<8x16xf32>
    %234 = math.exp %233 : vector<8x16xf32>
    %cst_80 = arith.constant 1.000000e+00 : f32
    %235 = vector.broadcast %cst_80 : f32 to vector<8x16xf32>
    %236 = arith.addf %235, %234 : vector<8x16xf32>
    %237 = arith.divf %235, %236 : vector<8x16xf32>
    %238 = vector.extract_strided_slice %225 {offsets = [0, 32], sizes = [8, 16], strides = [1, 1]} : vector<8x64xf32> to vector<8x16xf32>
    %239 = math.tanh %238 : vector<8x16xf32>
    %240 = vector.extract_strided_slice %225 {offsets = [0, 48], sizes = [8, 16], strides = [1, 1]} : vector<8x64xf32> to vector<8x16xf32>
    %241 = arith.negf %240 : vector<8x16xf32>
    %242 = math.exp %241 : vector<8x16xf32>
    %cst_81 = arith.constant 1.000000e+00 : f32
    %243 = vector.broadcast %cst_81 : f32 to vector<8x16xf32>
    %244 = arith.addf %243, %242 : vector<8x16xf32>
    %245 = arith.divf %243, %244 : vector<8x16xf32>
    %246 = arith.mulf %237, %180 : vector<8x16xf32>
    %247 = arith.mulf %231, %239 : vector<8x16xf32>
    %248 = arith.addf %246, %247 : vector<8x16xf32>
    %249 = math.tanh %248 : vector<8x16xf32>
    %250 = arith.mulf %245, %249 : vector<8x16xf32>
    %c5_82 = arith.constant 5 : index
    %c0_83 = arith.constant 0 : index
    %c0_84 = arith.constant 0 : index
    %251 = vector.load %arg2[%c5_82, %c0_83, %c0_84] : memref<8x8x1xf32, #tpu.memory_space<vmem>>, vector<1x8x1xf32>
    %252 = vector.shape_cast %251 : vector<1x8x1xf32> to vector<8x1xf32>
    %cst_85 = arith.constant 0.000000e+00 : f32
    %253 = vector.broadcast %cst_85 : f32 to vector<8x1xf32>
    %254 = arith.cmpf ogt, %252, %253 : vector<8x1xf32>
    %cst_86 = arith.constant 0.000000e+00 : f32
    %255 = vector.shape_cast %254 : vector<8x1xi1> to vector<8x1xi1>
    %256 = vector.broadcast %255 : vector<8x1xi1> to vector<8x16xi1>
    %257 = vector.broadcast %cst_86 : f32 to vector<8x16xf32>
    %258 = arith.select %256, %250, %257 : vector<8x16xi1>, vector<8x16xf32>
    %cst_87 = arith.constant 0.000000e+00 : f32
    %259 = vector.shape_cast %254 : vector<8x1xi1> to vector<8x1xi1>
    %260 = vector.broadcast %259 : vector<8x1xi1> to vector<8x16xi1>
    %261 = vector.broadcast %cst_87 : f32 to vector<8x16xf32>
    %262 = arith.select %260, %248, %261 : vector<8x16xi1>, vector<8x16xf32>
    %263 = arith.truncf %258 : vector<8x16xf32> to vector<8x16xbf16>
    %c5_88 = arith.constant 5 : index
    %c0_89 = arith.constant 0 : index
    %c16_90 = arith.constant 16 : index
    %264 = vector.load %arg17[%c5_88, %c0_89, %c16_90] : memref<8x8x32xbf16, #tpu.memory_space<vmem>>, vector<1x8x16xbf16>
    %265 = vector.shape_cast %264 : vector<1x8x16xbf16> to vector<8x16xbf16>
    %266 = vector.shape_cast %263 : vector<8x16xbf16> to vector<1x8x16xbf16>
    tpu.vector_store %arg17[%c5_88, %c0_89, %c16_90], %266 {strides = array<i32>} : memref<8x8x32xbf16, #tpu.memory_space<vmem>>, vector<1x8x16xbf16>,
    %c3 = arith.constant 3 : index
    %c0_91 = arith.constant 0 : index
    %c0_92 = arith.constant 0 : index
    %267 = vector.load %arg15[%c3, %c0_91, %c0_92] : memref<8x8x64xbf16, #tpu.memory_space<vmem>>, vector<1x8x64xbf16>
    %268 = vector.shape_cast %267 : vector<1x8x64xbf16> to vector<8x64xbf16>
    %269 = arith.extf %268 : vector<8x64xbf16> to vector<8x64xf32>
    %270 = arith.truncf %215 : vector<8x16xf32> to vector<8x16xbf16>
    %cst_93 = arith.constant dense<0.000000e+00> : vector<8x64xf32>
    %271 = tpu.matmul %270, %18, %cst_93 {dimension_numbers = #tpu.dot_dimension_numbers<[1], [0], [0], [1], [0, 0, 1, 1], [], []>} : vector<8x16xbf16>, vector<16x64xbf16>, vector<8x64xf32> -> vector<8x64xf32>
    %272 = arith.addf %269, %271 : vector<8x64xf32>
    %273 = vector.extract_strided_slice %272 {offsets = [0, 0], sizes = [8, 16], strides = [1, 1]} : vector<8x64xf32> to vector<8x16xf32>
    %274 = arith.negf %273 : vector<8x16xf32>
    %275 = math.exp %274 : vector<8x16xf32>
    %cst_94 = arith.constant 1.000000e+00 : f32
    %276 = vector.broadcast %cst_94 : f32 to vector<8x16xf32>
    %277 = arith.addf %276, %275 : vector<8x16xf32>
    %278 = arith.divf %276, %277 : vector<8x16xf32>
    %279 = vector.extract_strided_slice %272 {offsets = [0, 16], sizes = [8, 16], strides = [1, 1]} : vector<8x64xf32> to vector<8x16xf32>
    %280 = arith.negf %279 : vector<8x16xf32>
    %281 = math.exp %280 : vector<8x16xf32>
    %cst_95 = arith.constant 1.000000e+00 : f32
    %282 = vector.broadcast %cst_95 : f32 to vector<8x16xf32>
    %283 = arith.addf %282, %281 : vector<8x16xf32>
    %284 = arith.divf %282, %283 : vector<8x16xf32>
    %285 = vector.extract_strided_slice %272 {offsets = [0, 32], sizes = [8, 16], strides = [1, 1]} : vector<8x64xf32> to vector<8x16xf32>
    %286 = math.tanh %285 : vector<8x16xf32>
    %287 = vector.extract_strided_slice %272 {offsets = [0, 48], sizes = [8, 16], strides = [1, 1]} : vector<8x64xf32> to vector<8x16xf32>
    %288 = arith.negf %287 : vector<8x16xf32>
    %289 = math.exp %288 : vector<8x16xf32>
    %cst_96 = arith.constant 1.000000e+00 : f32
    %290 = vector.broadcast %cst_96 : f32 to vector<8x16xf32>
    %291 = arith.addf %290, %289 : vector<8x16xf32>
    %292 = arith.divf %290, %291 : vector<8x16xf32>
    %293 = arith.mulf %284, %213 : vector<8x16xf32>
    %294 = arith.mulf %278, %286 : vector<8x16xf32>
    %295 = arith.addf %293, %294 : vector<8x16xf32>
    %296 = math.tanh %295 : vector<8x16xf32>
    %297 = arith.mulf %292, %296 : vector<8x16xf32>
    %298 = arith.truncf %297 : vector<8x16xf32> to vector<8x16xbf16>
    %c3_97 = arith.constant 3 : index
    %c0_98 = arith.constant 0 : index
    %c0_99 = arith.constant 0 : index
    %299 = vector.load %arg17[%c3_97, %c0_98, %c0_99] : memref<8x8x32xbf16, #tpu.memory_space<vmem>>, vector<1x8x16xbf16>
    %300 = vector.shape_cast %299 : vector<1x8x16xbf16> to vector<8x16xbf16>
    %301 = vector.shape_cast %298 : vector<8x16xbf16> to vector<1x8x16xbf16>
    tpu.vector_store %arg17[%c3_97, %c0_98, %c0_99], %301 {strides = array<i32>} : memref<8x8x32xbf16, #tpu.memory_space<vmem>>, vector<1x8x16xbf16>,
    %c4 = arith.constant 4 : index
    %c0_100 = arith.constant 0 : index
    %c0_101 = arith.constant 0 : index
    %302 = vector.load %arg16[%c4, %c0_100, %c0_101] : memref<8x8x64xbf16, #tpu.memory_space<vmem>>, vector<1x8x64xbf16>
    %303 = vector.shape_cast %302 : vector<1x8x64xbf16> to vector<8x64xbf16>
    %304 = arith.extf %303 : vector<8x64xbf16> to vector<8x64xf32>
    %305 = arith.truncf %258 : vector<8x16xf32> to vector<8x16xbf16>
    %cst_102 = arith.constant dense<0.000000e+00> : vector<8x64xf32>
    %306 = tpu.matmul %305, %19, %cst_102 {dimension_numbers = #tpu.dot_dimension_numbers<[1], [0], [0], [1], [0, 0, 1, 1], [], []>} : vector<8x16xbf16>, vector<16x64xbf16>, vector<8x64xf32> -> vector<8x64xf32>
    %307 = arith.addf %304, %306 : vector<8x64xf32>
    %308 = vector.extract_strided_slice %307 {offsets = [0, 0], sizes = [8, 16], strides = [1, 1]} : vector<8x64xf32> to vector<8x16xf32>
    %309 = arith.negf %308 : vector<8x16xf32>
    %310 = math.exp %309 : vector<8x16xf32>
    %cst_103 = arith.constant 1.000000e+00 : f32
    %311 = vector.broadcast %cst_103 : f32 to vector<8x16xf32>
    %312 = arith.addf %311, %310 : vector<8x16xf32>
    %313 = arith.divf %311, %312 : vector<8x16xf32>
    %314 = vector.extract_strided_slice %307 {offsets = [0, 16], sizes = [8, 16], strides = [1, 1]} : vector<8x64xf32> to vector<8x16xf32>
    %315 = arith.negf %314 : vector<8x16xf32>
    %316 = math.exp %315 : vector<8x16xf32>
    %cst_104 = arith.constant 1.000000e+00 : f32
    %317 = vector.broadcast %cst_104 : f32 to vector<8x16xf32>
    %318 = arith.addf %317, %316 : vector<8x16xf32>
    %319 = arith.divf %317, %318 : vector<8x16xf32>
    %320 = vector.extract_strided_slice %307 {offsets = [0, 32], sizes = [8, 16], strides = [1, 1]} : vector<8x64xf32> to vector<8x16xf32>
    %321 = math.tanh %320 : vector<8x16xf32>
    %322 = vector.extract_strided_slice %307 {offsets = [0, 48], sizes = [8, 16], strides = [1, 1]} : vector<8x64xf32> to vector<8x16xf32>
    %323 = arith.negf %322 : vector<8x16xf32>
    %324 = math.exp %323 : vector<8x16xf32>
    %cst_105 = arith.constant 1.000000e+00 : f32
    %325 = vector.broadcast %cst_105 : f32 to vector<8x16xf32>
    %326 = arith.addf %325, %324 : vector<8x16xf32>
    %327 = arith.divf %325, %326 : vector<8x16xf32>
    %328 = arith.mulf %319, %262 : vector<8x16xf32>
    %329 = arith.mulf %313, %321 : vector<8x16xf32>
    %330 = arith.addf %328, %329 : vector<8x16xf32>
    %331 = math.tanh %330 : vector<8x16xf32>
    %332 = arith.mulf %327, %331 : vector<8x16xf32>
    %c4_106 = arith.constant 4 : index
    %c0_107 = arith.constant 0 : index
    %c0_108 = arith.constant 0 : index
    %333 = vector.load %arg2[%c4_106, %c0_107, %c0_108] : memref<8x8x1xf32, #tpu.memory_space<vmem>>, vector<1x8x1xf32>
    %334 = vector.shape_cast %333 : vector<1x8x1xf32> to vector<8x1xf32>
    %cst_109 = arith.constant 0.000000e+00 : f32
    %335 = vector.broadcast %cst_109 : f32 to vector<8x1xf32>
    %336 = arith.cmpf ogt, %334, %335 : vector<8x1xf32>
    %cst_110 = arith.constant 0.000000e+00 : f32
    %337 = vector.shape_cast %336 : vector<8x1xi1> to vector<8x1xi1>
    %338 = vector.broadcast %337 : vector<8x1xi1> to vector<8x16xi1>
    %339 = vector.broadcast %cst_110 : f32 to vector<8x16xf32>
    %340 = arith.select %338, %332, %339 : vector<8x16xi1>, vector<8x16xf32>
    %cst_111 = arith.constant 0.000000e+00 : f32
    %341 = vector.shape_cast %336 : vector<8x1xi1> to vector<8x1xi1>
    %342 = vector.broadcast %341 : vector<8x1xi1> to vector<8x16xi1>
    %343 = vector.broadcast %cst_111 : f32 to vector<8x16xf32>
    %344 = arith.select %342, %330, %343 : vector<8x16xi1>, vector<8x16xf32>
    %345 = arith.truncf %340 : vector<8x16xf32> to vector<8x16xbf16>
    %c4_112 = arith.constant 4 : index
    %c0_113 = arith.constant 0 : index
    %c16_114 = arith.constant 16 : index
    %346 = vector.load %arg17[%c4_112, %c0_113, %c16_114] : memref<8x8x32xbf16, #tpu.memory_space<vmem>>, vector<1x8x16xbf16>
    %347 = vector.shape_cast %346 : vector<1x8x16xbf16> to vector<8x16xbf16>
    %348 = vector.shape_cast %345 : vector<8x16xbf16> to vector<1x8x16xbf16>
    tpu.vector_store %arg17[%c4_112, %c0_113, %c16_114], %348 {strides = array<i32>} : memref<8x8x32xbf16, #tpu.memory_space<vmem>>, vector<1x8x16xbf16>,
    %c4_115 = arith.constant 4 : index
    %c0_116 = arith.constant 0 : index
    %c0_117 = arith.constant 0 : index
    %349 = vector.load %arg15[%c4_115, %c0_116, %c0_117] : memref<8x8x64xbf16, #tpu.memory_space<vmem>>, vector<1x8x64xbf16>
    %350 = vector.shape_cast %349 : vector<1x8x64xbf16> to vector<8x64xbf16>
    %351 = arith.extf %350 : vector<8x64xbf16> to vector<8x64xf32>
    %352 = arith.truncf %297 : vector<8x16xf32> to vector<8x16xbf16>
    %cst_118 = arith.constant dense<0.000000e+00> : vector<8x64xf32>
    %353 = tpu.matmul %352, %18, %cst_118 {dimension_numbers = #tpu.dot_dimension_numbers<[1], [0], [0], [1], [0, 0, 1, 1], [], []>} : vector<8x16xbf16>, vector<16x64xbf16>, vector<8x64xf32> -> vector<8x64xf32>
    %354 = arith.addf %351, %353 : vector<8x64xf32>
    %355 = vector.extract_strided_slice %354 {offsets = [0, 0], sizes = [8, 16], strides = [1, 1]} : vector<8x64xf32> to vector<8x16xf32>
    %356 = arith.negf %355 : vector<8x16xf32>
    %357 = math.exp %356 : vector<8x16xf32>
    %cst_119 = arith.constant 1.000000e+00 : f32
    %358 = vector.broadcast %cst_119 : f32 to vector<8x16xf32>
    %359 = arith.addf %358, %357 : vector<8x16xf32>
    %360 = arith.divf %358, %359 : vector<8x16xf32>
    %361 = vector.extract_strided_slice %354 {offsets = [0, 16], sizes = [8, 16], strides = [1, 1]} : vector<8x64xf32> to vector<8x16xf32>
    %362 = arith.negf %361 : vector<8x16xf32>
    %363 = math.exp %362 : vector<8x16xf32>
    %cst_120 = arith.constant 1.000000e+00 : f32
    %364 = vector.broadcast %cst_120 : f32 to vector<8x16xf32>
    %365 = arith.addf %364, %363 : vector<8x16xf32>
    %366 = arith.divf %364, %365 : vector<8x16xf32>
    %367 = vector.extract_strided_slice %354 {offsets = [0, 32], sizes = [8, 16], strides = [1, 1]} : vector<8x64xf32> to vector<8x16xf32>
    %368 = math.tanh %367 : vector<8x16xf32>
    %369 = vector.extract_strided_slice %354 {offsets = [0, 48], sizes = [8, 16], strides = [1, 1]} : vector<8x64xf32> to vector<8x16xf32>
    %370 = arith.negf %369 : vector<8x16xf32>
    %371 = math.exp %370 : vector<8x16xf32>
    %cst_121 = arith.constant 1.000000e+00 : f32
    %372 = vector.broadcast %cst_121 : f32 to vector<8x16xf32>
    %373 = arith.addf %372, %371 : vector<8x16xf32>
    %374 = arith.divf %372, %373 : vector<8x16xf32>
    %375 = arith.mulf %366, %295 : vector<8x16xf32>
    %376 = arith.mulf %360, %368 : vector<8x16xf32>
    %377 = arith.addf %375, %376 : vector<8x16xf32>
    %378 = math.tanh %377 : vector<8x16xf32>
    %379 = arith.mulf %374, %378 : vector<8x16xf32>
    %380 = arith.truncf %379 : vector<8x16xf32> to vector<8x16xbf16>
    %c4_122 = arith.constant 4 : index
    %c0_123 = arith.constant 0 : index
    %c0_124 = arith.constant 0 : index
    %381 = vector.load %arg17[%c4_122, %c0_123, %c0_124] : memref<8x8x32xbf16, #tpu.memory_space<vmem>>, vector<1x8x16xbf16>
    %382 = vector.shape_cast %381 : vector<1x8x16xbf16> to vector<8x16xbf16>
    %383 = vector.shape_cast %380 : vector<8x16xbf16> to vector<1x8x16xbf16>
    tpu.vector_store %arg17[%c4_122, %c0_123, %c0_124], %383 {strides = array<i32>} : memref<8x8x32xbf16, #tpu.memory_space<vmem>>, vector<1x8x16xbf16>,
    %c3_125 = arith.constant 3 : index
    %c0_126 = arith.constant 0 : index
    %c0_127 = arith.constant 0 : index
    %384 = vector.load %arg16[%c3_125, %c0_126, %c0_127] : memref<8x8x64xbf16, #tpu.memory_space<vmem>>, vector<1x8x64xbf16>
    %385 = vector.shape_cast %384 : vector<1x8x64xbf16> to vector<8x64xbf16>
    %386 = arith.extf %385 : vector<8x64xbf16> to vector<8x64xf32>
    %387 = arith.truncf %340 : vector<8x16xf32> to vector<8x16xbf16>
    %cst_128 = arith.constant dense<0.000000e+00> : vector<8x64xf32>
    %388 = tpu.matmul %387, %19, %cst_128 {dimension_numbers = #tpu.dot_dimension_numbers<[1], [0], [0], [1], [0, 0, 1, 1], [], []>} : vector<8x16xbf16>, vector<16x64xbf16>, vector<8x64xf32> -> vector<8x64xf32>
    %389 = arith.addf %386, %388 : vector<8x64xf32>
    %390 = vector.extract_strided_slice %389 {offsets = [0, 0], sizes = [8, 16], strides = [1, 1]} : vector<8x64xf32> to vector<8x16xf32>
    %391 = arith.negf %390 : vector<8x16xf32>
    %392 = math.exp %391 : vector<8x16xf32>
    %cst_129 = arith.constant 1.000000e+00 : f32
    %393 = vector.broadcast %cst_129 : f32 to vector<8x16xf32>
    %394 = arith.addf %393, %392 : vector<8x16xf32>
    %395 = arith.divf %393, %394 : vector<8x16xf32>
    %396 = vector.extract_strided_slice %389 {offsets = [0, 16], sizes = [8, 16], strides = [1, 1]} : vector<8x64xf32> to vector<8x16xf32>
    %397 = arith.negf %396 : vector<8x16xf32>
    %398 = math.exp %397 : vector<8x16xf32>
    %cst_130 = arith.constant 1.000000e+00 : f32
    %399 = vector.broadcast %cst_130 : f32 to vector<8x16xf32>
    %400 = arith.addf %399, %398 : vector<8x16xf32>
    %401 = arith.divf %399, %400 : vector<8x16xf32>
    %402 = vector.extract_strided_slice %389 {offsets = [0, 32], sizes = [8, 16], strides = [1, 1]} : vector<8x64xf32> to vector<8x16xf32>
    %403 = math.tanh %402 : vector<8x16xf32>
    %404 = vector.extract_strided_slice %389 {offsets = [0, 48], sizes = [8, 16], strides = [1, 1]} : vector<8x64xf32> to vector<8x16xf32>
    %405 = arith.negf %404 : vector<8x16xf32>
    %406 = math.exp %405 : vector<8x16xf32>
    %cst_131 = arith.constant 1.000000e+00 : f32
    %407 = vector.broadcast %cst_131 : f32 to vector<8x16xf32>
    %408 = arith.addf %407, %406 : vector<8x16xf32>
    %409 = arith.divf %407, %408 : vector<8x16xf32>
    %410 = arith.mulf %401, %344 : vector<8x16xf32>
    %411 = arith.mulf %395, %403 : vector<8x16xf32>
    %412 = arith.addf %410, %411 : vector<8x16xf32>
    %413 = math.tanh %412 : vector<8x16xf32>
    %414 = arith.mulf %409, %413 : vector<8x16xf32>
    %c3_132 = arith.constant 3 : index
    %c0_133 = arith.constant 0 : index
    %c0_134 = arith.constant 0 : index
    %415 = vector.load %arg2[%c3_132, %c0_133, %c0_134] : memref<8x8x1xf32, #tpu.memory_space<vmem>>, vector<1x8x1xf32>
    %416 = vector.shape_cast %415 : vector<1x8x1xf32> to vector<8x1xf32>
    %cst_135 = arith.constant 0.000000e+00 : f32
    %417 = vector.broadcast %cst_135 : f32 to vector<8x1xf32>
    %418 = arith.cmpf ogt, %416, %417 : vector<8x1xf32>
    %cst_136 = arith.constant 0.000000e+00 : f32
    %419 = vector.shape_cast %418 : vector<8x1xi1> to vector<8x1xi1>
    %420 = vector.broadcast %419 : vector<8x1xi1> to vector<8x16xi1>
    %421 = vector.broadcast %cst_136 : f32 to vector<8x16xf32>
    %422 = arith.select %420, %414, %421 : vector<8x16xi1>, vector<8x16xf32>
    %cst_137 = arith.constant 0.000000e+00 : f32
    %423 = vector.shape_cast %418 : vector<8x1xi1> to vector<8x1xi1>
    %424 = vector.broadcast %423 : vector<8x1xi1> to vector<8x16xi1>
    %425 = vector.broadcast %cst_137 : f32 to vector<8x16xf32>
    %426 = arith.select %424, %412, %425 : vector<8x16xi1>, vector<8x16xf32>
    %427 = arith.truncf %422 : vector<8x16xf32> to vector<8x16xbf16>
    %c3_138 = arith.constant 3 : index
    %c0_139 = arith.constant 0 : index
    %c16_140 = arith.constant 16 : index
    %428 = vector.load %arg17[%c3_138, %c0_139, %c16_140] : memref<8x8x32xbf16, #tpu.memory_space<vmem>>, vector<1x8x16xbf16>
    %429 = vector.shape_cast %428 : vector<1x8x16xbf16> to vector<8x16xbf16>
    %430 = vector.shape_cast %427 : vector<8x16xbf16> to vector<1x8x16xbf16>
    tpu.vector_store %arg17[%c3_138, %c0_139, %c16_140], %430 {strides = array<i32>} : memref<8x8x32xbf16, #tpu.memory_space<vmem>>, vector<1x8x16xbf16>,
    %c5_141 = arith.constant 5 : index
    %c0_142 = arith.constant 0 : index
    %c0_143 = arith.constant 0 : index
    %431 = vector.load %arg15[%c5_141, %c0_142, %c0_143] : memref<8x8x64xbf16, #tpu.memory_space<vmem>>, vector<1x8x64xbf16>
    %432 = vector.shape_cast %431 : vector<1x8x64xbf16> to vector<8x64xbf16>
    %433 = arith.extf %432 : vector<8x64xbf16> to vector<8x64xf32>
    %434 = arith.truncf %379 : vector<8x16xf32> to vector<8x16xbf16>
    %cst_144 = arith.constant dense<0.000000e+00> : vector<8x64xf32>
    %435 = tpu.matmul %434, %18, %cst_144 {dimension_numbers = #tpu.dot_dimension_numbers<[1], [0], [0], [1], [0, 0, 1, 1], [], []>} : vector<8x16xbf16>, vector<16x64xbf16>, vector<8x64xf32> -> vector<8x64xf32>
    %436 = arith.addf %433, %435 : vector<8x64xf32>
    %437 = vector.extract_strided_slice %436 {offsets = [0, 0], sizes = [8, 16], strides = [1, 1]} : vector<8x64xf32> to vector<8x16xf32>
    %438 = arith.negf %437 : vector<8x16xf32>
    %439 = math.exp %438 : vector<8x16xf32>
    %cst_145 = arith.constant 1.000000e+00 : f32
    %440 = vector.broadcast %cst_145 : f32 to vector<8x16xf32>
    %441 = arith.addf %440, %439 : vector<8x16xf32>
    %442 = arith.divf %440, %441 : vector<8x16xf32>
    %443 = vector.extract_strided_slice %436 {offsets = [0, 16], sizes = [8, 16], strides = [1, 1]} : vector<8x64xf32> to vector<8x16xf32>
    %444 = arith.negf %443 : vector<8x16xf32>
    %445 = math.exp %444 : vector<8x16xf32>
    %cst_146 = arith.constant 1.000000e+00 : f32
    %446 = vector.broadcast %cst_146 : f32 to vector<8x16xf32>
    %447 = arith.addf %446, %445 : vector<8x16xf32>
    %448 = arith.divf %446, %447 : vector<8x16xf32>
    %449 = vector.extract_strided_slice %436 {offsets = [0, 32], sizes = [8, 16], strides = [1, 1]} : vector<8x64xf32> to vector<8x16xf32>
    %450 = math.tanh %449 : vector<8x16xf32>
    %451 = vector.extract_strided_slice %436 {offsets = [0, 48], sizes = [8, 16], strides = [1, 1]} : vector<8x64xf32> to vector<8x16xf32>
    %452 = arith.negf %451 : vector<8x16xf32>
    %453 = math.exp %452 : vector<8x16xf32>
    %cst_147 = arith.constant 1.000000e+00 : f32
    %454 = vector.broadcast %cst_147 : f32 to vector<8x16xf32>
    %455 = arith.addf %454, %453 : vector<8x16xf32>
    %456 = arith.divf %454, %455 : vector<8x16xf32>
    %457 = arith.mulf %448, %377 : vector<8x16xf32>
    %458 = arith.mulf %442, %450 : vector<8x16xf32>
    %459 = arith.addf %457, %458 : vector<8x16xf32>
    %460 = math.tanh %459 : vector<8x16xf32>
    %461 = arith.mulf %456, %460 : vector<8x16xf32>
    %462 = arith.truncf %461 : vector<8x16xf32> to vector<8x16xbf16>
    %c5_148 = arith.constant 5 : index
    %c0_149 = arith.constant 0 : index
    %c0_150 = arith.constant 0 : index
    %463 = vector.load %arg17[%c5_148, %c0_149, %c0_150] : memref<8x8x32xbf16, #tpu.memory_space<vmem>>, vector<1x8x16xbf16>
    %464 = vector.shape_cast %463 : vector<1x8x16xbf16> to vector<8x16xbf16>
    %465 = vector.shape_cast %462 : vector<8x16xbf16> to vector<1x8x16xbf16>
    tpu.vector_store %arg17[%c5_148, %c0_149, %c0_150], %465 {strides = array<i32>} : memref<8x8x32xbf16, #tpu.memory_space<vmem>>, vector<1x8x16xbf16>,
    %c2_151 = arith.constant 2 : index
    %c0_152 = arith.constant 0 : index
    %c0_153 = arith.constant 0 : index
    %466 = vector.load %arg16[%c2_151, %c0_152, %c0_153] : memref<8x8x64xbf16, #tpu.memory_space<vmem>>, vector<1x8x64xbf16>
    %467 = vector.shape_cast %466 : vector<1x8x64xbf16> to vector<8x64xbf16>
    %468 = arith.extf %467 : vector<8x64xbf16> to vector<8x64xf32>
    %469 = arith.truncf %422 : vector<8x16xf32> to vector<8x16xbf16>
    %cst_154 = arith.constant dense<0.000000e+00> : vector<8x64xf32>
    %470 = tpu.matmul %469, %19, %cst_154 {dimension_numbers = #tpu.dot_dimension_numbers<[1], [0], [0], [1], [0, 0, 1, 1], [], []>} : vector<8x16xbf16>, vector<16x64xbf16>, vector<8x64xf32> -> vector<8x64xf32>
    %471 = arith.addf %468, %470 : vector<8x64xf32>
    %472 = vector.extract_strided_slice %471 {offsets = [0, 0], sizes = [8, 16], strides = [1, 1]} : vector<8x64xf32> to vector<8x16xf32>
    %473 = arith.negf %472 : vector<8x16xf32>
    %474 = math.exp %473 : vector<8x16xf32>
    %cst_155 = arith.constant 1.000000e+00 : f32
    %475 = vector.broadcast %cst_155 : f32 to vector<8x16xf32>
    %476 = arith.addf %475, %474 : vector<8x16xf32>
    %477 = arith.divf %475, %476 : vector<8x16xf32>
    %478 = vector.extract_strided_slice %471 {offsets = [0, 16], sizes = [8, 16], strides = [1, 1]} : vector<8x64xf32> to vector<8x16xf32>
    %479 = arith.negf %478 : vector<8x16xf32>
    %480 = math.exp %479 : vector<8x16xf32>
    %cst_156 = arith.constant 1.000000e+00 : f32
    %481 = vector.broadcast %cst_156 : f32 to vector<8x16xf32>
    %482 = arith.addf %481, %480 : vector<8x16xf32>
    %483 = arith.divf %481, %482 : vector<8x16xf32>
    %484 = vector.extract_strided_slice %471 {offsets = [0, 32], sizes = [8, 16], strides = [1, 1]} : vector<8x64xf32> to vector<8x16xf32>
    %485 = math.tanh %484 : vector<8x16xf32>
    %486 = vector.extract_strided_slice %471 {offsets = [0, 48], sizes = [8, 16], strides = [1, 1]} : vector<8x64xf32> to vector<8x16xf32>
    %487 = arith.negf %486 : vector<8x16xf32>
    %488 = math.exp %487 : vector<8x16xf32>
    %cst_157 = arith.constant 1.000000e+00 : f32
    %489 = vector.broadcast %cst_157 : f32 to vector<8x16xf32>
    %490 = arith.addf %489, %488 : vector<8x16xf32>
    %491 = arith.divf %489, %490 : vector<8x16xf32>
    %492 = arith.mulf %483, %426 : vector<8x16xf32>
    %493 = arith.mulf %477, %485 : vector<8x16xf32>
    %494 = arith.addf %492, %493 : vector<8x16xf32>
    %495 = math.tanh %494 : vector<8x16xf32>
    %496 = arith.mulf %491, %495 : vector<8x16xf32>
    %c2_158 = arith.constant 2 : index
    %c0_159 = arith.constant 0 : index
    %c0_160 = arith.constant 0 : index
    %497 = vector.load %arg2[%c2_158, %c0_159, %c0_160] : memref<8x8x1xf32, #tpu.memory_space<vmem>>, vector<1x8x1xf32>
    %498 = vector.shape_cast %497 : vector<1x8x1xf32> to vector<8x1xf32>
    %cst_161 = arith.constant 0.000000e+00 : f32
    %499 = vector.broadcast %cst_161 : f32 to vector<8x1xf32>
    %500 = arith.cmpf ogt, %498, %499 : vector<8x1xf32>
    %cst_162 = arith.constant 0.000000e+00 : f32
    %501 = vector.shape_cast %500 : vector<8x1xi1> to vector<8x1xi1>
    %502 = vector.broadcast %501 : vector<8x1xi1> to vector<8x16xi1>
    %503 = vector.broadcast %cst_162 : f32 to vector<8x16xf32>
    %504 = arith.select %502, %496, %503 : vector<8x16xi1>, vector<8x16xf32>
    %cst_163 = arith.constant 0.000000e+00 : f32
    %505 = vector.shape_cast %500 : vector<8x1xi1> to vector<8x1xi1>
    %506 = vector.broadcast %505 : vector<8x1xi1> to vector<8x16xi1>
    %507 = vector.broadcast %cst_163 : f32 to vector<8x16xf32>
    %508 = arith.select %506, %494, %507 : vector<8x16xi1>, vector<8x16xf32>
    %509 = arith.truncf %504 : vector<8x16xf32> to vector<8x16xbf16>
    %c2_164 = arith.constant 2 : index
    %c0_165 = arith.constant 0 : index
    %c16_166 = arith.constant 16 : index
    %510 = vector.load %arg17[%c2_164, %c0_165, %c16_166] : memref<8x8x32xbf16, #tpu.memory_space<vmem>>, vector<1x8x16xbf16>
    %511 = vector.shape_cast %510 : vector<1x8x16xbf16> to vector<8x16xbf16>
    %512 = vector.shape_cast %509 : vector<8x16xbf16> to vector<1x8x16xbf16>
    tpu.vector_store %arg17[%c2_164, %c0_165, %c16_166], %512 {strides = array<i32>} : memref<8x8x32xbf16, #tpu.memory_space<vmem>>, vector<1x8x16xbf16>,
    %c6_167 = arith.constant 6 : index
    %c0_168 = arith.constant 0 : index
    %c0_169 = arith.constant 0 : index
    %513 = vector.load %arg15[%c6_167, %c0_168, %c0_169] : memref<8x8x64xbf16, #tpu.memory_space<vmem>>, vector<1x8x64xbf16>
    %514 = vector.shape_cast %513 : vector<1x8x64xbf16> to vector<8x64xbf16>
    %515 = arith.extf %514 : vector<8x64xbf16> to vector<8x64xf32>
    %516 = arith.truncf %461 : vector<8x16xf32> to vector<8x16xbf16>
    %cst_170 = arith.constant dense<0.000000e+00> : vector<8x64xf32>
    %517 = tpu.matmul %516, %18, %cst_170 {dimension_numbers = #tpu.dot_dimension_numbers<[1], [0], [0], [1], [0, 0, 1, 1], [], []>} : vector<8x16xbf16>, vector<16x64xbf16>, vector<8x64xf32> -> vector<8x64xf32>
    %518 = arith.addf %515, %517 : vector<8x64xf32>
    %519 = vector.extract_strided_slice %518 {offsets = [0, 0], sizes = [8, 16], strides = [1, 1]} : vector<8x64xf32> to vector<8x16xf32>
    %520 = arith.negf %519 : vector<8x16xf32>
    %521 = math.exp %520 : vector<8x16xf32>
    %cst_171 = arith.constant 1.000000e+00 : f32
    %522 = vector.broadcast %cst_171 : f32 to vector<8x16xf32>
    %523 = arith.addf %522, %521 : vector<8x16xf32>
    %524 = arith.divf %522, %523 : vector<8x16xf32>
    %525 = vector.extract_strided_slice %518 {offsets = [0, 16], sizes = [8, 16], strides = [1, 1]} : vector<8x64xf32> to vector<8x16xf32>
    %526 = arith.negf %525 : vector<8x16xf32>
    %527 = math.exp %526 : vector<8x16xf32>
    %cst_172 = arith.constant 1.000000e+00 : f32
    %528 = vector.broadcast %cst_172 : f32 to vector<8x16xf32>
    %529 = arith.addf %528, %527 : vector<8x16xf32>
    %530 = arith.divf %528, %529 : vector<8x16xf32>
    %531 = vector.extract_strided_slice %518 {offsets = [0, 32], sizes = [8, 16], strides = [1, 1]} : vector<8x64xf32> to vector<8x16xf32>
    %532 = math.tanh %531 : vector<8x16xf32>
    %533 = vector.extract_strided_slice %518 {offsets = [0, 48], sizes = [8, 16], strides = [1, 1]} : vector<8x64xf32> to vector<8x16xf32>
    %534 = arith.negf %533 : vector<8x16xf32>
    %535 = math.exp %534 : vector<8x16xf32>
    %cst_173 = arith.constant 1.000000e+00 : f32
    %536 = vector.broadcast %cst_173 : f32 to vector<8x16xf32>
    %537 = arith.addf %536, %535 : vector<8x16xf32>
    %538 = arith.divf %536, %537 : vector<8x16xf32>
    %539 = arith.mulf %530, %459 : vector<8x16xf32>
    %540 = arith.mulf %524, %532 : vector<8x16xf32>
    %541 = arith.addf %539, %540 : vector<8x16xf32>
    %542 = math.tanh %541 : vector<8x16xf32>
    %543 = arith.mulf %538, %542 : vector<8x16xf32>
    %544 = arith.truncf %543 : vector<8x16xf32> to vector<8x16xbf16>
    %c6_174 = arith.constant 6 : index
    %c0_175 = arith.constant 0 : index
    %c0_176 = arith.constant 0 : index
    %545 = vector.load %arg17[%c6_174, %c0_175, %c0_176] : memref<8x8x32xbf16, #tpu.memory_space<vmem>>, vector<1x8x16xbf16>
    %546 = vector.shape_cast %545 : vector<1x8x16xbf16> to vector<8x16xbf16>
    %547 = vector.shape_cast %544 : vector<8x16xbf16> to vector<1x8x16xbf16>
    tpu.vector_store %arg17[%c6_174, %c0_175, %c0_176], %547 {strides = array<i32>} : memref<8x8x32xbf16, #tpu.memory_space<vmem>>, vector<1x8x16xbf16>,
    %c1_177 = arith.constant 1 : index
    %c0_178 = arith.constant 0 : index
    %c0_179 = arith.constant 0 : index
    %548 = vector.load %arg16[%c1_177, %c0_178, %c0_179] : memref<8x8x64xbf16, #tpu.memory_space<vmem>>, vector<1x8x64xbf16>
    %549 = vector.shape_cast %548 : vector<1x8x64xbf16> to vector<8x64xbf16>
    %550 = arith.extf %549 : vector<8x64xbf16> to vector<8x64xf32>
    %551 = arith.truncf %504 : vector<8x16xf32> to vector<8x16xbf16>
    %cst_180 = arith.constant dense<0.000000e+00> : vector<8x64xf32>
    %552 = tpu.matmul %551, %19, %cst_180 {dimension_numbers = #tpu.dot_dimension_numbers<[1], [0], [0], [1], [0, 0, 1, 1], [], []>} : vector<8x16xbf16>, vector<16x64xbf16>, vector<8x64xf32> -> vector<8x64xf32>
    %553 = arith.addf %550, %552 : vector<8x64xf32>
    %554 = vector.extract_strided_slice %553 {offsets = [0, 0], sizes = [8, 16], strides = [1, 1]} : vector<8x64xf32> to vector<8x16xf32>
    %555 = arith.negf %554 : vector<8x16xf32>
    %556 = math.exp %555 : vector<8x16xf32>
    %cst_181 = arith.constant 1.000000e+00 : f32
    %557 = vector.broadcast %cst_181 : f32 to vector<8x16xf32>
    %558 = arith.addf %557, %556 : vector<8x16xf32>
    %559 = arith.divf %557, %558 : vector<8x16xf32>
    %560 = vector.extract_strided_slice %553 {offsets = [0, 16], sizes = [8, 16], strides = [1, 1]} : vector<8x64xf32> to vector<8x16xf32>
    %561 = arith.negf %560 : vector<8x16xf32>
    %562 = math.exp %561 : vector<8x16xf32>
    %cst_182 = arith.constant 1.000000e+00 : f32
    %563 = vector.broadcast %cst_182 : f32 to vector<8x16xf32>
    %564 = arith.addf %563, %562 : vector<8x16xf32>
    %565 = arith.divf %563, %564 : vector<8x16xf32>
    %566 = vector.extract_strided_slice %553 {offsets = [0, 32], sizes = [8, 16], strides = [1, 1]} : vector<8x64xf32> to vector<8x16xf32>
    %567 = math.tanh %566 : vector<8x16xf32>
    %568 = vector.extract_strided_slice %553 {offsets = [0, 48], sizes = [8, 16], strides = [1, 1]} : vector<8x64xf32> to vector<8x16xf32>
    %569 = arith.negf %568 : vector<8x16xf32>
    %570 = math.exp %569 : vector<8x16xf32>
    %cst_183 = arith.constant 1.000000e+00 : f32
    %571 = vector.broadcast %cst_183 : f32 to vector<8x16xf32>
    %572 = arith.addf %571, %570 : vector<8x16xf32>
    %573 = arith.divf %571, %572 : vector<8x16xf32>
    %574 = arith.mulf %565, %508 : vector<8x16xf32>
    %575 = arith.mulf %559, %567 : vector<8x16xf32>
    %576 = arith.addf %574, %575 : vector<8x16xf32>
    %577 = math.tanh %576 : vector<8x16xf32>
    %578 = arith.mulf %573, %577 : vector<8x16xf32>
    %c1_184 = arith.constant 1 : index
    %c0_185 = arith.constant 0 : index
    %c0_186 = arith.constant 0 : index
    %579 = vector.load %arg2[%c1_184, %c0_185, %c0_186] : memref<8x8x1xf32, #tpu.memory_space<vmem>>, vector<1x8x1xf32>
    %580 = vector.shape_cast %579 : vector<1x8x1xf32> to vector<8x1xf32>
    %cst_187 = arith.constant 0.000000e+00 : f32
    %581 = vector.broadcast %cst_187 : f32 to vector<8x1xf32>
    %582 = arith.cmpf ogt, %580, %581 : vector<8x1xf32>
    %cst_188 = arith.constant 0.000000e+00 : f32
    %583 = vector.shape_cast %582 : vector<8x1xi1> to vector<8x1xi1>
    %584 = vector.broadcast %583 : vector<8x1xi1> to vector<8x16xi1>
    %585 = vector.broadcast %cst_188 : f32 to vector<8x16xf32>
    %586 = arith.select %584, %578, %585 : vector<8x16xi1>, vector<8x16xf32>
    %cst_189 = arith.constant 0.000000e+00 : f32
    %587 = vector.shape_cast %582 : vector<8x1xi1> to vector<8x1xi1>
    %588 = vector.broadcast %587 : vector<8x1xi1> to vector<8x16xi1>
    %589 = vector.broadcast %cst_189 : f32 to vector<8x16xf32>
    %590 = arith.select %588, %576, %589 : vector<8x16xi1>, vector<8x16xf32>
    %591 = arith.truncf %586 : vector<8x16xf32> to vector<8x16xbf16>
    %c1_190 = arith.constant 1 : index
    %c0_191 = arith.constant 0 : index
    %c16_192 = arith.constant 16 : index
    %592 = vector.load %arg17[%c1_190, %c0_191, %c16_192] : memref<8x8x32xbf16, #tpu.memory_space<vmem>>, vector<1x8x16xbf16>
    %593 = vector.shape_cast %592 : vector<1x8x16xbf16> to vector<8x16xbf16>
    %594 = vector.shape_cast %591 : vector<8x16xbf16> to vector<1x8x16xbf16>
    tpu.vector_store %arg17[%c1_190, %c0_191, %c16_192], %594 {strides = array<i32>} : memref<8x8x32xbf16, #tpu.memory_space<vmem>>, vector<1x8x16xbf16>,
    %c7_193 = arith.constant 7 : index
    %c0_194 = arith.constant 0 : index
    %c0_195 = arith.constant 0 : index
    %595 = vector.load %arg15[%c7_193, %c0_194, %c0_195] : memref<8x8x64xbf16, #tpu.memory_space<vmem>>, vector<1x8x64xbf16>
    %596 = vector.shape_cast %595 : vector<1x8x64xbf16> to vector<8x64xbf16>
    %597 = arith.extf %596 : vector<8x64xbf16> to vector<8x64xf32>
    %598 = arith.truncf %543 : vector<8x16xf32> to vector<8x16xbf16>
    %cst_196 = arith.constant dense<0.000000e+00> : vector<8x64xf32>
    %599 = tpu.matmul %598, %18, %cst_196 {dimension_numbers = #tpu.dot_dimension_numbers<[1], [0], [0], [1], [0, 0, 1, 1], [], []>} : vector<8x16xbf16>, vector<16x64xbf16>, vector<8x64xf32> -> vector<8x64xf32>
    %600 = arith.addf %597, %599 : vector<8x64xf32>
    %601 = vector.extract_strided_slice %600 {offsets = [0, 0], sizes = [8, 16], strides = [1, 1]} : vector<8x64xf32> to vector<8x16xf32>
    %602 = arith.negf %601 : vector<8x16xf32>
    %603 = math.exp %602 : vector<8x16xf32>
    %cst_197 = arith.constant 1.000000e+00 : f32
    %604 = vector.broadcast %cst_197 : f32 to vector<8x16xf32>
    %605 = arith.addf %604, %603 : vector<8x16xf32>
    %606 = arith.divf %604, %605 : vector<8x16xf32>
    %607 = vector.extract_strided_slice %600 {offsets = [0, 16], sizes = [8, 16], strides = [1, 1]} : vector<8x64xf32> to vector<8x16xf32>
    %608 = arith.negf %607 : vector<8x16xf32>
    %609 = math.exp %608 : vector<8x16xf32>
    %cst_198 = arith.constant 1.000000e+00 : f32
    %610 = vector.broadcast %cst_198 : f32 to vector<8x16xf32>
    %611 = arith.addf %610, %609 : vector<8x16xf32>
    %612 = arith.divf %610, %611 : vector<8x16xf32>
    %613 = vector.extract_strided_slice %600 {offsets = [0, 32], sizes = [8, 16], strides = [1, 1]} : vector<8x64xf32> to vector<8x16xf32>
    %614 = math.tanh %613 : vector<8x16xf32>
    %615 = vector.extract_strided_slice %600 {offsets = [0, 48], sizes = [8, 16], strides = [1, 1]} : vector<8x64xf32> to vector<8x16xf32>
    %616 = arith.negf %615 : vector<8x16xf32>
    %617 = math.exp %616 : vector<8x16xf32>
    %cst_199 = arith.constant 1.000000e+00 : f32
    %618 = vector.broadcast %cst_199 : f32 to vector<8x16xf32>
    %619 = arith.addf %618, %617 : vector<8x16xf32>
    %620 = arith.divf %618, %619 : vector<8x16xf32>
    %621 = arith.mulf %612, %541 : vector<8x16xf32>
    %622 = arith.mulf %606, %614 : vector<8x16xf32>
    %623 = arith.addf %621, %622 : vector<8x16xf32>
    %624 = math.tanh %623 : vector<8x16xf32>
    %625 = arith.mulf %620, %624 : vector<8x16xf32>
    %626 = arith.truncf %625 : vector<8x16xf32> to vector<8x16xbf16>
    %c7_200 = arith.constant 7 : index
    %c0_201 = arith.constant 0 : index
    %c0_202 = arith.constant 0 : index
    %627 = vector.load %arg17[%c7_200, %c0_201, %c0_202] : memref<8x8x32xbf16, #tpu.memory_space<vmem>>, vector<1x8x16xbf16>
    %628 = vector.shape_cast %627 : vector<1x8x16xbf16> to vector<8x16xbf16>
    %629 = vector.shape_cast %626 : vector<8x16xbf16> to vector<1x8x16xbf16>
    tpu.vector_store %arg17[%c7_200, %c0_201, %c0_202], %629 {strides = array<i32>} : memref<8x8x32xbf16, #tpu.memory_space<vmem>>, vector<1x8x16xbf16>,
    %c0_203 = arith.constant 0 : index
    %c0_204 = arith.constant 0 : index
    %c0_205 = arith.constant 0 : index
    %630 = vector.load %arg16[%c0_203, %c0_204, %c0_205] : memref<8x8x64xbf16, #tpu.memory_space<vmem>>, vector<1x8x64xbf16>
    %631 = vector.shape_cast %630 : vector<1x8x64xbf16> to vector<8x64xbf16>
    %632 = arith.extf %631 : vector<8x64xbf16> to vector<8x64xf32>
    %633 = arith.truncf %586 : vector<8x16xf32> to vector<8x16xbf16>
    %cst_206 = arith.constant dense<0.000000e+00> : vector<8x64xf32>
    %634 = tpu.matmul %633, %19, %cst_206 {dimension_numbers = #tpu.dot_dimension_numbers<[1], [0], [0], [1], [0, 0, 1, 1], [], []>} : vector<8x16xbf16>, vector<16x64xbf16>, vector<8x64xf32> -> vector<8x64xf32>
    %635 = arith.addf %632, %634 : vector<8x64xf32>
    %636 = vector.extract_strided_slice %635 {offsets = [0, 0], sizes = [8, 16], strides = [1, 1]} : vector<8x64xf32> to vector<8x16xf32>
    %637 = arith.negf %636 : vector<8x16xf32>
    %638 = math.exp %637 : vector<8x16xf32>
    %cst_207 = arith.constant 1.000000e+00 : f32
    %639 = vector.broadcast %cst_207 : f32 to vector<8x16xf32>
    %640 = arith.addf %639, %638 : vector<8x16xf32>
    %641 = arith.divf %639, %640 : vector<8x16xf32>
    %642 = vector.extract_strided_slice %635 {offsets = [0, 16], sizes = [8, 16], strides = [1, 1]} : vector<8x64xf32> to vector<8x16xf32>
    %643 = arith.negf %642 : vector<8x16xf32>
    %644 = math.exp %643 : vector<8x16xf32>
    %cst_208 = arith.constant 1.000000e+00 : f32
    %645 = vector.broadcast %cst_208 : f32 to vector<8x16xf32>
    %646 = arith.addf %645, %644 : vector<8x16xf32>
    %647 = arith.divf %645, %646 : vector<8x16xf32>
    %648 = vector.extract_strided_slice %635 {offsets = [0, 32], sizes = [8, 16], strides = [1, 1]} : vector<8x64xf32> to vector<8x16xf32>
    %649 = math.tanh %648 : vector<8x16xf32>
    %650 = vector.extract_strided_slice %635 {offsets = [0, 48], sizes = [8, 16], strides = [1, 1]} : vector<8x64xf32> to vector<8x16xf32>
    %651 = arith.negf %650 : vector<8x16xf32>
    %652 = math.exp %651 : vector<8x16xf32>
    %cst_209 = arith.constant 1.000000e+00 : f32
    %653 = vector.broadcast %cst_209 : f32 to vector<8x16xf32>
    %654 = arith.addf %653, %652 : vector<8x16xf32>
    %655 = arith.divf %653, %654 : vector<8x16xf32>
    %656 = arith.mulf %647, %590 : vector<8x16xf32>
    %657 = arith.mulf %641, %649 : vector<8x16xf32>
    %658 = arith.addf %656, %657 : vector<8x16xf32>
    %659 = math.tanh %658 : vector<8x16xf32>
    %660 = arith.mulf %655, %659 : vector<8x16xf32>
    %c0_210 = arith.constant 0 : index
    %c0_211 = arith.constant 0 : index
    %c0_212 = arith.constant 0 : index
    %661 = vector.load %arg2[%c0_210, %c0_211, %c0_212] : memref<8x8x1xf32, #tpu.memory_space<vmem>>, vector<1x8x1xf32>
    %662 = vector.shape_cast %661 : vector<1x8x1xf32> to vector<8x1xf32>
    %cst_213 = arith.constant 0.000000e+00 : f32
    %663 = vector.broadcast %cst_213 : f32 to vector<8x1xf32>
    %664 = arith.cmpf ogt, %662, %663 : vector<8x1xf32>
    %cst_214 = arith.constant 0.000000e+00 : f32
    %665 = vector.shape_cast %664 : vector<8x1xi1> to vector<8x1xi1>
    %666 = vector.broadcast %665 : vector<8x1xi1> to vector<8x16xi1>
    %667 = vector.broadcast %cst_214 : f32 to vector<8x16xf32>
    %668 = arith.select %666, %660, %667 : vector<8x16xi1>, vector<8x16xf32>
    %669 = arith.truncf %668 : vector<8x16xf32> to vector<8x16xbf16>
    %c0_215 = arith.constant 0 : index
    %c0_216 = arith.constant 0 : index
    %c16_217 = arith.constant 16 : index
    %670 = vector.load %arg17[%c0_215, %c0_216, %c16_217] : memref<8x8x32xbf16, #tpu.memory_space<vmem>>, vector<1x8x16xbf16>
    %671 = vector.shape_cast %670 : vector<1x8x16xbf16> to vector<8x16xbf16>
    %672 = vector.shape_cast %669 : vector<8x16xbf16> to vector<1x8x16xbf16>
    tpu.vector_store %arg17[%c0_215, %c0_216, %c16_217], %672 {strides = array<i32>} : memref<8x8x32xbf16, #tpu.memory_space<vmem>>, vector<1x8x16xbf16>,
    %c0_218 = arith.constant 0 : index
    %c0_219 = arith.constant 0 : index
    %c0_220 = arith.constant 0 : index
    %673 = vector.load %arg17[%c0_218, %c0_219, %c0_220] : memref<8x8x32xbf16, #tpu.memory_space<vmem>>, vector<8x8x32xbf16>
    %674 = vector.shape_cast %673 : vector<8x8x32xbf16> to vector<64x32xbf16>
    %c0_221 = arith.constant 0 : index
    %c0_222 = arith.constant 0 : index
    %675 = vector.load %arg8[%c0_221, %c0_222] : memref<32x32xbf16, #tpu.memory_space<vmem>>, vector<32x32xbf16>
    %cst_223 = arith.constant dense<0.000000e+00> : vector<64x32xf32>
    %676 = tpu.matmul %674, %675, %cst_223 {dimension_numbers = #tpu.dot_dimension_numbers<[1], [0], [0], [1], [0, 0, 1, 1], [], []>} : vector<64x32xbf16>, vector<32x32xbf16>, vector<64x32xf32> -> vector<64x32xf32>
    %c0_224 = arith.constant 0 : index
    %c0_225 = arith.constant 0 : index
    %677 = vector.load %arg9[%c0_224, %c0_225] : memref<1x32xf32, #tpu.memory_space<vmem>>, vector<1x32xf32>
    %678 = vector.broadcast %677 : vector<1x32xf32> to vector<64x32xf32>
    %679 = arith.addf %676, %678 : vector<64x32xf32>
    %680 = math.tanh %679 : vector<64x32xf32>
    %681 = arith.truncf %680 : vector<64x32xf32> to vector<64x32xbf16>
    %c0_226 = arith.constant 0 : index
    %c0_227 = arith.constant 0 : index
    %682 = vector.load %arg10[%c0_226, %c0_227] : memref<32x1xbf16, #tpu.memory_space<vmem>>, vector<32x1xbf16>
    %cst_228 = arith.constant dense<0.000000e+00> : vector<64x1xf32>
    %683 = tpu.matmul %681, %682, %cst_228 {dimension_numbers = #tpu.dot_dimension_numbers<[1], [0], [0], [1], [0, 0, 1, 1], [], []>} : vector<64x32xbf16>, vector<32x1xbf16>, vector<64x1xf32> -> vector<64x1xf32>
    %c0_229 = arith.constant 0 : index
    %c0_230 = arith.constant 0 : index
    %684 = vector.load %arg11[%c0_229, %c0_230] : memref<1x1xf32, #tpu.memory_space<vmem>>, vector<1x1xf32>
    %685 = vector.broadcast %684 : vector<1x1xf32> to vector<64x1xf32>
    %686 = arith.addf %683, %685 : vector<64x1xf32>
    %687 = vector.shape_cast %686 : vector<64x1xf32> to vector<8x8x1xf32>
    %c0_231 = arith.constant 0 : index
    %c0_232 = arith.constant 0 : index
    %c0_233 = arith.constant 0 : index
    %688 = vector.load %arg2[%c0_231, %c0_232, %c0_233] : memref<8x8x1xf32, #tpu.memory_space<vmem>>, vector<8x8x1xf32>
    %cst_234 = arith.constant 1.000000e+00 : f32
    %689 = vector.broadcast %cst_234 : f32 to vector<8x8x1xf32>
    %690 = arith.subf %689, %688 : vector<8x8x1xf32>
    %cst_235 = arith.constant -1.000000e+04 : f32
    %691 = vector.broadcast %cst_235 : f32 to vector<8x8x1xf32>
    %692 = arith.mulf %691, %690 : vector<8x8x1xf32>
    %693 = arith.addf %687, %692 : vector<8x8x1xf32>
    %cst_236 = arith.constant dense<0xFF800000> : vector<8x1xf32>
    %694 = vector.multi_reduction <maximumf>, %693, %cst_236 [0] : vector<8x8x1xf32> to vector<8x1xf32>
    %695 = vector.shape_cast %694 : vector<8x1xf32> to vector<1x8x1xf32>
    %696 = vector.broadcast %695 : vector<1x8x1xf32> to vector<8x8x1xf32>
    %697 = arith.subf %693, %696 : vector<8x8x1xf32>
    %698 = math.exp %697 : vector<8x8x1xf32>
    %cst_237 = arith.constant dense<0.000000e+00> : vector<8x1xf32>
    %699 = vector.multi_reduction <add>, %698, %cst_237 [0] : vector<8x8x1xf32> to vector<8x1xf32>
    %700 = tpu.reciprocal %699 {approx = true} : vector<8x1xf32> -> vector<8x1xf32>
    %701 = vector.shape_cast %700 : vector<8x1xf32> to vector<1x8x1xf32>
    %702 = vector.broadcast %701 : vector<1x8x1xf32> to vector<8x8x1xf32>
    %703 = arith.mulf %698, %702 : vector<8x8x1xf32>
    %704 = arith.extf %673 : vector<8x8x32xbf16> to vector<8x8x32xf32>
    %705 = vector.broadcast %703 : vector<8x8x1xf32> to vector<8x8x32xf32>
    %706 = arith.mulf %704, %705 : vector<8x8x32xf32>
    %cst_238 = arith.constant dense<0.000000e+00> : vector<8x32xf32>
    %707 = vector.multi_reduction <add>, %706, %cst_238 [0] : vector<8x8x32xf32> to vector<8x32xf32>
    %708 = arith.truncf %707 : vector<8x32xf32> to vector<8x32xbf16>
    %c0_239 = arith.constant 0 : index
    %c0_240 = arith.constant 0 : index
    %709 = vector.load %arg12[%c0_239, %c0_240] : memref<32x32xbf16, #tpu.memory_space<vmem>>, vector<32x32xbf16>
    %cst_241 = arith.constant dense<0.000000e+00> : vector<8x32xf32>
    %710 = tpu.matmul %708, %709, %cst_241 {dimension_numbers = #tpu.dot_dimension_numbers<[1], [0], [0], [1], [0, 0, 1, 1], [], []>} : vector<8x32xbf16>, vector<32x32xbf16>, vector<8x32xf32> -> vector<8x32xf32>
    %c0_242 = arith.constant 0 : index
    %c0_243 = arith.constant 0 : index
    %711 = vector.load %arg13[%c0_242, %c0_243] : memref<1x32xf32, #tpu.memory_space<vmem>>, vector<1x32xf32>
    %712 = vector.broadcast %711 : vector<1x32xf32> to vector<8x32xf32>
    %713 = arith.addf %710, %712 : vector<8x32xf32>
    %714 = math.tanh %713 : vector<8x32xf32>
    %715 = arith.truncf %714 : vector<8x32xf32> to vector<8x32xbf16>
    %c0_244 = arith.constant 0 : index
    %c0_245 = arith.constant 0 : index
    %716 = vector.load %arg14[%c0_244, %c0_245] : memref<8x32xbf16, #tpu.memory_space<vmem>>, vector<8x32xbf16>
    tpu.vector_store %arg14[%c0_244, %c0_245], %715 {strides = array<i32>} : memref<8x32xbf16, #tpu.memory_space<vmem>>, vector<8x32xbf16>,
    return
  }
  func.func @transform_0(%arg0: i32) -> (i32, i32, i32) {
    %c0_i32 = arith.constant 0 : i32
    %c0_i32_0 = arith.constant 0 : i32
    %c0_i32_1 = arith.constant 0 : i32
    return %c0_i32, %arg0, %c0_i32_0 : i32, i32, i32
  }
  func.func @transform_1(%arg0: i32) -> (i32, i32, i32) {
    %c0_i32 = arith.constant 0 : i32
    %c0_i32_0 = arith.constant 0 : i32
    %c0_i32_1 = arith.constant 0 : i32
    return %c0_i32, %arg0, %c0_i32_0 : i32, i32, i32
  }
  func.func @transform_2(%arg0: i32) -> (i32, i32) {
    %c0_i32 = arith.constant 0 : i32
    %c0_i32_0 = arith.constant 0 : i32
    %c0_i32_1 = arith.constant 0 : i32
    return %c0_i32, %c0_i32_0 : i32, i32
  }
  func.func @transform_3(%arg0: i32) -> (i32, i32) {
    %c0_i32 = arith.constant 0 : i32
    %c0_i32_0 = arith.constant 0 : i32
    %c0_i32_1 = arith.constant 0 : i32
    return %c0_i32, %c0_i32_0 : i32, i32
  }
  func.func @transform_4(%arg0: i32) -> (i32, i32) {
    %c0_i32 = arith.constant 0 : i32
    %c0_i32_0 = arith.constant 0 : i32
    %c0_i32_1 = arith.constant 0 : i32
    return %c0_i32, %c0_i32_0 : i32, i32
  }
  func.func @transform_5(%arg0: i32) -> (i32, i32) {
    %c0_i32 = arith.constant 0 : i32
    %c0_i32_0 = arith.constant 0 : i32
    %c0_i32_1 = arith.constant 0 : i32
    return %c0_i32, %c0_i32_0 : i32, i32
  }
  func.func @transform_6(%arg0: i32) -> (i32, i32) {
    %c0_i32 = arith.constant 0 : i32
    %c0_i32_0 = arith.constant 0 : i32
    %c0_i32_1 = arith.constant 0 : i32
    return %c0_i32, %c0_i32_0 : i32, i32
  }
  func.func @transform_7(%arg0: i32) -> (i32, i32) {
    %c0_i32 = arith.constant 0 : i32
    %c0_i32_0 = arith.constant 0 : i32
    %c0_i32_1 = arith.constant 0 : i32
    return %c0_i32, %c0_i32_0 : i32, i32
  }
  func.func @transform_8(%arg0: i32) -> (i32, i32) {
    %c0_i32 = arith.constant 0 : i32
    %c0_i32_0 = arith.constant 0 : i32
    %c0_i32_1 = arith.constant 0 : i32
    return %c0_i32, %c0_i32_0 : i32, i32
  }
  func.func @transform_9(%arg0: i32) -> (i32, i32) {
    %c0_i32 = arith.constant 0 : i32
    %c0_i32_0 = arith.constant 0 : i32
    %c0_i32_1 = arith.constant 0 : i32
    return %c0_i32, %c0_i32_0 : i32, i32
  }
  func.func @transform_10(%arg0: i32) -> (i32, i32) {
    %c0_i32 = arith.constant 0 : i32
    %c0_i32_0 = arith.constant 0 : i32
    %c0_i32_1 = arith.constant 0 : i32
    return %c0_i32, %c0_i32_0 : i32, i32
  }
  func.func @transform_11(%arg0: i32) -> (i32, i32) {
    %c0_i32 = arith.constant 0 : i32
    %c0_i32_0 = arith.constant 0 : i32
    %c0_i32_1 = arith.constant 0 : i32
    return %c0_i32, %c0_i32_0 : i32, i32
  }
  func.func @transform_12(%arg0: i32) -> (i32, i32) {
    %c0_i32 = arith.constant 0 : i32
    %c0_i32_0 = arith.constant 0 : i32
    %c0_i32_1 = arith.constant 0 : i32
    return %c0_i32, %c0_i32_0 : i32, i32
  }
  func.func @transform_13(%arg0: i32) -> (i32, i32) {
    %c0_i32 = arith.constant 0 : i32
    %c0_i32_0 = arith.constant 0 : i32
    return %arg0, %c0_i32 : i32, i32
  }
}

</mosaic_0001>

<llo_original>
// kernel: tpu_custom_call.1
$region0: #{tpu_custom_call.1}
  #allocation0 [shape = 'u32[]', space=smem, size = 0x4, offset = 0x4, fixed_abs, tag = 'smem constant byte address 0x4 - core index']
  #allocation1 [shape = 'u32[144,128]{1,0:T(1,128)}', space=vmem, size = 0x12000, scoped, tag = 'internal scratch']
  #allocation2 [shape = 'bf16[8,8,64]{2,1,0:T(8,128)(2,1)}', space=vmem, size = 0x4000, scoped, tag = 'scratch operand']
  #allocation3 [shape = 'bf16[8,8,64]{2,1,0:T(8,128)(2,1)}', space=vmem, size = 0x4000, scoped, tag = 'scratch operand']
  #allocation4 [shape = 'bf16[8,8,32]{2,1,0:T(8,128)(2,1)}', space=vmem, size = 0x4000, scoped, tag = 'scratch operand']
  #allocation5 [shape = 'f32[1,1]{1,0:T(1,128)S(1)}', space=vmem, size = 0x200, scoped, tag = 'scoped memory for tpu_custom_call.1']
  %s0 = inlined_call_operand.vmem [shape: bf16[8,8,32], index: 0, kind: input, shape index: {}]
  %s1 = inlined_call_operand.vmem [shape: f32[8,8,1], index: 1, kind: input, shape index: {}]
  %s2 = inlined_call_operand.vmem [shape: bf16[32,128], index: 2, kind: input, shape index: {}]
  %s3 = inlined_call_operand.vmem [shape: bf16[16,64], index: 3, kind: input, shape index: {}]
  %s4 = inlined_call_operand.hbm [shape: bf16[16,64], index: 4, kind: input, shape index: {}]
  %s5 = inlined_call_operand.vmem [shape: f32[1,64], index: 5, kind: input, shape index: {}]
  %s6 = inlined_call_operand.vmem [shape: f32[1,64], index: 6, kind: input, shape index: {}]
  %s7 = inlined_call_operand.vmem [shape: bf16[32,32], index: 7, kind: input, shape index: {}]
  %s8 = inlined_call_operand.vmem [shape: f32[1,32], index: 8, kind: input, shape index: {}]
  %s9 = inlined_call_operand.vmem [shape: bf16[32,1], index: 9, kind: input, shape index: {}]
  %s10 = inlined_call_operand.<no memory space> [shape: f32[1,1], index: 10, kind: input, shape index: {}]
  %s11 = inlined_call_operand.vmem [shape: bf16[32,32], index: 11, kind: input, shape index: {}]
  %s12 = inlined_call_operand.vmem [shape: f32[1,32], index: 12, kind: input, shape index: {}]
  %s13 = inlined_call_operand.hbm [shape: bf16[8,32], index: 13, kind: output, shape index: {}]
  %s14 = sld [smem:[#allocation0]]
  $region66: #{tpu_custom_call.1} parent=0
    _
  %s16 = ssub.s32 1, %s14
  %s17 = scalar_select 0, %s16, %s14
  %v18 = vstv %s10
  %19 = vst [vmem:[#allocation5] sm:$0x1] %v18
  $region1: #{tpu_custom_call.1} parent=0
    #allocation6 [shape = 'u8[4096]{0}', space=vmem, size = 0x1000, scoped, tag = 'input window, operand 4, single buffered']
    #allocation7 [shape = 's32[1]{0}', space=sflag, size = 0x4, scoped, tag = 'scoped memory for tpu_custom_call.1']
    #allocation8 [shape = 's32[1]{0}', space=sflag, size = 0x4, scoped, tag = 'scoped memory for tpu_custom_call.1']
    #allocation9 [shape = 'u8[2048]{0}', space=vmem, size = 0x800, scoped, tag = 'output window, operand 0, single buffered']
    %20 = vsyncpa [#allocation7], 0
    %21 = vsyncpa [#allocation8], 0
    // Predicated region
    $region2: #{tpu_custom_call.1} parent=1 // pred_check
      _
    $region3: #{tpu_custom_call.1} parent=1 // pred_check_branch
      %23 = sbr.rel (0) target = $region5
    $region4: #{tpu_custom_call.1} parent=1 // pred_region
      _
    $region5: #{tpu_custom_call.1} parent=1 // pred_fallthru
      _
    // Predicated region
    $region6: #{tpu_custom_call.1} parent=1 // pred_check
      _
    $region7: #{tpu_custom_call.1} parent=1 // pred_check_branch
      %25 = sbr.rel (0) target = $region9
    $region8: #{tpu_custom_call.1} parent=1 // pred_region
      _
    $region9: #{tpu_custom_call.1} parent=1 // pred_fallthru
      _
    // Predicated region
    $region10: #{tpu_custom_call.1} parent=1 // pred_check
      _
    $region11: #{tpu_custom_call.1} parent=1 // pred_check_branch
      %27 = sbr.rel (0) target = $region13
    $region12: #{tpu_custom_call.1} parent=1 // pred_region
      _
    $region13: #{tpu_custom_call.1} parent=1 // pred_fallthru
      _
    // Predicated region
    $region14: #{tpu_custom_call.1} parent=1 // pred_check
      _
    $region15: #{tpu_custom_call.1} parent=1 // pred_check_branch
      %29 = sbr.rel (0) target = $region17
    $region16: #{tpu_custom_call.1} parent=1 // pred_region
      _
    $region17: #{tpu_custom_call.1} parent=1 // pred_fallthru
      _
    // Predicated region
    $region18: #{tpu_custom_call.1} parent=1 // pred_check
      _
    $region19: #{tpu_custom_call.1} parent=1 // pred_check_branch
      %31 = sbr.rel (0) target = $region21
    $region20: #{tpu_custom_call.1} parent=1 // pred_region
      %s33 = ssub.s32 128, 128
      %34 = vsyncadd [#allocation7], %s33
      %s35 = sshll.u32 [#allocation6], 4
      %s36 = int_to_ptr.vmem [resolvable:$true] %s35
      %41 = dma.hbm_to_vmem [thread:$0]  %s4, 128, %s36, [#allocation7], 64, 64, 4
    $region21: #{tpu_custom_call.1} parent=1 // pred_fallthru
      _
    // Predicated region
    $region22: #{tpu_custom_call.1} parent=1 // pred_check
      _
    $region23: #{tpu_custom_call.1} parent=1 // pred_check_branch
      %43 = sbr.rel (0) target = $region25
    $region24: #{tpu_custom_call.1} parent=1 // pred_region
      _
    $region25: #{tpu_custom_call.1} parent=1 // pred_fallthru
      _
    // Predicated region
    $region26: #{tpu_custom_call.1} parent=1 // pred_check
      _
    $region27: #{tpu_custom_call.1} parent=1 // pred_check_branch
      %45 = sbr.rel (0) target = $region29
    $region28: #{tpu_custom_call.1} parent=1 // pred_region
      _
    $region29: #{tpu_custom_call.1} parent=1 // pred_fallthru
      _
    // Predicated region
    $region30: #{tpu_custom_call.1} parent=1 // pred_check
      _
    $region31: #{tpu_custom_call.1} parent=1 // pred_check_branch
      %47 = sbr.rel (0) target = $region33
    $region32: #{tpu_custom_call.1} parent=1 // pred_region
      _
    $region33: #{tpu_custom_call.1} parent=1 // pred_fallthru
      _
    // Predicated region
    $region34: #{tpu_custom_call.1} parent=1 // pred_check
      _
    $region35: #{tpu_custom_call.1} parent=1 // pred_check_branch
      %49 = sbr.rel (0) target = $region37
    $region36: #{tpu_custom_call.1} parent=1 // pred_region
      _
    $region37: #{tpu_custom_call.1} parent=1 // pred_fallthru
      _
    // Predicated region
    $region38: #{tpu_custom_call.1} parent=1 // pred_check
      _
    $region39: #{tpu_custom_call.1} parent=1 // pred_check_branch
      %51 = sbr.rel (0) target = $region41
    $region40: #{tpu_custom_call.1} parent=1 // pred_region
      _
    $region41: #{tpu_custom_call.1} parent=1 // pred_fallthru
      _
    // Predicated region
    $region42: #{tpu_custom_call.1} parent=1 // pred_check
      _
    $region43: #{tpu_custom_call.1} parent=1 // pred_check_branch
      %53 = sbr.rel (0) target = $region45
    $region44: #{tpu_custom_call.1} parent=1 // pred_region
      _
    $region45: #{tpu_custom_call.1} parent=1 // pred_fallthru
      _
    // Predicated region
    $region46: #{tpu_custom_call.1} parent=1 // pred_check
      _
    $region47: #{tpu_custom_call.1} parent=1 // pred_check_branch
      %55 = sbr.rel (0) target = $region49
    $region48: #{tpu_custom_call.1} parent=1 // pred_region
      _
    $region49: #{tpu_custom_call.1} parent=1 // pred_fallthru
      _
    // Predicated region
    $region50: #{tpu_custom_call.1} parent=1 // pred_check
      _
    $region51: #{tpu_custom_call.1} parent=1 // pred_check_branch
      %57 = sbr.rel (0) target = $region53
    $region52: #{tpu_custom_call.1} parent=1 // pred_region
      _
    $region53: #{tpu_custom_call.1} parent=1 // pred_fallthru
      _
    // Predicated region
    $region54: #{tpu_custom_call.1} parent=1 // pred_check
      _
    $region55: #{tpu_custom_call.1} parent=1 // pred_check_branch
      %59 = sbr.rel (0) target = $region57
    $region56: #{tpu_custom_call.1} parent=1 // pred_region
      %60 = dma.done [#allocation7], 128
    $region57: #{tpu_custom_call.1} parent=1 // pred_fallthru
      _
    %v62 = vld [vmem:[%s0] sm:$0xf]
    %v63 = vld [vmem:[%s0 + $0x4] sm:$0xf]
    %v64 = vld [vmem:[%s0 + $0x8] sm:$0xf]
    %v65 = vld [vmem:[%s0 + $0xc] sm:$0xf]
    %v66 = vld [vmem:[%s0 + $0x10] sm:$0xf]
    %v67 = vld [vmem:[%s0 + $0x14] sm:$0xf]
    %v68 = vld [vmem:[%s0 + $0x18] sm:$0xf]
    %v69 = vld [vmem:[%s0 + $0x1c] sm:$0xf]
    %v70 = vld [vmem:[%s2] sm:$0xf]
    %v71 = vld [vmem:[%s2 + $0x4] sm:$0xf]
    %v72 = vld [vmem:[%s2 + $0x8] sm:$0xf]
    %v73 = vld [vmem:[%s2 + $0xc] sm:$0xf]
    %v82 = vunpack.c.l.b16 %v62
    %v83 = vunpack.c.l.b16 %v63
    %v84 = vunpack.c.l.b16 %v64
    %v85 = vunpack.c.l.b16 %v65
    %v86 = vunpack.c.l.b16 %v66
    %v87 = vunpack.c.l.b16 %v67
    %v88 = vunpack.c.l.b16 %v68
    %v89 = vunpack.c.l.b16 %v69
    %v90 = vpack.c.b16 %v83, %v82
    %v91 = vpack.c.b16 %v85, %v84
    %v92 = vpack.c.b16 %v87, %v86
    %v93 = vpack.c.b16 %v89, %v88
    %v98 = vunpack.c.l.b16 %v70
    %v99 = vunpack.c.l.b16 %v71
    %v100 = vunpack.c.l.b16 %v72
    %v101 = vunpack.c.l.b16 %v73
    %v102 = vpack.c.b16 %v99, %v98
    %v103 = vpack.c.b16 %v101, %v100
    %vm106 = vcmask 261120
    %v108 = vsel %vm106, %v90, 0
    %v111 = vsel %vm106, %v91, 0
    %v114 = vsel %vm106, %v92, 0
    %v117 = vsel %vm106, %v93, 0
    %119 = vmatprep.subr.bf16.mxu0 0
    %120 = vmatpush1.bf16.msra.mxu0 0
    %121 = vmatprep.subr.bf16.mxu0 0
    %122 = vmatpush1.bf16.msra.mxu0 0
    %123 = vmatprep.subr.bf16.mxu0 0
    %124 = vmatpush1.bf16.msra.mxu0 0
    %125 = vmatprep.subr.bf16.mxu0 0
    %126 = vmatpush1.bf16.msra.mxu0 0
    %127 = vmatprep.subr.bf16.mxu0 0
    %128 = vmatpush1.bf16.msra.mxu0 0
    %129 = vmatprep.subr.bf16.mxu0 0
    %130 = vmatpush1.bf16.msra.mxu0 0
    %131 = vmatprep.subr.bf16.mxu0 0
    %132 = vmatpush1.bf16.msra.mxu0 %v103
    %133 = vmatprep.subr.bf16.mxu0 0
    %134 = vmatpush1.bf16.msra.mxu0 %v102
    %135 = vmatprep.subr.bf16.mxu0 0
    %136 = vmatpush2.bf16.msra.mxu0 0
    %137 = vmatprep.subr.bf16.mxu0 0
    %138 = vmatpush2.bf16.msra.mxu0 0
    %139 = vmatprep.subr.bf16.mxu0 0
    %140 = vmatpush2.bf16.msra.mxu0 0
    %141 = vmatprep.subr.bf16.mxu0 0
    %142 = vmatpush2.bf16.msra.mxu0 0
    %143 = vmatprep.subr.bf16.mxu0 0
    %144 = vmatpush2.bf16.msra.mxu0 0
    %145 = vmatprep.subr.bf16.mxu0 0
    %146 = vmatpush2.bf16.msra.mxu0 0
    %147 = vmatprep.subr.bf16.mxu0 0
    %148 = vmatpush2.bf16.msra.mxu0 0
    %149 = vmatprep.subr.bf16.mxu0 0
    %150 = vmatpush2.bf16.msra.mxu0 0
    %151 = vmatprep.mubr.bf16.mxu0 0
    %152 = vmatmul.mubr.bf16.gmra.mxu0 %v108
    %v153 = vpop.f32.mrf.mxu0
    %v154 = vadd.f32 0.0, %v153
    %v155 = vpop.f32.mrf.mxu0
    %v156 = vpop.f32.mrf.mxu0
    %v157 = vadd.f32 0.0, %v156
    %v158 = vpop.f32.mrf.mxu0
    %159 = vmatprep.mubr.bf16.mxu0 0
    %160 = vmatmul.mubr.bf16.gmra.mxu0 %v111
    %v161 = vpop.f32.mrf.mxu0
    %v162 = vadd.f32 0.0, %v161
    %v163 = vpop.f32.mrf.mxu0
    %v164 = vpop.f32.mrf.mxu0
    %v165 = vadd.f32 0.0, %v164
    %v166 = vpop.f32.mrf.mxu0
    %167 = vmatprep.mubr.bf16.mxu0 0
    %168 = vmatmul.mubr.bf16.gmra.mxu0 %v114
    %v169 = vpop.f32.mrf.mxu0
    %v170 = vadd.f32 0.0, %v169
    %v171 = vpop.f32.mrf.mxu0
    %v172 = vpop.f32.mrf.mxu0
    %v173 = vadd.f32 0.0, %v172
    %v174 = vpop.f32.mrf.mxu0
    %175 = vmatprep.mubr.bf16.mxu0 0
    %176 = vmatmul.mubr.bf16.gmra.mxu0 %v117
    %v177 = vpop.f32.mrf.mxu0
    %v178 = vadd.f32 0.0, %v177
    %v179 = vpop.f32.mrf.mxu0
    %v180 = vpop.f32.mrf.mxu0
    %v181 = vadd.f32 0.0, %v180
    %v182 = vpop.f32.mrf.mxu0
    %183 = vdwg.mxu0
    %v184 = vld [vmem:[%s5] sm:$0x1]
    %v186 = vlaneseq
    %v187 = vshrl.u32 %v186, 7
    %v188 = vsub.s32 0, %v187
    %v189 = vrot.slane %v184, %v188
    %v191 = vadd.f32 %v154, %v189
    %v192 = vadd.f32 %v157, %v189
    %v193 = vadd.f32 %v162, %v189
    %v194 = vadd.f32 %v165, %v189
    %v195 = vadd.f32 %v170, %v189
    %v196 = vadd.f32 %v173, %v189
    %v197 = vadd.f32 %v178, %v189
    %v198 = vadd.f32 %v181, %v189
    %v199 = vpack.c.bf16 %v191, %v191
    %v200 = vpack.c.bf16 %v192, %v192
    %v201 = vpack.c.bf16 %v193, %v193
    %v202 = vpack.c.bf16 %v194, %v194
    %v203 = vpack.c.bf16 %v195, %v195
    %v204 = vpack.c.bf16 %v196, %v196
    %v205 = vpack.c.bf16 %v197, %v197
    %v206 = vpack.c.bf16 %v198, %v198
    %vm207 = vcmask 519168
    %208 = vst.msk [vmem:[#allocation2] sm:$0xf] %vm207, %v199
    %209 = vst.msk [vmem:[#allocation2 + $0x4] sm:$0xf] %vm207, %v200
    %210 = vst.msk [vmem:[#allocation2 + $0x8] sm:$0xf] %vm207, %v201
    %211 = vst.msk [vmem:[#allocation2 + $0xc] sm:$0xf] %vm207, %v202
    %212 = vst.msk [vmem:[#allocation2 + $0x10] sm:$0xf] %vm207, %v203
    %213 = vst.msk [vmem:[#allocation2 + $0x14] sm:$0xf] %vm207, %v204
    %214 = vst.msk [vmem:[#allocation2 + $0x18] sm:$0xf] %vm207, %v205
    %215 = vst.msk [vmem:[#allocation2 + $0x1c] sm:$0xf] %vm207, %v206
    %v216 = vld [vmem:[%s6] sm:$0x1]
    %v218 = vlaneseq
    %v219 = vshrl.u32 %v218, 7
    %v220 = vsub.s32 0, %v219
    %v221 = vrot.slane %v216, %v220
    %222 = vrot.lane.b32.xlu0 %v221, 64
    %v223 = vpop.permute.xlu0 %222
    %v225 = vadd.f32 %v154, %v223
    %v226 = vadd.f32 %v157, %v223
    %v227 = vadd.f32 %v162, %v223
    %v228 = vadd.f32 %v165, %v223
    %v229 = vadd.f32 %v170, %v223
    %v230 = vadd.f32 %v173, %v223
    %v231 = vadd.f32 %v178, %v223
    %v232 = vadd.f32 %v181, %v223
    %v233 = vpack.c.bf16 %v225, %v225
    %v234 = vpack.c.bf16 %v226, %v226
    %v235 = vpack.c.bf16 %v227, %v227
    %v236 = vpack.c.bf16 %v228, %v228
    %v237 = vpack.c.bf16 %v229, %v229
    %v238 = vpack.c.bf16 %v230, %v230
    %v239 = vpack.c.bf16 %v231, %v231
    %v240 = vpack.c.bf16 %v232, %v232
    %v249 = vunpack.c.l.b16 %v233
    %v250 = vunpack.c.l.b16 %v234
    %v251 = vunpack.c.l.b16 %v235
    %v252 = vunpack.c.l.b16 %v236
    %v253 = vunpack.c.l.b16 %v237
    %v254 = vunpack.c.l.b16 %v238
    %v255 = vunpack.c.l.b16 %v239
    %v256 = vunpack.c.l.b16 %v240
    %v257 = vpack.c.b16 %v249, %v249
    %v258 = vpack.c.b16 %v250, %v250
    %v259 = vpack.c.b16 %v251, %v251
    %v260 = vpack.c.b16 %v252, %v252
    %v261 = vpack.c.b16 %v253, %v253
    %v262 = vpack.c.b16 %v254, %v254
    %v263 = vpack.c.b16 %v255, %v255
    %v264 = vpack.c.b16 %v256, %v256
    %265 = vrot.lane.b32.xlu0 %v257, 64
    %v266 = vpop.permute.xlu0 %265
    %267 = vrot.lane.b32.xlu0 %v258, 64
    %v268 = vpop.permute.xlu0 %267
    %269 = vrot.lane.b32.xlu0 %v259, 64
    %v270 = vpop.permute.xlu0 %269
    %271 = vrot.lane.b32.xlu0 %v260, 64
    %v272 = vpop.permute.xlu0 %271
    %273 = vrot.lane.b32.xlu0 %v261, 64
    %v274 = vpop.permute.xlu0 %273
    %275 = vrot.lane.b32.xlu0 %v262, 64
    %v276 = vpop.permute.xlu0 %275
    %277 = vrot.lane.b32.xlu0 %v263, 64
    %v278 = vpop.permute.xlu0 %277
    %279 = vrot.lane.b32.xlu0 %v264, 64
    %v280 = vpop.permute.xlu0 %279
    %289 = vst.msk [vmem:[#allocation3] sm:$0xf] %vm207, %v266
    %290 = vst.msk [vmem:[#allocation3 + $0x4] sm:$0xf] %vm207, %v268
    %291 = vst.msk [vmem:[#allocation3 + $0x8] sm:$0xf] %vm207, %v270
    %292 = vst.msk [vmem:[#allocation3 + $0xc] sm:$0xf] %vm207, %v272
    %293 = vst.msk [vmem:[#allocation3 + $0x10] sm:$0xf] %vm207, %v274
    %294 = vst.msk [vmem:[#allocation3 + $0x14] sm:$0xf] %vm207, %v276
    %295 = vst.msk [vmem:[#allocation3 + $0x18] sm:$0xf] %vm207, %v278
    %296 = vst.msk [vmem:[#allocation3 + $0x1c] sm:$0xf] %vm207, %v280
    %v297 = vld [vmem:[%s3] sm:$0xf]
    %v298 = vld [vmem:[%s3 + $0x4] sm:$0xf]
    %v299 = vld [vmem:[#allocation6] sm:$0xf]
    %v300 = vld [vmem:[#allocation6 + $0x4] sm:$0xf]
    %v301 = vld [vmem:[#allocation2] sm:$0xf]
    %v302 = vunpack.c.l.bf16 %v301
    %v305 = vunpack.c.l.b16 %v297
    %v306 = vunpack.c.l.b16 %v298
    %v307 = vpack.c.b16 %v306, %v305
    %vm309 = vcmask 130048
    %v311 = vsel %vm309, 0, 0
    %313 = vmatprep.subr.bf16.mxu0 0
    %314 = vmatpush1.bf16.msra.mxu0 0
    %315 = vmatprep.subr.bf16.mxu0 0
    %316 = vmatpush1.bf16.msra.mxu0 0
    %317 = vmatprep.subr.bf16.mxu0 0
    %318 = vmatpush1.bf16.msra.mxu0 0
    %319 = vmatprep.subr.bf16.mxu0 0
    %320 = vmatpush1.bf16.msra.mxu0 0
    %321 = vmatprep.subr.bf16.mxu0 0
    %322 = vmatpush1.bf16.msra.mxu0 0
    %323 = vmatprep.subr.bf16.mxu0 0
    %324 = vmatpush1.bf16.msra.mxu0 0
    %325 = vmatprep.subr.bf16.mxu0 0
    %326 = vmatpush1.bf16.msra.mxu0 0
    %327 = vmatprep.subr.bf16.mxu0 0
    %328 = vmatpush1.bf16.msra.mxu0 %v307
    %329 = vmatprep.subr.bf16.mxu0 0
    %330 = vmatpush2.bf16.msra.mxu0 0
    %331 = vmatprep.subr.bf16.mxu0 0
    %332 = vmatpush2.bf16.msra.mxu0 0
    %333 = vmatprep.subr.bf16.mxu0 0
    %334 = vmatpush2.bf16.msra.mxu0 0
    %335 = vmatprep.subr.bf16.mxu0 0
    %336 = vmatpush2.bf16.msra.mxu0 0
    %337 = vmatprep.subr.bf16.mxu0 0
    %338 = vmatpush2.bf16.msra.mxu0 0
    %339 = vmatprep.subr.bf16.mxu0 0
    %340 = vmatpush2.bf16.msra.mxu0 0
    %341 = vmatprep.subr.bf16.mxu0 0
    %342 = vmatpush2.bf16.msra.mxu0 0
    %343 = vmatprep.subr.bf16.mxu0 0
    %344 = vmatpush2.bf16.msra.mxu0 0
    %345 = vmatprep.mubr.bf16.mxu0 0
    %346 = vmatmul.mubr.bf16.gmra.mxu0 %v311
    %v347 = vpop.f32.mrf.mxu0
    %v348 = vadd.f32 0.0, %v347
    %v349 = vpop.f32.mrf.mxu0
    %v350 = vpop.f32.mrf.mxu0
    %v351 = vpop.f32.mrf.mxu0
    %352 = vdwg.mxu0
    %v353 = vadd.f32 %v302, %v348
    %v354 = vxor.u32 %v353, 2147483648
    %v355 = vmul.f32 %v354, 1.442695
    %v356 = vpow.pop %v355
    %v357 = vadd.f32 %v356, 1.0
    %v358 = vrcp.pop %v357
    %v359 = vmul.f32 1.0, %v358
    %v360 = vtanh.pop %v353
    %v361 = vmul.f32 %v359, 0.0
    %363 = vrot.lane.b32.xlu0 %v360, 96
    %v364 = vpop.permute.xlu0 %363
    %v366 = vmul.f32 %v359, %v364
    %368 = vrot.lane.b32.xlu0 %v366, 16
    %v369 = vpop.permute.xlu0 %368
    %v371 = vadd.f32 %v361, %v369
    %v372 = vtanh.pop %v371
    %374 = vrot.lane.b32.xlu0 %v372, 32
    %v375 = vpop.permute.xlu0 %374
    %v377 = vmul.f32 %v359, %v375
    %v378 = vpack.c.bf16 %v377, %v377
    %v380 = vunpack.c.l.b16 %v378
    %v381 = vpack.c.b16 %v380, %v380
    %382 = vrot.lane.b32.xlu0 %v381, 80
    %v383 = vpop.permute.xlu0 %382
    %vm385 = vcmask 125952
    %386 = vst.msk [vmem:[#allocation4] sm:$0xf] %vm385, %v383
    %s387 = scalar_lea.vmem [#allocation3], 28
    %v388 = vld [vmem:[%s387] sm:$0xf]
    %v389 = vunpack.c.l.bf16 %v388
    %v392 = vunpack.c.l.b16 %v299
    %v393 = vunpack.c.l.b16 %v300
    %v394 = vpack.c.b16 %v393, %v392
    %396 = vmatprep.subr.bf16.mxu0 0
    %397 = vmatpush1.bf16.msra.mxu0 0
    %398 = vmatprep.subr.bf16.mxu0 0
    %399 = vmatpush1.bf16.msra.mxu0 0
    %400 = vmatprep.subr.bf16.mxu0 0
    %401 = vmatpush1.bf16.msra.mxu0 0
    %402 = vmatprep.subr.bf16.mxu0 0
    %403 = vmatpush1.bf16.msra.mxu0 0
    %404 = vmatprep.subr.bf16.mxu0 0
    %405 = vmatpush1.bf16.msra.mxu0 0
    %406 = vmatprep.subr.bf16.mxu0 0
    %407 = vmatpush1.bf16.msra.mxu0 0
    %408 = vmatprep.subr.bf16.mxu0 0
    %409 = vmatpush1.bf16.msra.mxu0 0
    %410 = vmatprep.subr.bf16.mxu0 0
    %411 = vmatpush1.bf16.msra.mxu0 %v394
    %412 = vmatprep.subr.bf16.mxu0 0
    %413 = vmatpush2.bf16.msra.mxu0 0
    %414 = vmatprep.subr.bf16.mxu0 0
    %415 = vmatpush2.bf16.msra.mxu0 0
    %416 = vmatprep.subr.bf16.mxu0 0
    %417 = vmatpush2.bf16.msra.mxu0 0
    %418 = vmatprep.subr.bf16.mxu0 0
    %419 = vmatpush2.bf16.msra.mxu0 0
    %420 = vmatprep.subr.bf16.mxu0 0
    %421 = vmatpush2.bf16.msra.mxu0 0
    %422 = vmatprep.subr.bf16.mxu0 0
    %423 = vmatpush2.bf16.msra.mxu0 0
    %424 = vmatprep.subr.bf16.mxu0 0
    %425 = vmatpush2.bf16.msra.mxu0 0
    %426 = vmatprep.subr.bf16.mxu0 0
    %427 = vmatpush2.bf16.msra.mxu0 0
    %428 = vmatprep.mubr.bf16.mxu0 0
    %429 = vmatmul.mubr.bf16.gmra.mxu0 %v311
    %v430 = vpop.f32.mrf.mxu0
    %v431 = vadd.f32 0.0, %v430
    %v432 = vpop.f32.mrf.mxu0
    %v433 = vpop.f32.mrf.mxu0
    %v434 = vpop.f32.mrf.mxu0
    %435 = vdwg.mxu0
    %v436 = vadd.f32 %v389, %v431
    %v437 = vxor.u32 %v436, 2147483648
    %v438 = vmul.f32 %v437, 1.442695
    %v439 = vpow.pop %v438
    %v440 = vadd.f32 %v439, 1.0
    %v441 = vrcp.pop %v440
    %v442 = vmul.f32 1.0, %v441
    %v443 = vtanh.pop %v436
    %v444 = vmul.f32 %v442, 0.0
    %446 = vrot.lane.b32.xlu0 %v443, 96
    %v447 = vpop.permute.xlu0 %446
    %v449 = vmul.f32 %v442, %v447
    %451 = vrot.lane.b32.xlu0 %v449, 16
    %v452 = vpop.permute.xlu0 %451
    %v454 = vadd.f32 %v444, %v452
    %v455 = vtanh.pop %v454
    %457 = vrot.lane.b32.xlu0 %v455, 32
    %v458 = vpop.permute.xlu0 %457
    %v460 = vmul.f32 %v442, %v458
    %s461 = scalar_lea.vmem %s1, 56
    %v462 = vld [vmem:[%s461] sm:$0xff]
    %vm463 = vcmp.gt.f32.partialorder %v462, 0.0
    %v464 = vsel %vm463, 1, 0
    %465 = vset.pattern.permute.xlu0 0
    %466 = vperm.xlu0 %465, %v464
    %v467 = vpop.permute.xlu0 %466
    %vm468 = vcmp.eq.s32.totalorder %v467, 1
    %v469 = vsel %vm468, %v460, 0.0
    %v470 = vsel %vm468, %v454, 0.0
    %v471 = vpack.c.bf16 %v469, %v469
    %v473 = vunpack.c.l.b16 %v471
    %v474 = vpack.c.b16 %v473, %v473
    %475 = vrot.lane.b32.xlu0 %v474, 96
    %v476 = vpop.permute.xlu0 %475
    %s478 = scalar_lea.vmem [#allocation4], 28
    %vm479 = vcmask 257152
    %480 = vst.msk [vmem:[%s478] sm:$0xf] %vm479, %v476
    %s481 = scalar_lea.vmem [#allocation2], 4
    %v482 = vld [vmem:[%s481] sm:$0xf]
    %v483 = vunpack.c.l.bf16 %v482
    %484 = vrot.lane.b32.xlu0 %v378, 80
    %v485 = vpop.permute.xlu0 %484
    %v487 = vsel %vm309, %v485, 0
    %489 = vmatprep.subr.bf16.mxu0 0
    %490 = vmatpush1.bf16.msra.mxu0 0
    %491 = vmatprep.subr.bf16.mxu0 0
    %492 = vmatpush1.bf16.msra.mxu0 0
    %493 = vmatprep.subr.bf16.mxu0 0
    %494 = vmatpush1.bf16.msra.mxu0 0
    %495 = vmatprep.subr.bf16.mxu0 0
    %496 = vmatpush1.bf16.msra.mxu0 0
    %497 = vmatprep.subr.bf16.mxu0 0
    %498 = vmatpush1.bf16.msra.mxu0 0
    %499 = vmatprep.subr.bf16.mxu0 0
    %500 = vmatpush1.bf16.msra.mxu0 0
    %501 = vmatprep.subr.bf16.mxu0 0
    %502 = vmatpush1.bf16.msra.mxu0 0
    %503 = vmatprep.subr.bf16.mxu0 0
    %504 = vmatpush1.bf16.msra.mxu0 %v307
    %505 = vmatprep.subr.bf16.mxu0 0
    %506 = vmatpush2.bf16.msra.mxu0 0
    %507 = vmatprep.subr.bf16.mxu0 0
    %508 = vmatpush2.bf16.msra.mxu0 0
    %509 = vmatprep.subr.bf16.mxu0 0
    %510 = vmatpush2.bf16.msra.mxu0 0
    %511 = vmatprep.subr.bf16.mxu0 0
    %512 = vmatpush2.bf16.msra.mxu0 0
    %513 = vmatprep.subr.bf16.mxu0 0
    %514 = vmatpush2.bf16.msra.mxu0 0
    %515 = vmatprep.subr.bf16.mxu0 0
    %516 = vmatpush2.bf16.msra.mxu0 0
    %517 = vmatprep.subr.bf16.mxu0 0
    %518 = vmatpush2.bf16.msra.mxu0 0
    %519 = vmatprep.subr.bf16.mxu0 0
    %520 = vmatpush2.bf16.msra.mxu0 0
    %521 = vmatprep.mubr.bf16.mxu0 0
    %522 = vmatmul.mubr.bf16.gmra.mxu0 %v487
    %v523 = vpop.f32.mrf.mxu0
    %v524 = vadd.f32 0.0, %v523
    %v525 = vpop.f32.mrf.mxu0
    %v526 = vpop.f32.mrf.mxu0
    %v527 = vpop.f32.mrf.mxu0
    %528 = vdwg.mxu0
    %v529 = vadd.f32 %v483, %v524
    %v530 = vxor.u32 %v529, 2147483648
    %v531 = vmul.f32 %v530, 1.442695
    %v532 = vpow.pop %v531
    %v533 = vadd.f32 %v532, 1.0
    %v534 = vrcp.pop %v533
    %v535 = vmul.f32 1.0, %v534
    %v536 = vtanh.pop %v529
    %v537 = vmul.f32 %v535, %v371
    %539 = vrot.lane.b32.xlu0 %v536, 96
    %v540 = vpop.permute.xlu0 %539
    %v542 = vmul.f32 %v535, %v540
    %544 = vrot.lane.b32.xlu0 %v542, 16
    %v545 = vpop.permute.xlu0 %544
    %v547 = vadd.f32 %v537, %v545
    %v548 = vtanh.pop %v547
    %550 = vrot.lane.b32.xlu0 %v548, 32
    %v551 = vpop.permute.xlu0 %550
    %v553 = vmul.f32 %v535, %v551
    %v554 = vpack.c.bf16 %v553, %v553
    %v556 = vunpack.c.l.b16 %v554
    %v557 = vpack.c.b16 %v556, %v556
    %558 = vrot.lane.b32.xlu0 %v557, 80
    %v559 = vpop.permute.xlu0 %558
    %s561 = scalar_lea.vmem [#allocation4], 4
    %562 = vst.msk [vmem:[%s561] sm:$0xf] %vm385, %v559
    %s563 = scalar_lea.vmem [#allocation3], 24
    %v564 = vld [vmem:[%s563] sm:$0xf]
    %v565 = vunpack.c.l.bf16 %v564
    %566 = vrot.lane.b32.xlu0 %v471, 80
    %v567 = vpop.permute.xlu0 %566
    %v569 = vsel %vm309, %v567, 0
    %571 = vmatprep.subr.bf16.mxu0 0
    %572 = vmatpush1.bf16.msra.mxu0 0
    %573 = vmatprep.subr.bf16.mxu0 0
    %574 = vmatpush1.bf16.msra.mxu0 0
    %575 = vmatprep.subr.bf16.mxu0 0
    %576 = vmatpush1.bf16.msra.mxu0 0
    %577 = vmatprep.subr.bf16.mxu0 0
    %578 = vmatpush1.bf16.msra.mxu0 0
    %579 = vmatprep.subr.bf16.mxu0 0
    %580 = vmatpush1.bf16.msra.mxu0 0
    %581 = vmatprep.subr.bf16.mxu0 0
    %582 = vmatpush1.bf16.msra.mxu0 0
    %583 = vmatprep.subr.bf16.mxu0 0
    %584 = vmatpush1.bf16.msra.mxu0 0
    %585 = vmatprep.subr.bf16.mxu0 0
    %586 = vmatpush1.bf16.msra.mxu0 %v394
    %587 = vmatprep.subr.bf16.mxu0 0
    %588 = vmatpush2.bf16.msra.mxu0 0
    %589 = vmatprep.subr.bf16.mxu0 0
    %590 = vmatpush2.bf16.msra.mxu0 0
    %591 = vmatprep.subr.bf16.mxu0 0
    %592 = vmatpush2.bf16.msra.mxu0 0
    %593 = vmatprep.subr.bf16.mxu0 0
    %594 = vmatpush2.bf16.msra.mxu0 0
    %595 = vmatprep.subr.bf16.mxu0 0
    %596 = vmatpush2.bf16.msra.mxu0 0
    %597 = vmatprep.subr.bf16.mxu0 0
    %598 = vmatpush2.bf16.msra.mxu0 0
    %599 = vmatprep.subr.bf16.mxu0 0
    %600 = vmatpush2.bf16.msra.mxu0 0
    %601 = vmatprep.subr.bf16.mxu0 0
    %602 = vmatpush2.bf16.msra.mxu0 0
    %603 = vmatprep.mubr.bf16.mxu0 0
    %604 = vmatmul.mubr.bf16.gmra.mxu0 %v569
    %v605 = vpop.f32.mrf.mxu0
    %v606 = vadd.f32 0.0, %v605
    %v607 = vpop.f32.mrf.mxu0
    %v608 = vpop.f32.mrf.mxu0
    %v609 = vpop.f32.mrf.mxu0
    %610 = vdwg.mxu0
    %v611 = vadd.f32 %v565, %v606
    %v612 = vxor.u32 %v611, 2147483648
    %v613 = vmul.f32 %v612, 1.442695
    %v614 = vpow.pop %v613
    %v615 = vadd.f32 %v614, 1.0
    %v616 = vrcp.pop %v615
    %v617 = vmul.f32 1.0, %v616
    %v618 = vtanh.pop %v611
    %v619 = vmul.f32 %v617, %v470
    %621 = vrot.lane.b32.xlu0 %v618, 96
    %v622 = vpop.permute.xlu0 %621
    %v624 = vmul.f32 %v617, %v622
    %626 = vrot.lane.b32.xlu0 %v624, 16
    %v627 = vpop.permute.xlu0 %626
    %v629 = vadd.f32 %v619, %v627
    %v630 = vtanh.pop %v629
    %632 = vrot.lane.b32.xlu0 %v630, 32
    %v633 = vpop.permute.xlu0 %632
    %v635 = vmul.f32 %v617, %v633
    %s636 = scalar_lea.vmem %s1, 48
    %v637 = vld [vmem:[%s636] sm:$0xff]
    %vm638 = vcmp.gt.f32.partialorder %v637, 0.0
    %v639 = vsel %vm638, 1, 0
    %640 = vset.pattern.permute.xlu0 0
    %641 = vperm.xlu0 %640, %v639
    %v642 = vpop.permute.xlu0 %641
    %vm643 = vcmp.eq.s32.totalorder %v642, 1
    %v644 = vsel %vm643, %v635, 0.0
    %v645 = vsel %vm643, %v629, 0.0
    %v646 = vpack.c.bf16 %v644, %v644
    %v648 = vunpack.c.l.b16 %v646
    %v649 = vpack.c.b16 %v648, %v648
    %650 = vrot.lane.b32.xlu0 %v649, 96
    %v651 = vpop.permute.xlu0 %650
    %s653 = scalar_lea.vmem [#allocation4], 24
    %654 = vst.msk [vmem:[%s653] sm:$0xf] %vm479, %v651
    %s655 = scalar_lea.vmem [#allocation2], 8
    %v656 = vld [vmem:[%s655] sm:$0xf]
    %v657 = vunpack.c.l.bf16 %v656
    %658 = vrot.lane.b32.xlu0 %v554, 80
    %v659 = vpop.permute.xlu0 %658
    %v661 = vsel %vm309, %v659, 0
    %663 = vmatprep.subr.bf16.mxu0 0
    %664 = vmatpush1.bf16.msra.mxu0 0
    %665 = vmatprep.subr.bf16.mxu0 0
    %666 = vmatpush1.bf16.msra.mxu0 0
    %667 = vmatprep.subr.bf16.mxu0 0
    %668 = vmatpush1.bf16.msra.mxu0 0
    %669 = vmatprep.subr.bf16.mxu0 0
    %670 = vmatpush1.bf16.msra.mxu0 0
    %671 = vmatprep.subr.bf16.mxu0 0
    %672 = vmatpush1.bf16.msra.mxu0 0
    %673 = vmatprep.subr.bf16.mxu0 0
    %674 = vmatpush1.bf16.msra.mxu0 0
    %675 = vmatprep.subr.bf16.mxu0 0
    %676 = vmatpush1.bf16.msra.mxu0 0
    %677 = vmatprep.subr.bf16.mxu0 0
    %678 = vmatpush1.bf16.msra.mxu0 %v307
    %679 = vmatprep.subr.bf16.mxu0 0
    %680 = vmatpush2.bf16.msra.mxu0 0
    %681 = vmatprep.subr.bf16.mxu0 0
    %682 = vmatpush2.bf16.msra.mxu0 0
    %683 = vmatprep.subr.bf16.mxu0 0
    %684 = vmatpush2.bf16.msra.mxu0 0
    %685 = vmatprep.subr.bf16.mxu0 0
    %686 = vmatpush2.bf16.msra.mxu0 0
    %687 = vmatprep.subr.bf16.mxu0 0
    %688 = vmatpush2.bf16.msra.mxu0 0
    %689 = vmatprep.subr.bf16.mxu0 0
    %690 = vmatpush2.bf16.msra.mxu0 0
    %691 = vmatprep.subr.bf16.mxu0 0
    %692 = vmatpush2.bf16.msra.mxu0 0
    %693 = vmatprep.subr.bf16.mxu0 0
    %694 = vmatpush2.bf16.msra.mxu0 0
    %695 = vmatprep.mubr.bf16.mxu0 0
    %696 = vmatmul.mubr.bf16.gmra.mxu0 %v661
    %v697 = vpop.f32.mrf.mxu0
    %v698 = vadd.f32 0.0, %v697
    %v699 = vpop.f32.mrf.mxu0
    %v700 = vpop.f32.mrf.mxu0
    %v701 = vpop.f32.mrf.mxu0
    %702 = vdwg.mxu0
    %v703 = vadd.f32 %v657, %v698
    %v704 = vxor.u32 %v703, 2147483648
    %v705 = vmul.f32 %v704, 1.442695
    %v706 = vpow.pop %v705
    %v707 = vadd.f32 %v706, 1.0
    %v708 = vrcp.pop %v707
    %v709 = vmul.f32 1.0, %v708
    %v710 = vtanh.pop %v703
    %v711 = vmul.f32 %v709, %v547
    %713 = vrot.lane.b32.xlu0 %v710, 96
    %v714 = vpop.permute.xlu0 %713
    %v716 = vmul.f32 %v709, %v714
    %718 = vrot.lane.b32.xlu0 %v716, 16
    %v719 = vpop.permute.xlu0 %718
    %v721 = vadd.f32 %v711, %v719
    %v722 = vtanh.pop %v721
    %724 = vrot.lane.b32.xlu0 %v722, 32
    %v725 = vpop.permute.xlu0 %724
    %v727 = vmul.f32 %v709, %v725
    %v728 = vpack.c.bf16 %v727, %v727
    %v730 = vunpack.c.l.b16 %v728
    %v731 = vpack.c.b16 %v730, %v730
    %732 = vrot.lane.b32.xlu0 %v731, 80
    %v733 = vpop.permute.xlu0 %732
    %s735 = scalar_lea.vmem [#allocation4], 8
    %736 = vst.msk [vmem:[%s735] sm:$0xf] %vm385, %v733
    %s737 = scalar_lea.vmem [#allocation3], 20
    %v738 = vld [vmem:[%s737] sm:$0xf]
    %v739 = vunpack.c.l.bf16 %v738
    %740 = vrot.lane.b32.xlu0 %v646, 80
    %v741 = vpop.permute.xlu0 %740
    %v743 = vsel %vm309, %v741, 0
    %745 = vmatprep.subr.bf16.mxu0 0
    %746 = vmatpush1.bf16.msra.mxu0 0
    %747 = vmatprep.subr.bf16.mxu0 0
    %748 = vmatpush1.bf16.msra.mxu0 0
    %749 = vmatprep.subr.bf16.mxu0 0
    %750 = vmatpush1.bf16.msra.mxu0 0
    %751 = vmatprep.subr.bf16.mxu0 0
    %752 = vmatpush1.bf16.msra.mxu0 0
    %753 = vmatprep.subr.bf16.mxu0 0
    %754 = vmatpush1.bf16.msra.mxu0 0
    %755 = vmatprep.subr.bf16.mxu0 0
    %756 = vmatpush1.bf16.msra.mxu0 0
    %757 = vmatprep.subr.bf16.mxu0 0
    %758 = vmatpush1.bf16.msra.mxu0 0
    %759 = vmatprep.subr.bf16.mxu0 0
    %760 = vmatpush1.bf16.msra.mxu0 %v394
    %761 = vmatprep.subr.bf16.mxu0 0
    %762 = vmatpush2.bf16.msra.mxu0 0
    %763 = vmatprep.subr.bf16.mxu0 0
    %764 = vmatpush2.bf16.msra.mxu0 0
    %765 = vmatprep.subr.bf16.mxu0 0
    %766 = vmatpush2.bf16.msra.mxu0 0
    %767 = vmatprep.subr.bf16.mxu0 0
    %768 = vmatpush2.bf16.msra.mxu0 0
    %769 = vmatprep.subr.bf16.mxu0 0
    %770 = vmatpush2.bf16.msra.mxu0 0
    %771 = vmatprep.subr.bf16.mxu0 0
    %772 = vmatpush2.bf16.msra.mxu0 0
    %773 = vmatprep.subr.bf16.mxu0 0
    %774 = vmatpush2.bf16.msra.mxu0 0
    %775 = vmatprep.subr.bf16.mxu0 0
    %776 = vmatpush2.bf16.msra.mxu0 0
    %777 = vmatprep.mubr.bf16.mxu0 0
    %778 = vmatmul.mubr.bf16.gmra.mxu0 %v743
    %v779 = vpop.f32.mrf.mxu0
    %v780 = vadd.f32 0.0, %v779
    %v781 = vpop.f32.mrf.mxu0
    %v782 = vpop.f32.mrf.mxu0
    %v783 = vpop.f32.mrf.mxu0
    %784 = vdwg.mxu0
    %v785 = vadd.f32 %v739, %v780
    %v786 = vxor.u32 %v785, 2147483648
    %v787 = vmul.f32 %v786, 1.442695
    %v788 = vpow.pop %v787
    %v789 = vadd.f32 %v788, 1.0
    %v790 = vrcp.pop %v789
    %v791 = vmul.f32 1.0, %v790
    %v792 = vtanh.pop %v785
    %v793 = vmul.f32 %v791, %v645
    %795 = vrot.lane.b32.xlu0 %v792, 96
    %v796 = vpop.permute.xlu0 %795
    %v798 = vmul.f32 %v791, %v796
    %800 = vrot.lane.b32.xlu0 %v798, 16
    %v801 = vpop.permute.xlu0 %800
    %v803 = vadd.f32 %v793, %v801
    %v804 = vtanh.pop %v803
    %806 = vrot.lane.b32.xlu0 %v804, 32
    %v807 = vpop.permute.xlu0 %806
    %v809 = vmul.f32 %v791, %v807
    %s810 = scalar_lea.vmem %s1, 40
    %v811 = vld [vmem:[%s810] sm:$0xff]
    %vm812 = vcmp.gt.f32.partialorder %v811, 0.0
    %v813 = vsel %vm812, 1, 0
    %814 = vset.pattern.permute.xlu0 0
    %815 = vperm.xlu0 %814, %v813
    %v816 = vpop.permute.xlu0 %815
    %vm817 = vcmp.eq.s32.totalorder %v816, 1
    %v818 = vsel %vm817, %v809, 0.0
    %v819 = vsel %vm817, %v803, 0.0
    %v820 = vpack.c.bf16 %v818, %v818
    %v822 = vunpack.c.l.b16 %v820
    %v823 = vpack.c.b16 %v822, %v822
    %824 = vrot.lane.b32.xlu0 %v823, 96
    %v825 = vpop.permute.xlu0 %824
    %s827 = scalar_lea.vmem [#allocation4], 20
    %828 = vst.msk [vmem:[%s827] sm:$0xf] %vm479, %v825
    %s829 = scalar_lea.vmem [#allocation2], 12
    %v830 = vld [vmem:[%s829] sm:$0xf]
    %v831 = vunpack.c.l.bf16 %v830
    %832 = vrot.lane.b32.xlu0 %v728, 80
    %v833 = vpop.permute.xlu0 %832
    %v835 = vsel %vm309, %v833, 0
    %837 = vmatprep.subr.bf16.mxu0 0
    %838 = vmatpush1.bf16.msra.mxu0 0
    %839 = vmatprep.subr.bf16.mxu0 0
    %840 = vmatpush1.bf16.msra.mxu0 0
    %841 = vmatprep.subr.bf16.mxu0 0
    %842 = vmatpush1.bf16.msra.mxu0 0
    %843 = vmatprep.subr.bf16.mxu0 0
    %844 = vmatpush1.bf16.msra.mxu0 0
    %845 = vmatprep.subr.bf16.mxu0 0
    %846 = vmatpush1.bf16.msra.mxu0 0
    %847 = vmatprep.subr.bf16.mxu0 0
    %848 = vmatpush1.bf16.msra.mxu0 0
    %849 = vmatprep.subr.bf16.mxu0 0
    %850 = vmatpush1.bf16.msra.mxu0 0
    %851 = vmatprep.subr.bf16.mxu0 0
    %852 = vmatpush1.bf16.msra.mxu0 %v307
    %853 = vmatprep.subr.bf16.mxu0 0
    %854 = vmatpush2.bf16.msra.mxu0 0
    %855 = vmatprep.subr.bf16.mxu0 0
    %856 = vmatpush2.bf16.msra.mxu0 0
    %857 = vmatprep.subr.bf16.mxu0 0
    %858 = vmatpush2.bf16.msra.mxu0 0
    %859 = vmatprep.subr.bf16.mxu0 0
    %860 = vmatpush2.bf16.msra.mxu0 0
    %861 = vmatprep.subr.bf16.mxu0 0
    %862 = vmatpush2.bf16.msra.mxu0 0
    %863 = vmatprep.subr.bf16.mxu0 0
    %864 = vmatpush2.bf16.msra.mxu0 0
    %865 = vmatprep.subr.bf16.mxu0 0
    %866 = vmatpush2.bf16.msra.mxu0 0
    %867 = vmatprep.subr.bf16.mxu0 0
    %868 = vmatpush2.bf16.msra.mxu0 0
    %869 = vmatprep.mubr.bf16.mxu0 0
    %870 = vmatmul.mubr.bf16.gmra.mxu0 %v835
    %v871 = vpop.f32.mrf.mxu0
    %v872 = vadd.f32 0.0, %v871
    %v873 = vpop.f32.mrf.mxu0
    %v874 = vpop.f32.mrf.mxu0
    %v875 = vpop.f32.mrf.mxu0
    %876 = vdwg.mxu0
    %v877 = vadd.f32 %v831, %v872
    %v878 = vxor.u32 %v877, 2147483648
    %v879 = vmul.f32 %v878, 1.442695
    %v880 = vpow.pop %v879
    %v881 = vadd.f32 %v880, 1.0
    %v882 = vrcp.pop %v881
    %v883 = vmul.f32 1.0, %v882
    %v884 = vtanh.pop %v877
    %v885 = vmul.f32 %v883, %v721
    %887 = vrot.lane.b32.xlu0 %v884, 96
    %v888 = vpop.permute.xlu0 %887
    %v890 = vmul.f32 %v883, %v888
    %892 = vrot.lane.b32.xlu0 %v890, 16
    %v893 = vpop.permute.xlu0 %892
    %v895 = vadd.f32 %v885, %v893
    %v896 = vtanh.pop %v895
    %898 = vrot.lane.b32.xlu0 %v896, 32
    %v899 = vpop.permute.xlu0 %898
    %v901 = vmul.f32 %v883, %v899
    %v902 = vpack.c.bf16 %v901, %v901
    %v904 = vunpack.c.l.b16 %v902
    %v905 = vpack.c.b16 %v904, %v904
    %906 = vrot.lane.b32.xlu0 %v905, 80
    %v907 = vpop.permute.xlu0 %906
    %s909 = scalar_lea.vmem [#allocation4], 12
    %910 = vst.msk [vmem:[%s909] sm:$0xf] %vm385, %v907
    %s911 = scalar_lea.vmem [#allocation3], 16
    %v912 = vld [vmem:[%s911] sm:$0xf]
    %v913 = vunpack.c.l.bf16 %v912
    %914 = vrot.lane.b32.xlu0 %v820, 80
    %v915 = vpop.permute.xlu0 %914
    %v917 = vsel %vm309, %v915, 0
    %919 = vmatprep.subr.bf16.mxu0 0
    %920 = vmatpush1.bf16.msra.mxu0 0
    %921 = vmatprep.subr.bf16.mxu0 0
    %922 = vmatpush1.bf16.msra.mxu0 0
    %923 = vmatprep.subr.bf16.mxu0 0
    %924 = vmatpush1.bf16.msra.mxu0 0
    %925 = vmatprep.subr.bf16.mxu0 0
    %926 = vmatpush1.bf16.msra.mxu0 0
    %927 = vmatprep.subr.bf16.mxu0 0
    %928 = vmatpush1.bf16.msra.mxu0 0
    %929 = vmatprep.subr.bf16.mxu0 0
    %930 = vmatpush1.bf16.msra.mxu0 0
    %931 = vmatprep.subr.bf16.mxu0 0
    %932 = vmatpush1.bf16.msra.mxu0 0
    %933 = vmatprep.subr.bf16.mxu0 0
    %934 = vmatpush1.bf16.msra.mxu0 %v394
    %935 = vmatprep.subr.bf16.mxu0 0
    %936 = vmatpush2.bf16.msra.mxu0 0
    %937 = vmatprep.subr.bf16.mxu0 0
    %938 = vmatpush2.bf16.msra.mxu0 0
    %939 = vmatprep.subr.bf16.mxu0 0
    %940 = vmatpush2.bf16.msra.mxu0 0
    %941 = vmatprep.subr.bf16.mxu0 0
    %942 = vmatpush2.bf16.msra.mxu0 0
    %943 = vmatprep.subr.bf16.mxu0 0
    %944 = vmatpush2.bf16.msra.mxu0 0
    %945 = vmatprep.subr.bf16.mxu0 0
    %946 = vmatpush2.bf16.msra.mxu0 0
    %947 = vmatprep.subr.bf16.mxu0 0
    %948 = vmatpush2.bf16.msra.mxu0 0
    %949 = vmatprep.subr.bf16.mxu0 0
    %950 = vmatpush2.bf16.msra.mxu0 0
    %951 = vmatprep.mubr.bf16.mxu0 0
    %952 = vmatmul.mubr.bf16.gmra.mxu0 %v917
    %v953 = vpop.f32.mrf.mxu0
    %v954 = vadd.f32 0.0, %v953
    %v955 = vpop.f32.mrf.mxu0
    %v956 = vpop.f32.mrf.mxu0
    %v957 = vpop.f32.mrf.mxu0
    %958 = vdwg.mxu0
    %v959 = vadd.f32 %v913, %v954
    %v960 = vxor.u32 %v959, 2147483648
    %v961 = vmul.f32 %v960, 1.442695
    %v962 = vpow.pop %v961
    %v963 = vadd.f32 %v962, 1.0
    %v964 = vrcp.pop %v963
    %v965 = vmul.f32 1.0, %v964
    %v966 = vtanh.pop %v959
    %v967 = vmul.f32 %v965, %v819
    %969 = vrot.lane.b32.xlu0 %v966, 96
    %v970 = vpop.permute.xlu0 %969
    %v972 = vmul.f32 %v965, %v970
    %974 = vrot.lane.b32.xlu0 %v972, 16
    %v975 = vpop.permute.xlu0 %974
    %v977 = vadd.f32 %v967, %v975
    %v978 = vtanh.pop %v977
    %980 = vrot.lane.b32.xlu0 %v978, 32
    %v981 = vpop.permute.xlu0 %980
    %v983 = vmul.f32 %v965, %v981
    %s984 = scalar_lea.vmem %s1, 32
    %v985 = vld [vmem:[%s984] sm:$0xff]
    %vm986 = vcmp.gt.f32.partialorder %v985, 0.0
    %v987 = vsel %vm986, 1, 0
    %988 = vset.pattern.permute.xlu0 0
    %989 = vperm.xlu0 %988, %v987
    %v990 = vpop.permute.xlu0 %989
    %vm991 = vcmp.eq.s32.totalorder %v990, 1
    %v992 = vsel %vm991, %v983, 0.0
    %v993 = vsel %vm991, %v977, 0.0
    %v994 = vpack.c.bf16 %v992, %v992
    %v996 = vunpack.c.l.b16 %v994
    %v997 = vpack.c.b16 %v996, %v996
    %998 = vrot.lane.b32.xlu0 %v997, 96
    %v999 = vpop.permute.xlu0 %998
    %s1001 = scalar_lea.vmem [#allocation4], 16
    %1002 = vst.msk [vmem:[%s1001] sm:$0xf] %vm479, %v999
    %s1003 = scalar_lea.vmem [#allocation2], 16
    %v1004 = vld [vmem:[%s1003] sm:$0xf]
    %v1005 = vunpack.c.l.bf16 %v1004
    %1006 = vrot.lane.b32.xlu0 %v902, 80
    %v1007 = vpop.permute.xlu0 %1006
    %v1009 = vsel %vm309, %v1007, 0
    %1011 = vmatprep.subr.bf16.mxu0 0
    %1012 = vmatpush1.bf16.msra.mxu0 0
    %1013 = vmatprep.subr.bf16.mxu0 0
    %1014 = vmatpush1.bf16.msra.mxu0 0
    %1015 = vmatprep.subr.bf16.mxu0 0
    %1016 = vmatpush1.bf16.msra.mxu0 0
    %1017 = vmatprep.subr.bf16.mxu0 0
    %1018 = vmatpush1.bf16.msra.mxu0 0
    %1019 = vmatprep.subr.bf16.mxu0 0
    %1020 = vmatpush1.bf16.msra.mxu0 0
    %1021 = vmatprep.subr.bf16.mxu0 0
    %1022 = vmatpush1.bf16.msra.mxu0 0
    %1023 = vmatprep.subr.bf16.mxu0 0
    %1024 = vmatpush1.bf16.msra.mxu0 0
    %1025 = vmatprep.subr.bf16.mxu0 0
    %1026 = vmatpush1.bf16.msra.mxu0 %v307
    %1027 = vmatprep.subr.bf16.mxu0 0
    %1028 = vmatpush2.bf16.msra.mxu0 0
    %1029 = vmatprep.subr.bf16.mxu0 0
    %1030 = vmatpush2.bf16.msra.mxu0 0
    %1031 = vmatprep.subr.bf16.mxu0 0
    %1032 = vmatpush2.bf16.msra.mxu0 0
    %1033 = vmatprep.subr.bf16.mxu0 0
    %1034 = vmatpush2.bf16.msra.mxu0 0
    %1035 = vmatprep.subr.bf16.mxu0 0
    %1036 = vmatpush2.bf16.msra.mxu0 0
    %1037 = vmatprep.subr.bf16.mxu0 0
    %1038 = vmatpush2.bf16.msra.mxu0 0
    %1039 = vmatprep.subr.bf16.mxu0 0
    %1040 = vmatpush2.bf16.msra.mxu0 0
    %1041 = vmatprep.subr.bf16.mxu0 0
    %1042 = vmatpush2.bf16.msra.mxu0 0
    %1043 = vmatprep.mubr.bf16.mxu0 0
    %1044 = vmatmul.mubr.bf16.gmra.mxu0 %v1009
    %v1045 = vpop.f32.mrf.mxu0
    %v1046 = vadd.f32 0.0, %v1045
    %v1047 = vpop.f32.mrf.mxu0
    %v1048 = vpop.f32.mrf.mxu0
    %v1049 = vpop.f32.mrf.mxu0
    %1050 = vdwg.mxu0
    %v1051 = vadd.f32 %v1005, %v1046
    %v1052 = vxor.u32 %v1051, 2147483648
    %v1053 = vmul.f32 %v1052, 1.442695
    %v1054 = vpow.pop %v1053
    %v1055 = vadd.f32 %v1054, 1.0
    %v1056 = vrcp.pop %v1055
    %v1057 = vmul.f32 1.0, %v1056
    %v1058 = vtanh.pop %v1051
    %v1059 = vmul.f32 %v1057, %v895
    %1061 = vrot.lane.b32.xlu0 %v1058, 96
    %v1062 = vpop.permute.xlu0 %1061
    %v1064 = vmul.f32 %v1057, %v1062
    %1066 = vrot.lane.b32.xlu0 %v1064, 16
    %v1067 = vpop.permute.xlu0 %1066
    %v1069 = vadd.f32 %v1059, %v1067
    %v1070 = vtanh.pop %v1069
    %1072 = vrot.lane.b32.xlu0 %v1070, 32
    %v1073 = vpop.permute.xlu0 %1072
    %v1075 = vmul.f32 %v1057, %v1073
    %v1076 = vpack.c.bf16 %v1075, %v1075
    %v1078 = vunpack.c.l.b16 %v1076
    %v1079 = vpack.c.b16 %v1078, %v1078
    %1080 = vrot.lane.b32.xlu0 %v1079, 80
    %v1081 = vpop.permute.xlu0 %1080
    %1083 = vst.msk [vmem:[%s1001] sm:$0xf] %vm385, %v1081
    %s1084 = scalar_lea.vmem [#allocation3], 12
    %v1085 = vld [vmem:[%s1084] sm:$0xf]
    %v1086 = vunpack.c.l.bf16 %v1085
    %1087 = vrot.lane.b32.xlu0 %v994, 80
    %v1088 = vpop.permute.xlu0 %1087
    %v1090 = vsel %vm309, %v1088, 0
    %1092 = vmatprep.subr.bf16.mxu0 0
    %1093 = vmatpush1.bf16.msra.mxu0 0
    %1094 = vmatprep.subr.bf16.mxu0 0
    %1095 = vmatpush1.bf16.msra.mxu0 0
    %1096 = vmatprep.subr.bf16.mxu0 0
    %1097 = vmatpush1.bf16.msra.mxu0 0
    %1098 = vmatprep.subr.bf16.mxu0 0
    %1099 = vmatpush1.bf16.msra.mxu0 0
    %1100 = vmatprep.subr.bf16.mxu0 0
    %1101 = vmatpush1.bf16.msra.mxu0 0
    %1102 = vmatprep.subr.bf16.mxu0 0
    %1103 = vmatpush1.bf16.msra.mxu0 0
    %1104 = vmatprep.subr.bf16.mxu0 0
    %1105 = vmatpush1.bf16.msra.mxu0 0
    %1106 = vmatprep.subr.bf16.mxu0 0
    %1107 = vmatpush1.bf16.msra.mxu0 %v394
    %1108 = vmatprep.subr.bf16.mxu0 0
    %1109 = vmatpush2.bf16.msra.mxu0 0
    %1110 = vmatprep.subr.bf16.mxu0 0
    %1111 = vmatpush2.bf16.msra.mxu0 0
    %1112 = vmatprep.subr.bf16.mxu0 0
    %1113 = vmatpush2.bf16.msra.mxu0 0
    %1114 = vmatprep.subr.bf16.mxu0 0
    %1115 = vmatpush2.bf16.msra.mxu0 0
    %1116 = vmatprep.subr.bf16.mxu0 0
    %1117 = vmatpush2.bf16.msra.mxu0 0
    %1118 = vmatprep.subr.bf16.mxu0 0
    %1119 = vmatpush2.bf16.msra.mxu0 0
    %1120 = vmatprep.subr.bf16.mxu0 0
    %1121 = vmatpush2.bf16.msra.mxu0 0
    %1122 = vmatprep.subr.bf16.mxu0 0
    %1123 = vmatpush2.bf16.msra.mxu0 0
    %1124 = vmatprep.mubr.bf16.mxu0 0
    %1125 = vmatmul.mubr.bf16.gmra.mxu0 %v1090
    %v1126 = vpop.f32.mrf.mxu0
    %v1127 = vadd.f32 0.0, %v1126
    %v1128 = vpop.f32.mrf.mxu0
    %v1129 = vpop.f32.mrf.mxu0
    %v1130 = vpop.f32.mrf.mxu0
    %1131 = vdwg.mxu0
    %v1132 = vadd.f32 %v1086, %v1127
    %v1133 = vxor.u32 %v1132, 2147483648
    %v1134 = vmul.f32 %v1133, 1.442695
    %v1135 = vpow.pop %v1134
    %v1136 = vadd.f32 %v1135, 1.0
    %v1137 = vrcp.pop %v1136
    %v1138 = vmul.f32 1.0, %v1137
    %v1139 = vtanh.pop %v1132
    %v1140 = vmul.f32 %v1138, %v993
    %1142 = vrot.lane.b32.xlu0 %v1139, 96
    %v1143 = vpop.permute.xlu0 %1142
    %v1145 = vmul.f32 %v1138, %v1143
    %1147 = vrot.lane.b32.xlu0 %v1145, 16
    %v1148 = vpop.permute.xlu0 %1147
    %v1150 = vadd.f32 %v1140, %v1148
    %v1151 = vtanh.pop %v1150
    %1153 = vrot.lane.b32.xlu0 %v1151, 32
    %v1154 = vpop.permute.xlu0 %1153
    %v1156 = vmul.f32 %v1138, %v1154
    %s1157 = scalar_lea.vmem %s1, 24
    %v1158 = vld [vmem:[%s1157] sm:$0xff]
    %vm1159 = vcmp.gt.f32.partialorder %v1158, 0.0
    %v1160 = vsel %vm1159, 1, 0
    %1161 = vset.pattern.permute.xlu0 0
    %1162 = vperm.xlu0 %1161, %v1160
    %v1163 = vpop.permute.xlu0 %1162
    %vm1164 = vcmp.eq.s32.totalorder %v1163, 1
    %v1165 = vsel %vm1164, %v1156, 0.0
    %v1166 = vsel %vm1164, %v1150, 0.0
    %v1167 = vpack.c.bf16 %v1165, %v1165
    %v1169 = vunpack.c.l.b16 %v1167
    %v1170 = vpack.c.b16 %v1169, %v1169
    %1171 = vrot.lane.b32.xlu0 %v1170, 96
    %v1172 = vpop.permute.xlu0 %1171
    %1174 = vst.msk [vmem:[%s909] sm:$0xf] %vm479, %v1172
    %s1175 = scalar_lea.vmem [#allocation2], 20
    %v1176 = vld [vmem:[%s1175] sm:$0xf]
    %v1177 = vunpack.c.l.bf16 %v1176
    %1178 = vrot.lane.b32.xlu0 %v1076, 80
    %v1179 = vpop.permute.xlu0 %1178
    %v1181 = vsel %vm309, %v1179, 0
    %1183 = vmatprep.subr.bf16.mxu0 0
    %1184 = vmatpush1.bf16.msra.mxu0 0
    %1185 = vmatprep.subr.bf16.mxu0 0
    %1186 = vmatpush1.bf16.msra.mxu0 0
    %1187 = vmatprep.subr.bf16.mxu0 0
    %1188 = vmatpush1.bf16.msra.mxu0 0
    %1189 = vmatprep.subr.bf16.mxu0 0
    %1190 = vmatpush1.bf16.msra.mxu0 0
    %1191 = vmatprep.subr.bf16.mxu0 0
    %1192 = vmatpush1.bf16.msra.mxu0 0
    %1193 = vmatprep.subr.bf16.mxu0 0
    %1194 = vmatpush1.bf16.msra.mxu0 0
    %1195 = vmatprep.subr.bf16.mxu0 0
    %1196 = vmatpush1.bf16.msra.mxu0 0
    %1197 = vmatprep.subr.bf16.mxu0 0
    %1198 = vmatpush1.bf16.msra.mxu0 %v307
    %1199 = vmatprep.subr.bf16.mxu0 0
    %1200 = vmatpush2.bf16.msra.mxu0 0
    %1201 = vmatprep.subr.bf16.mxu0 0
    %1202 = vmatpush2.bf16.msra.mxu0 0
    %1203 = vmatprep.subr.bf16.mxu0 0
    %1204 = vmatpush2.bf16.msra.mxu0 0
    %1205 = vmatprep.subr.bf16.mxu0 0
    %1206 = vmatpush2.bf16.msra.mxu0 0
    %1207 = vmatprep.subr.bf16.mxu0 0
    %1208 = vmatpush2.bf16.msra.mxu0 0
    %1209 = vmatprep.subr.bf16.mxu0 0
    %1210 = vmatpush2.bf16.msra.mxu0 0
    %1211 = vmatprep.subr.bf16.mxu0 0
    %1212 = vmatpush2.bf16.msra.mxu0 0
    %1213 = vmatprep.subr.bf16.mxu0 0
    %1214 = vmatpush2.bf16.msra.mxu0 0
    %1215 = vmatprep.mubr.bf16.mxu0 0
    %1216 = vmatmul.mubr.bf16.gmra.mxu0 %v1181
    %v1217 = vpop.f32.mrf.mxu0
    %v1218 = vadd.f32 0.0, %v1217
    %v1219 = vpop.f32.mrf.mxu0
    %v1220 = vpop.f32.mrf.mxu0
    %v1221 = vpop.f32.mrf.mxu0
    %1222 = vdwg.mxu0
    %v1223 = vadd.f32 %v1177, %v1218
    %v1224 = vxor.u32 %v1223, 2147483648
    %v1225 = vmul.f32 %v1224, 1.442695
    %v1226 = vpow.pop %v1225
    %v1227 = vadd.f32 %v1226, 1.0
    %v1228 = vrcp.pop %v1227
    %v1229 = vmul.f32 1.0, %v1228
    %v1230 = vtanh.pop %v1223
    %v1231 = vmul.f32 %v1229, %v1069
    %1233 = vrot.lane.b32.xlu0 %v1230, 96
    %v1234 = vpop.permute.xlu0 %1233
    %v1236 = vmul.f32 %v1229, %v1234
    %1238 = vrot.lane.b32.xlu0 %v1236, 16
    %v1239 = vpop.permute.xlu0 %1238
    %v1241 = vadd.f32 %v1231, %v1239
    %v1242 = vtanh.pop %v1241
    %1244 = vrot.lane.b32.xlu0 %v1242, 32
    %v1245 = vpop.permute.xlu0 %1244
    %v1247 = vmul.f32 %v1229, %v1245
    %v1248 = vpack.c.bf16 %v1247, %v1247
    %v1250 = vunpack.c.l.b16 %v1248
    %v1251 = vpack.c.b16 %v1250, %v1250
    %1252 = vrot.lane.b32.xlu0 %v1251, 80
    %v1253 = vpop.permute.xlu0 %1252
    %1255 = vst.msk [vmem:[%s827] sm:$0xf] %vm385, %v1253
    %s1256 = scalar_lea.vmem [#allocation3], 8
    %v1257 = vld [vmem:[%s1256] sm:$0xf]
    %v1258 = vunpack.c.l.bf16 %v1257
    %1259 = vrot.lane.b32.xlu0 %v1167, 80
    %v1260 = vpop.permute.xlu0 %1259
    %v1262 = vsel %vm309, %v1260, 0
    %1264 = vmatprep.subr.bf16.mxu0 0
    %1265 = vmatpush1.bf16.msra.mxu0 0
    %1266 = vmatprep.subr.bf16.mxu0 0
    %1267 = vmatpush1.bf16.msra.mxu0 0
    %1268 = vmatprep.subr.bf16.mxu0 0
    %1269 = vmatpush1.bf16.msra.mxu0 0
    %1270 = vmatprep.subr.bf16.mxu0 0
    %1271 = vmatpush1.bf16.msra.mxu0 0
    %1272 = vmatprep.subr.bf16.mxu0 0
    %1273 = vmatpush1.bf16.msra.mxu0 0
    %1274 = vmatprep.subr.bf16.mxu0 0
    %1275 = vmatpush1.bf16.msra.mxu0 0
    %1276 = vmatprep.subr.bf16.mxu0 0
    %1277 = vmatpush1.bf16.msra.mxu0 0
    %1278 = vmatprep.subr.bf16.mxu0 0
    %1279 = vmatpush1.bf16.msra.mxu0 %v394
    %1280 = vmatprep.subr.bf16.mxu0 0
    %1281 = vmatpush2.bf16.msra.mxu0 0
    %1282 = vmatprep.subr.bf16.mxu0 0
    %1283 = vmatpush2.bf16.msra.mxu0 0
    %1284 = vmatprep.subr.bf16.mxu0 0
    %1285 = vmatpush2.bf16.msra.mxu0 0
    %1286 = vmatprep.subr.bf16.mxu0 0
    %1287 = vmatpush2.bf16.msra.mxu0 0
    %1288 = vmatprep.subr.bf16.mxu0 0
    %1289 = vmatpush2.bf16.msra.mxu0 0
    %1290 = vmatprep.subr.bf16.mxu0 0
    %1291 = vmatpush2.bf16.msra.mxu0 0
    %1292 = vmatprep.subr.bf16.mxu0 0
    %1293 = vmatpush2.bf16.msra.mxu0 0
    %1294 = vmatprep.subr.bf16.mxu0 0
    %1295 = vmatpush2.bf16.msra.mxu0 0
    %1296 = vmatprep.mubr.bf16.mxu0 0
    %1297 = vmatmul.mubr.bf16.gmra.mxu0 %v1262
    %v1298 = vpop.f32.mrf.mxu0
    %v1299 = vadd.f32 0.0, %v1298
    %v1300 = vpop.f32.mrf.mxu0
    %v1301 = vpop.f32.mrf.mxu0
    %v1302 = vpop.f32.mrf.mxu0
    %1303 = vdwg.mxu0
    %v1304 = vadd.f32 %v1258, %v1299
    %v1305 = vxor.u32 %v1304, 2147483648
    %v1306 = vmul.f32 %v1305, 1.442695
    %v1307 = vpow.pop %v1306
    %v1308 = vadd.f32 %v1307, 1.0
    %v1309 = vrcp.pop %v1308
    %v1310 = vmul.f32 1.0, %v1309
    %v1311 = vtanh.pop %v1304
    %v1312 = vmul.f32 %v1310, %v1166
    %1314 = vrot.lane.b32.xlu0 %v1311, 96
    %v1315 = vpop.permute.xlu0 %1314
    %v1317 = vmul.f32 %v1310, %v1315
    %1319 = vrot.lane.b32.xlu0 %v1317, 16
    %v1320 = vpop.permute.xlu0 %1319
    %v1322 = vadd.f32 %v1312, %v1320
    %v1323 = vtanh.pop %v1322
    %1325 = vrot.lane.b32.xlu0 %v1323, 32
    %v1326 = vpop.permute.xlu0 %1325
    %v1328 = vmul.f32 %v1310, %v1326
    %s1329 = scalar_lea.vmem %s1, 16
    %v1330 = vld [vmem:[%s1329] sm:$0xff]
    %vm1331 = vcmp.gt.f32.partialorder %v1330, 0.0
    %v1332 = vsel %vm1331, 1, 0
    %1333 = vset.pattern.permute.xlu0 0
    %1334 = vperm.xlu0 %1333, %v1332
    %v1335 = vpop.permute.xlu0 %1334
    %vm1336 = vcmp.eq.s32.totalorder %v1335, 1
    %v1337 = vsel %vm1336, %v1328, 0.0
    %v1338 = vsel %vm1336, %v1322, 0.0
    %v1339 = vpack.c.bf16 %v1337, %v1337
    %v1341 = vunpack.c.l.b16 %v1339
    %v1342 = vpack.c.b16 %v1341, %v1341
    %1343 = vrot.lane.b32.xlu0 %v1342, 96
    %v1344 = vpop.permute.xlu0 %1343
    %1346 = vst.msk [vmem:[%s735] sm:$0xf] %vm479, %v1344
    %s1347 = scalar_lea.vmem [#allocation2], 24
    %v1348 = vld [vmem:[%s1347] sm:$0xf]
    %v1349 = vunpack.c.l.bf16 %v1348
    %1350 = vrot.lane.b32.xlu0 %v1248, 80
    %v1351 = vpop.permute.xlu0 %1350
    %v1353 = vsel %vm309, %v1351, 0
    %1355 = vmatprep.subr.bf16.mxu0 0
    %1356 = vmatpush1.bf16.msra.mxu0 0
    %1357 = vmatprep.subr.bf16.mxu0 0
    %1358 = vmatpush1.bf16.msra.mxu0 0
    %1359 = vmatprep.subr.bf16.mxu0 0
    %1360 = vmatpush1.bf16.msra.mxu0 0
    %1361 = vmatprep.subr.bf16.mxu0 0
    %1362 = vmatpush1.bf16.msra.mxu0 0
    %1363 = vmatprep.subr.bf16.mxu0 0
    %1364 = vmatpush1.bf16.msra.mxu0 0
    %1365 = vmatprep.subr.bf16.mxu0 0
    %1366 = vmatpush1.bf16.msra.mxu0 0
    %1367 = vmatprep.subr.bf16.mxu0 0
    %1368 = vmatpush1.bf16.msra.mxu0 0
    %1369 = vmatprep.subr.bf16.mxu0 0
    %1370 = vmatpush1.bf16.msra.mxu0 %v307
    %1371 = vmatprep.subr.bf16.mxu0 0
    %1372 = vmatpush2.bf16.msra.mxu0 0
    %1373 = vmatprep.subr.bf16.mxu0 0
    %1374 = vmatpush2.bf16.msra.mxu0 0
    %1375 = vmatprep.subr.bf16.mxu0 0
    %1376 = vmatpush2.bf16.msra.mxu0 0
    %1377 = vmatprep.subr.bf16.mxu0 0
    %1378 = vmatpush2.bf16.msra.mxu0 0
    %1379 = vmatprep.subr.bf16.mxu0 0
    %1380 = vmatpush2.bf16.msra.mxu0 0
    %1381 = vmatprep.subr.bf16.mxu0 0
    %1382 = vmatpush2.bf16.msra.mxu0 0
    %1383 = vmatprep.subr.bf16.mxu0 0
    %1384 = vmatpush2.bf16.msra.mxu0 0
    %1385 = vmatprep.subr.bf16.mxu0 0
    %1386 = vmatpush2.bf16.msra.mxu0 0
    %1387 = vmatprep.mubr.bf16.mxu0 0
    %1388 = vmatmul.mubr.bf16.gmra.mxu0 %v1353
    %v1389 = vpop.f32.mrf.mxu0
    %v1390 = vadd.f32 0.0, %v1389
    %v1391 = vpop.f32.mrf.mxu0
    %v1392 = vpop.f32.mrf.mxu0
    %v1393 = vpop.f32.mrf.mxu0
    %1394 = vdwg.mxu0
    %v1395 = vadd.f32 %v1349, %v1390
    %v1396 = vxor.u32 %v1395, 2147483648
    %v1397 = vmul.f32 %v1396, 1.442695
    %v1398 = vpow.pop %v1397
    %v1399 = vadd.f32 %v1398, 1.0
    %v1400 = vrcp.pop %v1399
    %v1401 = vmul.f32 1.0, %v1400
    %v1402 = vtanh.pop %v1395
    %v1403 = vmul.f32 %v1401, %v1241
    %1405 = vrot.lane.b32.xlu0 %v1402, 96
    %v1406 = vpop.permute.xlu0 %1405
    %v1408 = vmul.f32 %v1401, %v1406
    %1410 = vrot.lane.b32.xlu0 %v1408, 16
    %v1411 = vpop.permute.xlu0 %1410
    %v1413 = vadd.f32 %v1403, %v1411
    %v1414 = vtanh.pop %v1413
    %1416 = vrot.lane.b32.xlu0 %v1414, 32
    %v1417 = vpop.permute.xlu0 %1416
    %v1419 = vmul.f32 %v1401, %v1417
    %v1420 = vpack.c.bf16 %v1419, %v1419
    %v1422 = vunpack.c.l.b16 %v1420
    %v1423 = vpack.c.b16 %v1422, %v1422
    %1424 = vrot.lane.b32.xlu0 %v1423, 80
    %v1425 = vpop.permute.xlu0 %1424
    %1427 = vst.msk [vmem:[%s653] sm:$0xf] %vm385, %v1425
    %s1428 = scalar_lea.vmem [#allocation3], 4
    %v1429 = vld [vmem:[%s1428] sm:$0xf]
    %v1430 = vunpack.c.l.bf16 %v1429
    %1431 = vrot.lane.b32.xlu0 %v1339, 80
    %v1432 = vpop.permute.xlu0 %1431
    %v1434 = vsel %vm309, %v1432, 0
    %1436 = vmatprep.subr.bf16.mxu0 0
    %1437 = vmatpush1.bf16.msra.mxu0 0
    %1438 = vmatprep.subr.bf16.mxu0 0
    %1439 = vmatpush1.bf16.msra.mxu0 0
    %1440 = vmatprep.subr.bf16.mxu0 0
    %1441 = vmatpush1.bf16.msra.mxu0 0
    %1442 = vmatprep.subr.bf16.mxu0 0
    %1443 = vmatpush1.bf16.msra.mxu0 0
    %1444 = vmatprep.subr.bf16.mxu0 0
    %1445 = vmatpush1.bf16.msra.mxu0 0
    %1446 = vmatprep.subr.bf16.mxu0 0
    %1447 = vmatpush1.bf16.msra.mxu0 0
    %1448 = vmatprep.subr.bf16.mxu0 0
    %1449 = vmatpush1.bf16.msra.mxu0 0
    %1450 = vmatprep.subr.bf16.mxu0 0
    %1451 = vmatpush1.bf16.msra.mxu0 %v394
    %1452 = vmatprep.subr.bf16.mxu0 0
    %1453 = vmatpush2.bf16.msra.mxu0 0
    %1454 = vmatprep.subr.bf16.mxu0 0
    %1455 = vmatpush2.bf16.msra.mxu0 0
    %1456 = vmatprep.subr.bf16.mxu0 0
    %1457 = vmatpush2.bf16.msra.mxu0 0
    %1458 = vmatprep.subr.bf16.mxu0 0
    %1459 = vmatpush2.bf16.msra.mxu0 0
    %1460 = vmatprep.subr.bf16.mxu0 0
    %1461 = vmatpush2.bf16.msra.mxu0 0
    %1462 = vmatprep.subr.bf16.mxu0 0
    %1463 = vmatpush2.bf16.msra.mxu0 0
    %1464 = vmatprep.subr.bf16.mxu0 0
    %1465 = vmatpush2.bf16.msra.mxu0 0
    %1466 = vmatprep.subr.bf16.mxu0 0
    %1467 = vmatpush2.bf16.msra.mxu0 0
    %1468 = vmatprep.mubr.bf16.mxu0 0
    %1469 = vmatmul.mubr.bf16.gmra.mxu0 %v1434
    %v1470 = vpop.f32.mrf.mxu0
    %v1471 = vadd.f32 0.0, %v1470
    %v1472 = vpop.f32.mrf.mxu0
    %v1473 = vpop.f32.mrf.mxu0
    %v1474 = vpop.f32.mrf.mxu0
    %1475 = vdwg.mxu0
    %v1476 = vadd.f32 %v1430, %v1471
    %v1477 = vxor.u32 %v1476, 2147483648
    %v1478 = vmul.f32 %v1477, 1.442695
    %v1479 = vpow.pop %v1478
    %v1480 = vadd.f32 %v1479, 1.0
    %v1481 = vrcp.pop %v1480
    %v1482 = vmul.f32 1.0, %v1481
    %v1483 = vtanh.pop %v1476
    %v1484 = vmul.f32 %v1482, %v1338
    %1486 = vrot.lane.b32.xlu0 %v1483, 96
    %v1487 = vpop.permute.xlu0 %1486
    %v1489 = vmul.f32 %v1482, %v1487
    %1491 = vrot.lane.b32.xlu0 %v1489, 16
    %v1492 = vpop.permute.xlu0 %1491
    %v1494 = vadd.f32 %v1484, %v1492
    %v1495 = vtanh.pop %v1494
    %1497 = vrot.lane.b32.xlu0 %v1495, 32
    %v1498 = vpop.permute.xlu0 %1497
    %v1500 = vmul.f32 %v1482, %v1498
    %s1501 = scalar_lea.vmem %s1, 8
    %v1502 = vld [vmem:[%s1501] sm:$0xff]
    %vm1503 = vcmp.gt.f32.partialorder %v1502, 0.0
    %v1504 = vsel %vm1503, 1, 0
    %1505 = vset.pattern.permute.xlu0 0
    %1506 = vperm.xlu0 %1505, %v1504
    %v1507 = vpop.permute.xlu0 %1506
    %vm1508 = vcmp.eq.s32.totalorder %v1507, 1
    %v1509 = vsel %vm1508, %v1500, 0.0
    %v1510 = vsel %vm1508, %v1494, 0.0
    %v1511 = vpack.c.bf16 %v1509, %v1509
    %v1513 = vunpack.c.l.b16 %v1511
    %v1514 = vpack.c.b16 %v1513, %v1513
    %1515 = vrot.lane.b32.xlu0 %v1514, 96
    %v1516 = vpop.permute.xlu0 %1515
    %1518 = vst.msk [vmem:[%s561] sm:$0xf] %vm479, %v1516
    %s1519 = scalar_lea.vmem [#allocation2], 28
    %v1520 = vld [vmem:[%s1519] sm:$0xf]
    %v1521 = vunpack.c.l.bf16 %v1520
    %1522 = vrot.lane.b32.xlu0 %v1420, 80
    %v1523 = vpop.permute.xlu0 %1522
    %v1525 = vsel %vm309, %v1523, 0
    %1527 = vmatprep.subr.bf16.mxu0 0
    %1528 = vmatpush1.bf16.msra.mxu0 0
    %1529 = vmatprep.subr.bf16.mxu0 0
    %1530 = vmatpush1.bf16.msra.mxu0 0
    %1531 = vmatprep.subr.bf16.mxu0 0
    %1532 = vmatpush1.bf16.msra.mxu0 0
    %1533 = vmatprep.subr.bf16.mxu0 0
    %1534 = vmatpush1.bf16.msra.mxu0 0
    %1535 = vmatprep.subr.bf16.mxu0 0
    %1536 = vmatpush1.bf16.msra.mxu0 0
    %1537 = vmatprep.subr.bf16.mxu0 0
    %1538 = vmatpush1.bf16.msra.mxu0 0
    %1539 = vmatprep.subr.bf16.mxu0 0
    %1540 = vmatpush1.bf16.msra.mxu0 0
    %1541 = vmatprep.subr.bf16.mxu0 0
    %1542 = vmatpush1.bf16.msra.mxu0 %v307
    %1543 = vmatprep.subr.bf16.mxu0 0
    %1544 = vmatpush2.bf16.msra.mxu0 0
    %1545 = vmatprep.subr.bf16.mxu0 0
    %1546 = vmatpush2.bf16.msra.mxu0 0
    %1547 = vmatprep.subr.bf16.mxu0 0
    %1548 = vmatpush2.bf16.msra.mxu0 0
    %1549 = vmatprep.subr.bf16.mxu0 0
    %1550 = vmatpush2.bf16.msra.mxu0 0
    %1551 = vmatprep.subr.bf16.mxu0 0
    %1552 = vmatpush2.bf16.msra.mxu0 0
    %1553 = vmatprep.subr.bf16.mxu0 0
    %1554 = vmatpush2.bf16.msra.mxu0 0
    %1555 = vmatprep.subr.bf16.mxu0 0
    %1556 = vmatpush2.bf16.msra.mxu0 0
    %1557 = vmatprep.subr.bf16.mxu0 0
    %1558 = vmatpush2.bf16.msra.mxu0 0
    %1559 = vmatprep.mubr.bf16.mxu0 0
    %1560 = vmatmul.mubr.bf16.gmra.mxu0 %v1525
    %v1561 = vpop.f32.mrf.mxu0
    %v1562 = vadd.f32 0.0, %v1561
    %v1563 = vpop.f32.mrf.mxu0
    %v1564 = vpop.f32.mrf.mxu0
    %v1565 = vpop.f32.mrf.mxu0
    %1566 = vdwg.mxu0
    %v1567 = vadd.f32 %v1521, %v1562
    %v1568 = vxor.u32 %v1567, 2147483648
    %v1569 = vmul.f32 %v1568, 1.442695
    %v1570 = vpow.pop %v1569
    %v1571 = vadd.f32 %v1570, 1.0
    %v1572 = vrcp.pop %v1571
    %v1573 = vmul.f32 1.0, %v1572
    %v1574 = vtanh.pop %v1567
    %v1575 = vmul.f32 %v1573, %v1413
    %1577 = vrot.lane.b32.xlu0 %v1574, 96
    %v1578 = vpop.permute.xlu0 %1577
    %v1580 = vmul.f32 %v1573, %v1578
    %1582 = vrot.lane.b32.xlu0 %v1580, 16
    %v1583 = vpop.permute.xlu0 %1582
    %v1585 = vadd.f32 %v1575, %v1583
    %v1586 = vtanh.pop %v1585
    %1588 = vrot.lane.b32.xlu0 %v1586, 32
    %v1589 = vpop.permute.xlu0 %1588
    %v1591 = vmul.f32 %v1573, %v1589
    %v1592 = vpack.c.bf16 %v1591, %v1591
    %v1594 = vunpack.c.l.b16 %v1592
    %v1595 = vpack.c.b16 %v1594, %v1594
    %1596 = vrot.lane.b32.xlu0 %v1595, 80
    %v1597 = vpop.permute.xlu0 %1596
    %1599 = vst.msk [vmem:[%s478] sm:$0xf] %vm385, %v1597
    %v1600 = vld [vmem:[#allocation3] sm:$0xf]
    %v1601 = vunpack.c.l.bf16 %v1600
    %1602 = vrot.lane.b32.xlu0 %v1511, 80
    %v1603 = vpop.permute.xlu0 %1602
    %v1605 = vsel %vm309, %v1603, 0
    %1607 = vmatprep.subr.bf16.mxu0 0
    %1608 = vmatpush1.bf16.msra.mxu0 0
    %1609 = vmatprep.subr.bf16.mxu0 0
    %1610 = vmatpush1.bf16.msra.mxu0 0
    %1611 = vmatprep.subr.bf16.mxu0 0
    %1612 = vmatpush1.bf16.msra.mxu0 0
    %1613 = vmatprep.subr.bf16.mxu0 0
    %1614 = vmatpush1.bf16.msra.mxu0 0
    %1615 = vmatprep.subr.bf16.mxu0 0
    %1616 = vmatpush1.bf16.msra.mxu0 0
    %1617 = vmatprep.subr.bf16.mxu0 0
    %1618 = vmatpush1.bf16.msra.mxu0 0
    %1619 = vmatprep.subr.bf16.mxu0 0
    %1620 = vmatpush1.bf16.msra.mxu0 0
    %1621 = vmatprep.subr.bf16.mxu0 0
    %1622 = vmatpush1.bf16.msra.mxu0 %v394
    %1623 = vmatprep.subr.bf16.mxu0 0
    %1624 = vmatpush2.bf16.msra.mxu0 0
    %1625 = vmatprep.subr.bf16.mxu0 0
    %1626 = vmatpush2.bf16.msra.mxu0 0
    %1627 = vmatprep.subr.bf16.mxu0 0
    %1628 = vmatpush2.bf16.msra.mxu0 0
    %1629 = vmatprep.subr.bf16.mxu0 0
    %1630 = vmatpush2.bf16.msra.mxu0 0
    %1631 = vmatprep.subr.bf16.mxu0 0
    %1632 = vmatpush2.bf16.msra.mxu0 0
    %1633 = vmatprep.subr.bf16.mxu0 0
    %1634 = vmatpush2.bf16.msra.mxu0 0
    %1635 = vmatprep.subr.bf16.mxu0 0
    %1636 = vmatpush2.bf16.msra.mxu0 0
    %1637 = vmatprep.subr.bf16.mxu0 0
    %1638 = vmatpush2.bf16.msra.mxu0 0
    %1639 = vmatprep.mubr.bf16.mxu0 0
    %1640 = vmatmul.mubr.bf16.gmra.mxu0 %v1605
    %v1641 = vpop.f32.mrf.mxu0
    %v1642 = vadd.f32 0.0, %v1641
    %v1643 = vpop.f32.mrf.mxu0
    %v1644 = vpop.f32.mrf.mxu0
    %v1645 = vpop.f32.mrf.mxu0
    %1646 = vdwg.mxu0
    %v1647 = vadd.f32 %v1601, %v1642
    %v1648 = vxor.u32 %v1647, 2147483648
    %v1649 = vmul.f32 %v1648, 1.442695
    %v1650 = vpow.pop %v1649
    %v1651 = vadd.f32 %v1650, 1.0
    %v1652 = vrcp.pop %v1651
    %v1653 = vmul.f32 1.0, %v1652
    %v1654 = vtanh.pop %v1647
    %v1655 = vmul.f32 %v1653, %v1510
    %1657 = vrot.lane.b32.xlu0 %v1654, 96
    %v1658 = vpop.permute.xlu0 %1657
    %v1660 = vmul.f32 %v1653, %v1658
    %1662 = vrot.lane.b32.xlu0 %v1660, 16
    %v1663 = vpop.permute.xlu0 %1662
    %v1665 = vadd.f32 %v1655, %v1663
    %v1666 = vtanh.pop %v1665
    %1668 = vrot.lane.b32.xlu0 %v1666, 32
    %v1669 = vpop.permute.xlu0 %1668
    %v1671 = vmul.f32 %v1653, %v1669
    %v1672 = vld [vmem:[%s1] sm:$0xff]
    %vm1673 = vcmp.gt.f32.partialorder %v1672, 0.0
    %v1674 = vsel %vm1673, 1, 0
    %1675 = vset.pattern.permute.xlu0 0
    %1676 = vperm.xlu0 %1675, %v1674
    %v1677 = vpop.permute.xlu0 %1676
    %vm1678 = vcmp.eq.s32.totalorder %v1677, 1
    %v1679 = vsel %vm1678, %v1671, 0.0
    %v1680 = vpack.c.bf16 %v1679, %v1679
    %v1682 = vunpack.c.l.b16 %v1680
    %v1683 = vpack.c.b16 %v1682, %v1682
    %1684 = vrot.lane.b32.xlu0 %v1683, 96
    %v1685 = vpop.permute.xlu0 %1684
    %1687 = vst.msk [vmem:[#allocation4] sm:$0xf] %vm479, %v1685
    %v1688 = vld [vmem:[#allocation4] sm:$0xf]
    %v1689 = vld [vmem:[#allocation4 + $0x4] sm:$0xf]
    %v1690 = vld [vmem:[#allocation4 + $0x8] sm:$0xf]
    %v1691 = vld [vmem:[#allocation4 + $0xc] sm:$0xf]
    %v1692 = vld [vmem:[#allocation4 + $0x10] sm:$0xf]
    %v1693 = vld [vmem:[#allocation4 + $0x14] sm:$0xf]
    %v1694 = vld [vmem:[#allocation4 + $0x18] sm:$0xf]
    %v1695 = vld [vmem:[#allocation4 + $0x1c] sm:$0xf]
    %v1696 = vld [vmem:[%s7] sm:$0xf]
    %v1697 = vld [vmem:[%s7 + $0x4] sm:$0xf]
    %v1698 = vld [vmem:[%s7 + $0x8] sm:$0xf]
    %v1699 = vld [vmem:[%s7 + $0xc] sm:$0xf]
    %v1700 = vld [vmem:[%s8] sm:$0x1]
    %v1702 = vlaneseq
    %v1703 = vshrl.u32 %v1702, 7
    %v1704 = vsub.s32 0, %v1703
    %v1705 = vrot.slane %v1700, %v1704
    %v1715 = vunpack.c.l.b16 %v1688
    %v1716 = vunpack.c.l.b16 %v1689
    %v1717 = vunpack.c.l.b16 %v1690
    %v1718 = vunpack.c.l.b16 %v1691
    %v1719 = vunpack.c.l.b16 %v1692
    %v1720 = vunpack.c.l.b16 %v1693
    %v1721 = vunpack.c.l.b16 %v1694
    %v1722 = vunpack.c.l.b16 %v1695
    %v1723 = vpack.c.b16 %v1716, %v1715
    %v1724 = vpack.c.b16 %v1718, %v1717
    %v1725 = vpack.c.b16 %v1720, %v1719
    %v1726 = vpack.c.b16 %v1722, %v1721
    %v1731 = vunpack.c.l.b16 %v1696
    %v1732 = vunpack.c.l.b16 %v1697
    %v1733 = vunpack.c.l.b16 %v1698
    %v1734 = vunpack.c.l.b16 %v1699
    %v1735 = vpack.c.b16 %v1732, %v1731
    %v1736 = vpack.c.b16 %v1734, %v1733
    %v1740 = vsel %vm106, %v1723, 0
    %v1743 = vsel %vm106, %v1724, 0
    %v1746 = vsel %vm106, %v1725, 0
    %v1749 = vsel %vm106, %v1726, 0
    %1751 = vmatprep.subr.bf16.mxu0 0
    %1752 = vmatpush1.bf16.msra.mxu0 0
    %1753 = vmatprep.subr.bf16.mxu0 0
    %1754 = vmatpush1.bf16.msra.mxu0 0
    %1755 = vmatprep.subr.bf16.mxu0 0
    %1756 = vmatpush1.bf16.msra.mxu0 0
    %1757 = vmatprep.subr.bf16.mxu0 0
    %1758 = vmatpush1.bf16.msra.mxu0 0
    %1759 = vmatprep.subr.bf16.mxu0 0
    %1760 = vmatpush1.bf16.msra.mxu0 0
    %1761 = vmatprep.subr.bf16.mxu0 0
    %1762 = vmatpush1.bf16.msra.mxu0 0
    %1763 = vmatprep.subr.bf16.mxu0 0
    %1764 = vmatpush1.bf16.msra.mxu0 %v1736
    %1765 = vmatprep.subr.bf16.mxu0 0
    %1766 = vmatpush1.bf16.msra.mxu0 %v1735
    %1767 = vmatprep.subr.bf16.mxu0 0
    %1768 = vmatpush2.bf16.msra.mxu0 0
    %1769 = vmatprep.subr.bf16.mxu0 0
    %1770 = vmatpush2.bf16.msra.mxu0 0
    %1771 = vmatprep.subr.bf16.mxu0 0
    %1772 = vmatpush2.bf16.msra.mxu0 0
    %1773 = vmatprep.subr.bf16.mxu0 0
    %1774 = vmatpush2.bf16.msra.mxu0 0
    %1775 = vmatprep.subr.bf16.mxu0 0
    %1776 = vmatpush2.bf16.msra.mxu0 0
    %1777 = vmatprep.subr.bf16.mxu0 0
    %1778 = vmatpush2.bf16.msra.mxu0 0
    %1779 = vmatprep.subr.bf16.mxu0 0
    %1780 = vmatpush2.bf16.msra.mxu0 0
    %1781 = vmatprep.subr.bf16.mxu0 0
    %1782 = vmatpush2.bf16.msra.mxu0 0
    %1783 = vmatprep.mubr.bf16.mxu0 0
    %1784 = vmatmul.mubr.bf16.gmra.mxu0 %v1740
    %v1785 = vpop.f32.mrf.mxu0
    %v1786 = vadd.f32 %v1705, %v1785
    %v1787 = vpop.f32.mrf.mxu0
    %v1788 = vpop.f32.mrf.mxu0
    %v1789 = vadd.f32 %v1705, %v1788
    %v1790 = vpop.f32.mrf.mxu0
    %1791 = vmatprep.mubr.bf16.mxu0 0
    %1792 = vmatmul.mubr.bf16.gmra.mxu0 %v1743
    %v1793 = vpop.f32.mrf.mxu0
    %v1794 = vadd.f32 %v1705, %v1793
    %v1795 = vpop.f32.mrf.mxu0
    %v1796 = vpop.f32.mrf.mxu0
    %v1797 = vadd.f32 %v1705, %v1796
    %v1798 = vpop.f32.mrf.mxu0
    %1799 = vmatprep.mubr.bf16.mxu0 0
    %1800 = vmatmul.mubr.bf16.gmra.mxu0 %v1746
    %v1801 = vpop.f32.mrf.mxu0
    %v1802 = vadd.f32 %v1705, %v1801
    %v1803 = vpop.f32.mrf.mxu0
    %v1804 = vpop.f32.mrf.mxu0
    %v1805 = vadd.f32 %v1705, %v1804
    %v1806 = vpop.f32.mrf.mxu0
    %1807 = vmatprep.mubr.bf16.mxu0 0
    %1808 = vmatmul.mubr.bf16.gmra.mxu0 %v1749
    %v1809 = vpop.f32.mrf.mxu0
    %v1810 = vadd.f32 %v1705, %v1809
    %v1811 = vpop.f32.mrf.mxu0
    %v1812 = vpop.f32.mrf.mxu0
    %v1813 = vadd.f32 %v1705, %v1812
    %v1814 = vpop.f32.mrf.mxu0
    %1815 = vdwg.mxu0
    %v1816 = vtanh.pop %v1786
    %v1817 = vtanh.pop %v1789
    %v1818 = vtanh.pop %v1794
    %v1819 = vtanh.pop %v1797
    %v1820 = vtanh.pop %v1802
    %v1821 = vtanh.pop %v1805
    %v1822 = vtanh.pop %v1810
    %v1823 = vtanh.pop %v1813
    %v1824 = vpack.c.bf16 %v1817, %v1816
    %v1825 = vpack.c.bf16 %v1819, %v1818
    %v1826 = vpack.c.bf16 %v1821, %v1820
    %v1827 = vpack.c.bf16 %v1823, %v1822
    %v1828 = vld [vmem:[%s9] sm:$0xf]
    %v1829 = vld [vmem:[%s9 + $0x4] sm:$0xf]
    %v1830 = vld [vmem:[%s9 + $0x8] sm:$0xf]
    %v1831 = vld [vmem:[%s9 + $0xc] sm:$0xf]
    %v1832 = vld [vmem:[#allocation5] sm:$0x1]
    %v1834 = vlaneseq
    %v1835 = vshrl.u32 %v1834, 7
    %v1836 = vsub.s32 0, %v1835
    %v1837 = vrot.slane %v1832, %v1836
    %v1843 = vunpack.c.l.b16 %v1828
    %v1844 = vunpack.c.l.b16 %v1829
    %v1845 = vunpack.c.l.b16 %v1830
    %v1846 = vunpack.c.l.b16 %v1831
    %v1847 = vpack.c.b16 %v1844, %v1843
    %v1848 = vpack.c.b16 %v1846, %v1845
    %v1852 = vsel %vm106, %v1824, 0
    %v1855 = vsel %vm106, %v1825, 0
    %v1858 = vsel %vm106, %v1826, 0
    %v1861 = vsel %vm106, %v1827, 0
    %1863 = vmatprep.subr.bf16.mxu0 0
    %1864 = vmatpush1.bf16.msra.mxu0 0
    %1865 = vmatprep.subr.bf16.mxu0 0
    %1866 = vmatpush1.bf16.msra.mxu0 0
    %1867 = vmatprep.subr.bf16.mxu0 0
    %1868 = vmatpush1.bf16.msra.mxu0 0
    %1869 = vmatprep.subr.bf16.mxu0 0
    %1870 = vmatpush1.bf16.msra.mxu0 0
    %1871 = vmatprep.subr.bf16.mxu0 0
    %1872 = vmatpush1.bf16.msra.mxu0 0
    %1873 = vmatprep.subr.bf16.mxu0 0
    %1874 = vmatpush1.bf16.msra.mxu0 0
    %1875 = vmatprep.subr.bf16.mxu0 0
    %1876 = vmatpush1.bf16.msra.mxu0 %v1848
    %1877 = vmatprep.subr.bf16.mxu0 0
    %1878 = vmatpush1.bf16.msra.mxu0 %v1847
    %1879 = vmatprep.subr.bf16.mxu0 0
    %1880 = vmatpush2.bf16.msra.mxu0 0
    %1881 = vmatprep.subr.bf16.mxu0 0
    %1882 = vmatpush2.bf16.msra.mxu0 0
    %1883 = vmatprep.subr.bf16.mxu0 0
    %1884 = vmatpush2.bf16.msra.mxu0 0
    %1885 = vmatprep.subr.bf16.mxu0 0
    %1886 = vmatpush2.bf16.msra.mxu0 0
    %1887 = vmatprep.subr.bf16.mxu0 0
    %1888 = vmatpush2.bf16.msra.mxu0 0
    %1889 = vmatprep.subr.bf16.mxu0 0
    %1890 = vmatpush2.bf16.msra.mxu0 0
    %1891 = vmatprep.subr.bf16.mxu0 0
    %1892 = vmatpush2.bf16.msra.mxu0 0
    %1893 = vmatprep.subr.bf16.mxu0 0
    %1894 = vmatpush2.bf16.msra.mxu0 0
    %1895 = vmatprep.mubr.bf16.mxu0 0
    %1896 = vmatmul.mubr.bf16.gmra.mxu0 %v1852
    %v1897 = vpop.f32.mrf.mxu0
    %v1898 = vadd.f32 %v1837, %v1897
    %v1899 = vpop.f32.mrf.mxu0
    %v1900 = vpop.f32.mrf.mxu0
    %v1901 = vadd.f32 %v1837, %v1900
    %v1902 = vpop.f32.mrf.mxu0
    %1903 = vmatprep.mubr.bf16.mxu0 0
    %1904 = vmatmul.mubr.bf16.gmra.mxu0 %v1855
    %v1905 = vpop.f32.mrf.mxu0
    %v1906 = vadd.f32 %v1837, %v1905
    %v1907 = vpop.f32.mrf.mxu0
    %v1908 = vpop.f32.mrf.mxu0
    %v1909 = vadd.f32 %v1837, %v1908
    %v1910 = vpop.f32.mrf.mxu0
    %1911 = vmatprep.mubr.bf16.mxu0 0
    %1912 = vmatmul.mubr.bf16.gmra.mxu0 %v1858
    %v1913 = vpop.f32.mrf.mxu0
    %v1914 = vadd.f32 %v1837, %v1913
    %v1915 = vpop.f32.mrf.mxu0
    %v1916 = vpop.f32.mrf.mxu0
    %v1917 = vadd.f32 %v1837, %v1916
    %v1918 = vpop.f32.mrf.mxu0
    %1919 = vmatprep.mubr.bf16.mxu0 0
    %1920 = vmatmul.mubr.bf16.gmra.mxu0 %v1861
    %v1921 = vpop.f32.mrf.mxu0
    %v1922 = vadd.f32 %v1837, %v1921
    %v1923 = vpop.f32.mrf.mxu0
    %v1924 = vpop.f32.mrf.mxu0
    %v1925 = vadd.f32 %v1837, %v1924
    %v1926 = vpop.f32.mrf.mxu0
    %1927 = vdwg.mxu0
    %v1928 = vld [vmem:[%s1] sm:$0xff]
    %v1929 = vld [vmem:[%s1 + $0x8] sm:$0xff]
    %v1930 = vld [vmem:[%s1 + $0x10] sm:$0xff]
    %v1931 = vld [vmem:[%s1 + $0x18] sm:$0xff]
    %v1932 = vld [vmem:[%s1 + $0x20] sm:$0xff]
    %v1933 = vld [vmem:[%s1 + $0x28] sm:$0xff]
    %v1934 = vld [vmem:[%s1 + $0x30] sm:$0xff]
    %v1935 = vld [vmem:[%s1 + $0x38] sm:$0xff]
    %v1936 = vsub.f32 1.0, %v1928
    %v1937 = vsub.f32 1.0, %v1929
    %v1938 = vsub.f32 1.0, %v1930
    %v1939 = vsub.f32 1.0, %v1931
    %v1940 = vsub.f32 1.0, %v1932
    %v1941 = vsub.f32 1.0, %v1933
    %v1942 = vsub.f32 1.0, %v1934
    %v1943 = vsub.f32 1.0, %v1935
    %v1944 = vmul.f32 %v1936, -10000.0
    %v1945 = vmul.f32 %v1937, -10000.0
    %v1946 = vmul.f32 %v1938, -10000.0
    %v1947 = vmul.f32 %v1939, -10000.0
    %v1948 = vmul.f32 %v1940, -10000.0
    %v1949 = vmul.f32 %v1941, -10000.0
    %v1950 = vmul.f32 %v1942, -10000.0
    %v1951 = vmul.f32 %v1943, -10000.0
    %v1952 = vadd.f32 %v1898, %v1944
    %v1953 = vadd.f32 %v1901, %v1945
    %v1954 = vadd.f32 %v1906, %v1946
    %v1955 = vadd.f32 %v1909, %v1947
    %v1956 = vadd.f32 %v1914, %v1948
    %v1957 = vadd.f32 %v1917, %v1949
    %v1958 = vadd.f32 %v1922, %v1950
    %v1959 = vadd.f32 %v1925, %v1951
    %vm1960 = vcmask 7168
    %v1961 = vsel %vm1960, %v1952, -inf
    %v1962 = vsel %vm1960, %v1953, -inf
    %v1963 = vsel %vm1960, %v1954, -inf
    %v1964 = vsel %vm1960, %v1955, -inf
    %v1965 = vsel %vm1960, %v1956, -inf
    %v1966 = vmax.f32 %v1961, %v1965
    %v1967 = vsel %vm1960, %v1957, -inf
    %v1968 = vmax.f32 %v1962, %v1967
    %v1969 = vsel %vm1960, %v1958, -inf
    %v1970 = vmax.f32 %v1963, %v1969
    %v1971 = vsel %vm1960, %v1959, -inf
    %v1972 = vmax.f32 %v1964, %v1971
    %v1973 = vmax.f32 %v1966, %v1968
    %v1974 = vmax.f32 %v1970, %v1972
    %v1975 = vmax.f32 %v1973, %v1974
    %v1976 = vsub.f32 %v1952, %v1975
    %v1977 = vsub.f32 %v1953, %v1975
    %v1978 = vsub.f32 %v1954, %v1975
    %v1979 = vsub.f32 %v1955, %v1975
    %v1980 = vsub.f32 %v1956, %v1975
    %v1981 = vsub.f32 %v1957, %v1975
    %v1982 = vsub.f32 %v1958, %v1975
    %v1983 = vsub.f32 %v1959, %v1975
    %v1984 = vmul.f32 %v1976, 1.442695
    %v1985 = vpow.pop %v1984
    %v1986 = vmul.f32 %v1977, 1.442695
    %v1987 = vpow.pop %v1986
    %v1988 = vmul.f32 %v1978, 1.442695
    %v1989 = vpow.pop %v1988
    %v1990 = vmul.f32 %v1979, 1.442695
    %v1991 = vpow.pop %v1990
    %v1992 = vmul.f32 %v1980, 1.442695
    %v1993 = vpow.pop %v1992
    %v1994 = vmul.f32 %v1981, 1.442695
    %v1995 = vpow.pop %v1994
    %v1996 = vmul.f32 %v1982, 1.442695
    %v1997 = vpow.pop %v1996
    %v1998 = vmul.f32 %v1983, 1.442695
    %v1999 = vpow.pop %v1998
    %v2000 = vsel %vm1960, %v1985, 0.0
    %v2001 = vsel %vm1960, %v1987, 0.0
    %v2002 = vadd.f32 %v2000, %v2001
    %v2003 = vsel %vm1960, %v1989, 0.0
    %v2004 = vadd.f32 %v2002, %v2003
    %v2005 = vsel %vm1960, %v1991, 0.0
    %v2006 = vadd.f32 %v2004, %v2005
    %v2007 = vsel %vm1960, %v1993, 0.0
    %v2008 = vadd.f32 %v2006, %v2007
    %v2009 = vsel %vm1960, %v1995, 0.0
    %v2010 = vadd.f32 %v2008, %v2009
    %v2011 = vsel %vm1960, %v1997, 0.0
    %v2012 = vadd.f32 %v2010, %v2011
    %v2013 = vsel %vm1960, %v1999, 0.0
    %v2014 = vadd.f32 %v2012, %v2013
    %v2015 = vrcp.pop %v2014
    %v2016 = vmul.f32 %v1985, %v2015
    %v2017 = vmul.f32 %v1987, %v2015
    %v2018 = vmul.f32 %v1989, %v2015
    %v2019 = vmul.f32 %v1991, %v2015
    %v2020 = vmul.f32 %v1993, %v2015
    %v2021 = vmul.f32 %v1995, %v2015
    %v2022 = vmul.f32 %v1997, %v2015
    %v2023 = vmul.f32 %v1999, %v2015
    %v2024 = vunpack.c.l.bf16 %v1688
    %v2025 = vunpack.c.l.bf16 %v1689
    %v2026 = vunpack.c.l.bf16 %v1690
    %v2027 = vunpack.c.l.bf16 %v1691
    %v2028 = vunpack.c.l.bf16 %v1692
    %v2029 = vunpack.c.l.bf16 %v1693
    %v2030 = vunpack.c.l.bf16 %v1694
    %v2031 = vunpack.c.l.bf16 %v1695
    %2033 = vset.pattern.permute.xlu0 0
    %2034 = vperm.xlu0 %2033, %v2016
    %v2035 = vpop.permute.xlu0 %2034
    %2038 = vset.pattern.permute.xlu0 0
    %2039 = vperm.xlu0 %2038, %v2017
    %v2040 = vpop.permute.xlu0 %2039
    %2043 = vset.pattern.permute.xlu0 0
    %2044 = vperm.xlu0 %2043, %v2018
    %v2045 = vpop.permute.xlu0 %2044
    %2048 = vset.pattern.permute.xlu0 0
    %2049 = vperm.xlu0 %2048, %v2019
    %v2050 = vpop.permute.xlu0 %2049
    %2053 = vset.pattern.permute.xlu0 0
    %2054 = vperm.xlu0 %2053, %v2020
    %v2055 = vpop.permute.xlu0 %2054
    %2058 = vset.pattern.permute.xlu0 0
    %2059 = vperm.xlu0 %2058, %v2021
    %v2060 = vpop.permute.xlu0 %2059
    %2063 = vset.pattern.permute.xlu0 0
    %2064 = vperm.xlu0 %2063, %v2022
    %v2065 = vpop.permute.xlu0 %2064
    %2068 = vset.pattern.permute.xlu0 0
    %2069 = vperm.xlu0 %2068, %v2023
    %v2070 = vpop.permute.xlu0 %2069
    %v2072 = vmul.f32 %v2024, %v2035
    %v2073 = vmul.f32 %v2025, %v2040
    %v2074 = vmul.f32 %v2026, %v2045
    %v2075 = vmul.f32 %v2027, %v2050
    %v2076 = vmul.f32 %v2028, %v2055
    %v2077 = vmul.f32 %v2029, %v2060
    %v2078 = vmul.f32 %v2030, %v2065
    %v2079 = vmul.f32 %v2031, %v2070
    %v2080 = vsel %vm106, %v2072, 0.0
    %v2081 = vsel %vm106, %v2073, 0.0
    %v2082 = vadd.f32 %v2080, %v2081
    %v2083 = vsel %vm106, %v2074, 0.0
    %v2084 = vadd.f32 %v2082, %v2083
    %v2085 = vsel %vm106, %v2075, 0.0
    %v2086 = vadd.f32 %v2084, %v2085
    %v2087 = vsel %vm106, %v2076, 0.0
    %v2088 = vadd.f32 %v2086, %v2087
    %v2089 = vsel %vm106, %v2077, 0.0
    %v2090 = vadd.f32 %v2088, %v2089
    %v2091 = vsel %vm106, %v2078, 0.0
    %v2092 = vadd.f32 %v2090, %v2091
    %v2093 = vsel %vm106, %v2079, 0.0
    %v2094 = vadd.f32 %v2092, %v2093
    %v2095 = vpack.c.bf16 %v2094, %v2094
    %v2096 = vld [vmem:[%s11] sm:$0xf]
    %v2097 = vld [vmem:[%s11 + $0x4] sm:$0xf]
    %v2098 = vld [vmem:[%s11 + $0x8] sm:$0xf]
    %v2099 = vld [vmem:[%s11 + $0xc] sm:$0xf]
    %v2100 = vld [vmem:[%s12] sm:$0x1]
    %v2102 = vlaneseq
    %v2103 = vshrl.u32 %v2102, 7
    %v2104 = vsub.s32 0, %v2103
    %v2105 = vrot.slane %v2100, %v2104
    %v2111 = vunpack.c.l.b16 %v2096
    %v2112 = vunpack.c.l.b16 %v2097
    %v2113 = vunpack.c.l.b16 %v2098
    %v2114 = vunpack.c.l.b16 %v2099
    %v2115 = vpack.c.b16 %v2112, %v2111
    %v2116 = vpack.c.b16 %v2114, %v2113
    %v2120 = vsel %vm106, %v2095, 0
    %2122 = vmatprep.subr.bf16.mxu0 0
    %2123 = vmatpush1.bf16.msra.mxu0 0
    %2124 = vmatprep.subr.bf16.mxu0 0
    %2125 = vmatpush1.bf16.msra.mxu0 0
    %2126 = vmatprep.subr.bf16.mxu0 0
    %2127 = vmatpush1.bf16.msra.mxu0 0
    %2128 = vmatprep.subr.bf16.mxu0 0
    %2129 = vmatpush1.bf16.msra.mxu0 0
    %2130 = vmatprep.subr.bf16.mxu0 0
    %2131 = vmatpush1.bf16.msra.mxu0 0
    %2132 = vmatprep.subr.bf16.mxu0 0
    %2133 = vmatpush1.bf16.msra.mxu0 0
    %2134 = vmatprep.subr.bf16.mxu0 0
    %2135 = vmatpush1.bf16.msra.mxu0 %v2116
    %2136 = vmatprep.subr.bf16.mxu0 0
    %2137 = vmatpush1.bf16.msra.mxu0 %v2115
    %2138 = vmatprep.subr.bf16.mxu0 0
    %2139 = vmatpush2.bf16.msra.mxu0 0
    %2140 = vmatprep.subr.bf16.mxu0 0
    %2141 = vmatpush2.bf16.msra.mxu0 0
    %2142 = vmatprep.subr.bf16.mxu0 0
    %2143 = vmatpush2.bf16.msra.mxu0 0
    %2144 = vmatprep.subr.bf16.mxu0 0
    %2145 = vmatpush2.bf16.msra.mxu0 0
    %2146 = vmatprep.subr.bf16.mxu0 0
    %2147 = vmatpush2.bf16.msra.mxu0 0
    %2148 = vmatprep.subr.bf16.mxu0 0
    %2149 = vmatpush2.bf16.msra.mxu0 0
    %2150 = vmatprep.subr.bf16.mxu0 0
    %2151 = vmatpush2.bf16.msra.mxu0 0
    %2152 = vmatprep.subr.bf16.mxu0 0
    %2153 = vmatpush2.bf16.msra.mxu0 0
    %2154 = vmatprep.mubr.bf16.mxu0 0
    %2155 = vmatmul.mubr.bf16.gmra.mxu0 %v2120
    %v2156 = vpop.f32.mrf.mxu0
    %v2157 = vadd.f32 %v2105, %v2156
    %v2158 = vpop.f32.mrf.mxu0
    %v2159 = vpop.f32.mrf.mxu0
    %v2160 = vpop.f32.mrf.mxu0
    %2161 = vdwg.mxu0
    %v2162 = vtanh.pop %v2157
    %v2163 = vpack.c.bf16 %v2162, %v2162
    %vm2164 = vcmask 257024
    %2165 = vst.msk [vmem:[#allocation9] sm:$0xf] %vm2164, %v2163
    // Predicated region
    $region58: #{tpu_custom_call.1} parent=1 // pred_check
      _
    $region59: #{tpu_custom_call.1} parent=1 // pred_check_branch
      %2167 = sbr.rel (0) target = $region61
    $region60: #{tpu_custom_call.1} parent=1 // pred_region
      %s2169 = ssub.s32 64, 64
      %2170 = vsyncadd [#allocation8], %s2169
      %s2172 = sshll.u32 [#allocation9], 4
      %s2173 = int_to_ptr.vmem [resolvable:$true] %s2172
      %2175 = dma.vmem_to_hbm [thread:$0]  %s2173, 64, %s13, [#allocation8]
    $region61: #{tpu_custom_call.1} parent=1 // pred_fallthru
      _
    // Predicated region
    $region62: #{tpu_custom_call.1} parent=1 // pred_check
      _
    $region63: #{tpu_custom_call.1} parent=1 // pred_check_branch
      %2177 = sbr.rel (0) target = $region65
    $region64: #{tpu_custom_call.1} parent=1 // pred_region
      %2178 = dma.done [#allocation8], 64
    $region65: #{tpu_custom_call.1} parent=1 // pred_fallthru
      _
    %2179 = vsyncpa [#allocation7], 1
    %2180 = vsyncpa [#allocation8], 1

</llo_original>
